<compile_context>
chip_gen: v7x
topology: tpu7x:2x2x1
jax: 0.10.0
libtpu: 0.0.40
codegen_flags: <defaults>
</compile_context>

<pallas_src>
import jax
import jax.numpy as jnp
from jax import lax
from jax.experimental import pallas as pl
from jax.experimental.pallas import tpu as pltpu


# ----------------------------- config ---------------------------------------
B = 8          # batch
N_CTRL = 8     # dim of u
N_SWITCH = 8   # dim of s / of the output switch variable
N_STATE = 8    # dim of x / m (recurrent Gaussian state)
HIDDEN = 32    # hidden width of the conditional dist transform MLP
D_H = N_CTRL + N_SWITCH
EPS = 1e-4
INIT_SCALE = 1.0 / 4.0


def _softplus(x):
    # threshold-20 softplus (PyTorch semantics); identical in kernel and reference.
    return jnp.where(x > 20.0, x, jnp.log(1.0 + jnp.exp(jnp.minimum(x, 20.0))))


def _cholesky_batched(A, n):
    """Unrolled batched Cholesky (outer-product / Schur form) for tiny SPD mats.

    A: (B, n, n) float32 symmetric positive definite.  Returns lower L, A = L L^T.
    Pure VPU/EUP work (no matmuls).  The pivot is strictly positive because the
    caller always adds R = diag((softplus+eps)^2) before factorising.
    """
    rows = lax.broadcasted_iota(jnp.int32, (n, n), 0)
    cols = lax.broadcasted_iota(jnp.int32, (n, n), 1)
    L = jnp.zeros_like(A)
    for j in range(n):                                   # static unroll (n == 8)
        d = A[:, j:j + 1, j:j + 1]                       # (B,1,1) pivot
        inv_sqrt_d = lax.rsqrt(d)
        c = A[:, :, j:j + 1]                             # (B,n,1) pivot column
        mask_j = ((cols == j) & (rows >= j))[None]       # (1,n,n)
        L = jnp.where(mask_j, c * inv_sqrt_d, L)
        # rank-1 Schur update; A stays symmetric, so row j == column j^T.
        c_row = A[:, j:j + 1, :]                         # (B,1,n)
        A = A - (c * c_row) * (inv_sqrt_d * inv_sqrt_d)
    return L


# ----------------------------- kernels ---------------------------------------
def _marginal_kernel(u_ref, s_ref, m_ref, v_ref,
                     w1u_ref, w1s_ref, b1_ref, wh_ref, bh_ref, f_ref,
                     mp_ref, l_ref, vp_ref):
    f32 = jnp.float32
    F = f_ref[...]                                       # (n_switch, n_state)

    # MLP + fused (loc | scale) head.  W1 is split so no concat(u, s) is ever
    # materialised outside the kernel.
    z = jnp.tanh(jnp.dot(u_ref[...], w1u_ref[...], preferred_element_type=f32)
                 + jnp.dot(s_ref[...], w1s_ref[...], preferred_element_type=f32)
                 + b1_ref[...])                          # (B, HIDDEN)
    heads = jnp.dot(z, wh_ref[...], preferred_element_type=f32) + bh_ref[...]
    loc = heads[:, :N_SWITCH]
    scale = _softplus(heads[:, N_SWITCH:]) + EPS
    var = scale * scale                                  # (B, n_switch)

    # mp = m @ F^T + loc
    mp_ref[...] = lax.dot_general(m_ref[...], F, (((1,), (1,)), ((), ())),
                                  preferred_element_type=f32) + loc

    # Vp = F V F^T + diag(var), batched:
    #   (1) one flat matmul  (B*n_state, n_state) @ F^T   -> V F^T for all b
    #   (2) one batched contraction against broadcast F   -> F (V F^T)
    V2 = v_ref[...].reshape(B * N_STATE, N_STATE)
    vft = lax.dot_general(V2, F, (((1,), (1,)), ((), ())),
                          preferred_element_type=f32)    # (B*n_state, n_switch)
    vft = vft.reshape(B, N_STATE, N_SWITCH)
    Fb = jnp.broadcast_to(F, (B, N_SWITCH, N_STATE))
    fvft = lax.dot_general(Fb, vft, (((2,), (1,)), ((0,), (0,))),
                           preferred_element_type=f32)   # (B, n_switch, n_switch)

    rows = lax.broadcasted_iota(jnp.int32, (N_SWITCH, N_SWITCH), 0)
    cols = lax.broadcasted_iota(jnp.int32, (N_SWITCH, N_SWITCH), 1)
    R = jnp.where((rows == cols)[None], var[:, None, :], 0.0)
    Vp = fvft + R
    vp_ref[...] = Vp

    # Fused scale_tril (Vp is SPD since R has a strictly positive diagonal).
    l_ref[...] = _cholesky_batched(Vp, N_SWITCH)


def _sample_kernel(u_ref, s_ref, x_ref,
                   w1u_ref, w1s_ref, b1_ref, wh_ref, bh_ref, f_ref,
                   mp_ref, l_ref, vp_ref):
    f32 = jnp.float32
    F = f_ref[...]
    z = jnp.tanh(jnp.dot(u_ref[...], w1u_ref[...], preferred_element_type=f32)
                 + jnp.dot(s_ref[...], w1s_ref[...], preferred_element_type=f32)
                 + b1_ref[...])
    heads = jnp.dot(z, wh_ref[...], preferred_element_type=f32) + bh_ref[...]
    loc = heads[:, :N_SWITCH]
    scale = _softplus(heads[:, N_SWITCH:]) + EPS
    var = scale * scale

    # mp = F x + loc  (batched matvec)
    mp_ref[...] = lax.dot_general(x_ref[...], F, (((1,), (1,)), ((), ())),
                                  preferred_element_type=f32) + loc

    rows = lax.broadcasted_iota(jnp.int32, (N_SWITCH, N_SWITCH), 0)
    cols = lax.broadcasted_iota(jnp.int32, (N_SWITCH, N_SWITCH), 1)
    eye = (rows == cols)[None]
    vp_ref[...] = jnp.where(eye, var[:, None, :], 0.0)   # Vp = diag(var)
    l_ref[...] = jnp.where(eye, scale[:, None, :], 0.0)  # chol(diag(var)) = diag(scale)


# ----------------------------- wrappers ---------------------------------------
_VMEM = pl.BlockSpec(memory_space=pltpu.MemorySpace.VMEM)
_OUT_SHAPES = (jax.ShapeDtypeStruct((B, N_SWITCH), jnp.float32),
               jax.ShapeDtypeStruct((B, N_SWITCH, N_SWITCH), jnp.float32),
               jax.ShapeDtypeStruct((B, N_SWITCH, N_SWITCH), jnp.float32))


@jax.jit
def _marginal_forward(kp, u, s, m, V):
    return pl.pallas_call(
        _marginal_kernel,
        out_shape=_OUT_SHAPES,
        in_specs=[_VMEM] * 10,
        out_specs=(_VMEM, _VMEM, _VMEM),
    )(u, s, m, V, kp["W1_u"], kp["W1_s"], kp["b1"],
      kp["W_heads"], kp["b_heads"], kp["F"])


@jax.jit
def _sample_forward(kp, u, s, x):
    return pl.pallas_call(
        _sample_kernel,
        out_shape=_OUT_SHAPES,
        in_specs=[_VMEM] * 9,
        out_specs=(_VMEM, _VMEM, _VMEM),
    )(u, s, x, kp["W1_u"], kp["W1_s"], kp["b1"],
      kp["W_heads"], kp["b_heads"], kp["F"])


def gaussian_recurrent_transition(kernel_params, u, s, x=None, m=None, V=None):
    """Mirrors GaussianRecurrentTransition.forward (is_recurrent=True).

    Returns (loc, scale_tril, covariance) of the predicted MultivariateNormal.
    """
    assert x is None or (m is None and V is None)
    # TODO(synk): u=None path (h = s only) needs s-only MLP weights; the demo MLP
    # is defined on concat(u, s), so u is required here.
    assert u is not None
    if m is not None:
        return _marginal_forward(kernel_params, u, s, m, V)
    return _sample_forward(kernel_params, u, s, x)


# ----------------------------- param init -----------------------------------
def init_params(key):
    ks = jax.random.split(key, 4)
    # orthogonal init for F (n_switch, n_state), scaled by 1/4
    a = jax.random.normal(ks[0], (N_STATE, N_SWITCH), jnp.float32)
    q, _ = jnp.linalg.qr(a)                 # (n_state, n_switch), orthonormal cols
    F = q.T * INIT_SCALE                    # (n_switch, n_state), orthonormal rows
    return {
        "F": F,
        "W1": jax.random.normal(ks[1], (D_H, HIDDEN), jnp.float32) * 0.1,
        "b1": jnp.zeros((1, HIDDEN), jnp.float32),
        "W_loc": jax.random.normal(ks[2], (HIDDEN, N_SWITCH), jnp.float32) * 0.1,
        "b_loc": jnp.zeros((1, N_SWITCH), jnp.float32),
        "W_scale": jax.random.normal(ks[3], (HIDDEN, N_SWITCH), jnp.float32) * 0.1,
        "b_scale": jnp.full((1, N_SWITCH), -1.0, jnp.float32),
    }


def prepare_kernel_params(params):
    """One-time packing: split W1 per input (kills the runtime concat) and fuse
    the loc/scale heads into a single matmul weight/bias."""
    return {
        "F": params["F"],
        "W1_u": params["W1"][:N_CTRL],
        "W1_s": params["W1"][N_CTRL:],
        "b1": params["b1"],
        "W_heads": jnp.concatenate([params["W_loc"], params["W_scale"]], axis=1),
        "b_heads": jnp.concatenate([params["b_loc"], params["b_scale"]], axis=1),
    }


# ----------------------------- reference ------------------------------------
def reference(params, u, s, m, V):
    h = jnp.concatenate((u, s), axis=-1)
    z = jnp.tanh(h @ params["W1"] + params["b1"])
    loc = z @ params["W_loc"] + params["b_loc"]
    scale = _softplus(z @ params["W_scale"] + params["b_scale"]) + EPS
    var = scale * scale
    R = jax.vmap(jnp.diag)(var)
    F = params["F"]
    mp = m @ F.T + loc
    Vp = jnp.einsum("ij,bjk,lk->bil", F, V, F) + R
    return mp, Vp, var, scale


# ----------------------------- main ------------------------------------------
if __name__ == "__main__":
    key = jax.random.PRNGKey(0)
    k_param, k_u, k_s, k_m, k_v = jax.random.split(key, 5)
    params = init_params(k_param)
    kparams = prepare_kernel_params(params)

    u = jax.random.normal(k_u, (B, N_CTRL), jnp.float32)
    s = jax.random.normal(k_s, (B, N_SWITCH), jnp.float32)
    m = jax.random.normal(k_m, (B, N_STATE), jnp.float32)
    A = jax.random.normal(k_v, (B, N_STATE, N_STATE), jnp.float32) * 0.3
    V = jnp.einsum("bij,bkj->bik", A, A) + 0.1 * jnp.eye(N_STATE)[None]

    # --- marginalisation path (m, V given) ---
    mp, L, Vp = gaussian_recurrent_transition(kparams, u, s, m=m, V=V)
    jax.block_until_ready((mp, L, Vp))

    mp_ref, Vp_ref, var_ref, scale_ref = reference(params, u, s, m, V)
    L_ref = jnp.linalg.cholesky(Vp_ref)
    assert jnp.allclose(mp, mp_ref, rtol=1e-3, atol=1e-3), "mp mismatch"
    assert jnp.allclose(Vp, Vp_ref, rtol=1e-3, atol=1e-3), "Vp mismatch"
    assert jnp.allclose(L, L_ref, rtol=1e-3, atol=1e-3), "scale_tril mismatch"
    assert jnp.allclose(jnp.einsum("bij,bkj->bik", L, L), Vp_ref,
                        rtol=1e-3, atol=1e-3), "L L^T reconstruction mismatch"

    # --- sample path (x given): Vp = diag(var), scale_tril = diag(scale) ---
    mp_x, L_x, Vp_x = gaussian_recurrent_transition(kparams, u, s, x=m)
    jax.block_until_ready((mp_x, L_x, Vp_x))
    assert jnp.allclose(mp_x, mp_ref, rtol=1e-3, atol=1e-3), "sample mp mismatch"
    assert jnp.allclose(Vp_x, jax.vmap(jnp.diag)(var_ref),
                        rtol=1e-3, atol=1e-3), "sample Vp mismatch"
    assert jnp.allclose(L_x, jax.vmap(jnp.diag)(scale_ref),
                        rtol=1e-3, atol=1e-3), "sample scale_tril mismatch"

    print("KERNEL_OK")
</pallas_src>

<mosaic_0001>
module attributes {stable_mosaic.version = 11 : i64} {
  func.func @_marginal_kernel(%arg0: memref<8x8xf32, #tpu.memory_space<vmem>>, %arg1: memref<8x8xf32, #tpu.memory_space<vmem>>, %arg2: memref<8x8xf32, #tpu.memory_space<vmem>>, %arg3: memref<8x8x8xf32, #tpu.memory_space<vmem>>, %arg4: memref<8x32xf32, #tpu.memory_space<vmem>>, %arg5: memref<8x32xf32, #tpu.memory_space<vmem>>, %arg6: memref<1x32xf32, #tpu.memory_space<vmem>>, %arg7: memref<32x16xf32, #tpu.memory_space<vmem>>, %arg8: memref<1x16xf32, #tpu.memory_space<vmem>>, %arg9: memref<8x8xf32, #tpu.memory_space<vmem>>, %arg10: memref<8x8xf32, #tpu.memory_space<vmem>>, %arg11: memref<8x8x8xf32, #tpu.memory_space<vmem>>, %arg12: memref<8x8x8xf32, #tpu.memory_space<vmem>>) attributes {dimension_semantics = [], scalar_prefetch = 0 : i64, scratch_operands = 0 : i64, tpu.core_type = #tpu.core_type<tc>} {
    %c0 = arith.constant 0 : index
    %c0_0 = arith.constant 0 : index
    %0 = vector.load %arg9[%c0, %c0_0] : memref<8x8xf32, #tpu.memory_space<vmem>>, vector<8x8xf32>
    %c0_1 = arith.constant 0 : index
    %c0_2 = arith.constant 0 : index
    %1 = vector.load %arg0[%c0_1, %c0_2] : memref<8x8xf32, #tpu.memory_space<vmem>>, vector<8x8xf32>
    %c0_3 = arith.constant 0 : index
    %c0_4 = arith.constant 0 : index
    %2 = vector.load %arg4[%c0_3, %c0_4] : memref<8x32xf32, #tpu.memory_space<vmem>>, vector<8x32xf32>
    %cst = arith.constant dense<0.000000e+00> : vector<8x32xf32>
    %3 = tpu.matmul %1, %2, %cst {dimension_numbers = #tpu.dot_dimension_numbers<[1], [0], [0], [1], [0, 0, 1, 1], [], []>} : vector<8x8xf32>, vector<8x32xf32>, vector<8x32xf32> -> vector<8x32xf32>
    %c0_5 = arith.constant 0 : index
    %c0_6 = arith.constant 0 : index
    %4 = vector.load %arg1[%c0_5, %c0_6] : memref<8x8xf32, #tpu.memory_space<vmem>>, vector<8x8xf32>
    %c0_7 = arith.constant 0 : index
    %c0_8 = arith.constant 0 : index
    %5 = vector.load %arg5[%c0_7, %c0_8] : memref<8x32xf32, #tpu.memory_space<vmem>>, vector<8x32xf32>
    %cst_9 = arith.constant dense<0.000000e+00> : vector<8x32xf32>
    %6 = tpu.matmul %4, %5, %cst_9 {dimension_numbers = #tpu.dot_dimension_numbers<[1], [0], [0], [1], [0, 0, 1, 1], [], []>} : vector<8x8xf32>, vector<8x32xf32>, vector<8x32xf32> -> vector<8x32xf32>
    %7 = arith.addf %3, %6 : vector<8x32xf32>
    %c0_10 = arith.constant 0 : index
    %c0_11 = arith.constant 0 : index
    %8 = vector.load %arg6[%c0_10, %c0_11] : memref<1x32xf32, #tpu.memory_space<vmem>>, vector<1x32xf32>
    %9 = vector.broadcast %8 : vector<1x32xf32> to vector<8x32xf32>
    %10 = arith.addf %7, %9 : vector<8x32xf32>
    %11 = math.tanh %10 : vector<8x32xf32>
    %c0_12 = arith.constant 0 : index
    %c0_13 = arith.constant 0 : index
    %12 = vector.load %arg7[%c0_12, %c0_13] : memref<32x16xf32, #tpu.memory_space<vmem>>, vector<32x16xf32>
    %cst_14 = arith.constant dense<0.000000e+00> : vector<8x16xf32>
    %13 = tpu.matmul %11, %12, %cst_14 {dimension_numbers = #tpu.dot_dimension_numbers<[1], [0], [0], [1], [0, 0, 1, 1], [], []>} : vector<8x32xf32>, vector<32x16xf32>, vector<8x16xf32> -> vector<8x16xf32>
    %c0_15 = arith.constant 0 : index
    %c0_16 = arith.constant 0 : index
    %14 = vector.load %arg8[%c0_15, %c0_16] : memref<1x16xf32, #tpu.memory_space<vmem>>, vector<1x16xf32>
    %15 = vector.broadcast %14 : vector<1x16xf32> to vector<8x16xf32>
    %16 = arith.addf %13, %15 : vector<8x16xf32>
    %17 = vector.extract_strided_slice %16 {offsets = [0, 0], sizes = [8, 8], strides = [1, 1]} : vector<8x16xf32> to vector<8x8xf32>
    %18 = vector.extract_strided_slice %16 {offsets = [0, 8], sizes = [8, 8], strides = [1, 1]} : vector<8x16xf32> to vector<8x8xf32>
    %cst_17 = arith.constant 2.000000e+01 : f32
    %19 = vector.broadcast %cst_17 : f32 to vector<8x8xf32>
    %20 = arith.cmpf ogt, %18, %19 : vector<8x8xf32>
    %cst_18 = arith.constant 2.000000e+01 : f32
    %21 = vector.broadcast %cst_18 : f32 to vector<8x8xf32>
    %22 = arith.minimumf %18, %21 : vector<8x8xf32>
    %23 = math.exp %22 : vector<8x8xf32>
    %cst_19 = arith.constant 1.000000e+00 : f32
    %24 = vector.broadcast %cst_19 : f32 to vector<8x8xf32>
    %25 = arith.addf %24, %23 : vector<8x8xf32>
    %26 = math.log %25 : vector<8x8xf32>
    %27 = arith.select %20, %18, %26 : vector<8x8xi1>, vector<8x8xf32>
    %cst_20 = arith.constant 9.99999974E-5 : f32
    %28 = vector.broadcast %cst_20 : f32 to vector<8x8xf32>
    %29 = arith.addf %27, %28 : vector<8x8xf32>
    %30 = arith.mulf %29, %29 : vector<8x8xf32>
    %c0_21 = arith.constant 0 : index
    %c0_22 = arith.constant 0 : index
    %31 = vector.load %arg2[%c0_21, %c0_22] : memref<8x8xf32, #tpu.memory_space<vmem>>, vector<8x8xf32>
    %cst_23 = arith.constant dense<0.000000e+00> : vector<8x8xf32>
    %32 = tpu.matmul %31, %0, %cst_23 {dimension_numbers = #tpu.dot_dimension_numbers<[1], [1], [0], [0], [0, 0, 1, 0], [], []>} : vector<8x8xf32>, vector<8x8xf32>, vector<8x8xf32> -> vector<8x8xf32>
    %33 = arith.addf %32, %17 : vector<8x8xf32>
    %c0_24 = arith.constant 0 : index
    %c0_25 = arith.constant 0 : index
    %34 = vector.load %arg10[%c0_24, %c0_25] : memref<8x8xf32, #tpu.memory_space<vmem>>, vector<8x8xf32>
    tpu.vector_store %arg10[%c0_24, %c0_25], %33 {strides = array<i32>} : memref<8x8xf32, #tpu.memory_space<vmem>>, vector<8x8xf32>,
    %c0_26 = arith.constant 0 : index
    %c0_27 = arith.constant 0 : index
    %c0_28 = arith.constant 0 : index
    %35 = vector.load %arg3[%c0_26, %c0_27, %c0_28] : memref<8x8x8xf32, #tpu.memory_space<vmem>>, vector<8x8x8xf32>
    %36 = vector.shape_cast %35 : vector<8x8x8xf32> to vector<64x8xf32>
    %cst_29 = arith.constant dense<0.000000e+00> : vector<64x8xf32>
    %37 = tpu.matmul %36, %0, %cst_29 {dimension_numbers = #tpu.dot_dimension_numbers<[1], [1], [0], [0], [0, 0, 1, 0], [], []>} : vector<64x8xf32>, vector<8x8xf32>, vector<64x8xf32> -> vector<64x8xf32>
    %38 = vector.shape_cast %37 : vector<64x8xf32> to vector<8x8x8xf32>
    %39 = vector.shape_cast %0 : vector<8x8xf32> to vector<1x8x8xf32>
    %40 = vector.broadcast %39 : vector<1x8x8xf32> to vector<8x8x8xf32>
    %cst_30 = arith.constant dense<0.000000e+00> : vector<8x8x8xf32>
    %41 = tpu.matmul %40, %38, %cst_30 {dimension_numbers = #tpu.dot_dimension_numbers<[2], [1], [1], [2], [0, 0, 0, 1, 1, 2], [0], [0]>} : vector<8x8x8xf32>, vector<8x8x8xf32>, vector<8x8x8xf32> -> vector<8x8x8xf32>
    %42 = tpu.iota {dimensions = array<i32: 0>} : vector<8x8xi32>
    %43 = tpu.iota {dimensions = array<i32: 1>} : vector<8x8xi32>
    %44 = arith.cmpi eq, %42, %43 : vector<8x8xi32>
    %45 = vector.shape_cast %44 : vector<8x8xi1> to vector<1x8x8xi1>
    %46 = vector.shape_cast %30 : vector<8x8xf32> to vector<8x1x8xf32>
    %cst_31 = arith.constant 0.000000e+00 : f32
    %47 = vector.shape_cast %45 : vector<1x8x8xi1> to vector<1x8x8xi1>
    %48 = vector.broadcast %47 : vector<1x8x8xi1> to vector<8x8x8xi1>
    %49 = vector.shape_cast %46 : vector<8x1x8xf32> to vector<8x1x8xf32>
    %50 = vector.broadcast %49 : vector<8x1x8xf32> to vector<8x8x8xf32>
    %51 = vector.broadcast %cst_31 : f32 to vector<8x8x8xf32>
    %52 = arith.select %48, %50, %51 : vector<8x8x8xi1>, vector<8x8x8xf32>
    %53 = arith.addf %41, %52 : vector<8x8x8xf32>
    %c0_32 = arith.constant 0 : index
    %c0_33 = arith.constant 0 : index
    %c0_34 = arith.constant 0 : index
    %54 = vector.load %arg12[%c0_32, %c0_33, %c0_34] : memref<8x8x8xf32, #tpu.memory_space<vmem>>, vector<8x8x8xf32>
    tpu.vector_store %arg12[%c0_32, %c0_33, %c0_34], %53 {strides = array<i32>} : memref<8x8x8xf32, #tpu.memory_space<vmem>>, vector<8x8x8xf32>,
    %55 = tpu.iota {dimensions = array<i32: 0>} : vector<8x8xi32>
    %56 = tpu.iota {dimensions = array<i32: 1>} : vector<8x8xi32>
    %cst_35 = arith.constant 0.000000e+00 : f32
    %57 = vector.broadcast %cst_35 : f32 to vector<8x8x8xf32>
    %58 = vector.extract_strided_slice %53 {offsets = [0, 0, 0], sizes = [8, 1, 1], strides = [1, 1, 1]} : vector<8x8x8xf32> to vector<8x1x1xf32>
    %59 = math.rsqrt %58 : vector<8x1x1xf32>
    %60 = vector.extract_strided_slice %53 {offsets = [0, 0, 0], sizes = [8, 8, 1], strides = [1, 1, 1]} : vector<8x8x8xf32> to vector<8x8x1xf32>
    %c0_i32 = arith.constant 0 : i32
    %61 = vector.broadcast %c0_i32 : i32 to vector<8x8xi32>
    %62 = arith.cmpi eq, %56, %61 : vector<8x8xi32>
    %c0_i32_36 = arith.constant 0 : i32
    %63 = vector.broadcast %c0_i32_36 : i32 to vector<8x8xi32>
    %64 = arith.cmpi sge, %55, %63 : vector<8x8xi32>
    %65 = arith.andi %62, %64 : vector<8x8xi1>
    %66 = vector.shape_cast %65 : vector<8x8xi1> to vector<1x8x8xi1>
    %67 = vector.broadcast %59 : vector<8x1x1xf32> to vector<8x8x1xf32>
    %68 = arith.mulf %60, %67 : vector<8x8x1xf32>
    %69 = vector.shape_cast %66 : vector<1x8x8xi1> to vector<1x8x8xi1>
    %70 = vector.broadcast %69 : vector<1x8x8xi1> to vector<8x8x8xi1>
    %71 = vector.shape_cast %68 : vector<8x8x1xf32> to vector<8x8x1xf32>
    %72 = vector.broadcast %71 : vector<8x8x1xf32> to vector<8x8x8xf32>
    %73 = arith.select %70, %72, %57 : vector<8x8x8xi1>, vector<8x8x8xf32>
    %74 = vector.extract_strided_slice %53 {offsets = [0, 0, 0], sizes = [8, 1, 8], strides = [1, 1, 1]} : vector<8x8x8xf32> to vector<8x1x8xf32>
    %75 = vector.broadcast %60 : vector<8x8x1xf32> to vector<8x8x8xf32>
    %76 = vector.broadcast %74 : vector<8x1x8xf32> to vector<8x8x8xf32>
    %77 = arith.mulf %75, %76 : vector<8x8x8xf32>
    %78 = arith.mulf %59, %59 : vector<8x1x1xf32>
    %79 = vector.broadcast %78 : vector<8x1x1xf32> to vector<8x8x8xf32>
    %80 = arith.mulf %77, %79 : vector<8x8x8xf32>
    %81 = arith.subf %53, %80 : vector<8x8x8xf32>
    %82 = vector.extract_strided_slice %81 {offsets = [0, 1, 1], sizes = [8, 1, 1], strides = [1, 1, 1]} : vector<8x8x8xf32> to vector<8x1x1xf32>
    %83 = math.rsqrt %82 : vector<8x1x1xf32>
    %84 = vector.extract_strided_slice %81 {offsets = [0, 0, 1], sizes = [8, 8, 1], strides = [1, 1, 1]} : vector<8x8x8xf32> to vector<8x8x1xf32>
    %c1_i32 = arith.constant 1 : i32
    %85 = vector.broadcast %c1_i32 : i32 to vector<8x8xi32>
    %86 = arith.cmpi eq, %56, %85 : vector<8x8xi32>
    %c1_i32_37 = arith.constant 1 : i32
    %87 = vector.broadcast %c1_i32_37 : i32 to vector<8x8xi32>
    %88 = arith.cmpi sge, %55, %87 : vector<8x8xi32>
    %89 = arith.andi %86, %88 : vector<8x8xi1>
    %90 = vector.shape_cast %89 : vector<8x8xi1> to vector<1x8x8xi1>
    %91 = vector.broadcast %83 : vector<8x1x1xf32> to vector<8x8x1xf32>
    %92 = arith.mulf %84, %91 : vector<8x8x1xf32>
    %93 = vector.shape_cast %90 : vector<1x8x8xi1> to vector<1x8x8xi1>
    %94 = vector.broadcast %93 : vector<1x8x8xi1> to vector<8x8x8xi1>
    %95 = vector.shape_cast %92 : vector<8x8x1xf32> to vector<8x8x1xf32>
    %96 = vector.broadcast %95 : vector<8x8x1xf32> to vector<8x8x8xf32>
    %97 = arith.select %94, %96, %73 : vector<8x8x8xi1>, vector<8x8x8xf32>
    %98 = vector.extract_strided_slice %81 {offsets = [0, 1, 0], sizes = [8, 1, 8], strides = [1, 1, 1]} : vector<8x8x8xf32> to vector<8x1x8xf32>
    %99 = vector.broadcast %84 : vector<8x8x1xf32> to vector<8x8x8xf32>
    %100 = vector.broadcast %98 : vector<8x1x8xf32> to vector<8x8x8xf32>
    %101 = arith.mulf %99, %100 : vector<8x8x8xf32>
    %102 = arith.mulf %83, %83 : vector<8x1x1xf32>
    %103 = vector.broadcast %102 : vector<8x1x1xf32> to vector<8x8x8xf32>
    %104 = arith.mulf %101, %103 : vector<8x8x8xf32>
    %105 = arith.subf %81, %104 : vector<8x8x8xf32>
    %106 = vector.extract_strided_slice %105 {offsets = [0, 2, 2], sizes = [8, 1, 1], strides = [1, 1, 1]} : vector<8x8x8xf32> to vector<8x1x1xf32>
    %107 = math.rsqrt %106 : vector<8x1x1xf32>
    %108 = vector.extract_strided_slice %105 {offsets = [0, 0, 2], sizes = [8, 8, 1], strides = [1, 1, 1]} : vector<8x8x8xf32> to vector<8x8x1xf32>
    %c2_i32 = arith.constant 2 : i32
    %109 = vector.broadcast %c2_i32 : i32 to vector<8x8xi32>
    %110 = arith.cmpi eq, %56, %109 : vector<8x8xi32>
    %c2_i32_38 = arith.constant 2 : i32
    %111 = vector.broadcast %c2_i32_38 : i32 to vector<8x8xi32>
    %112 = arith.cmpi sge, %55, %111 : vector<8x8xi32>
    %113 = arith.andi %110, %112 : vector<8x8xi1>
    %114 = vector.shape_cast %113 : vector<8x8xi1> to vector<1x8x8xi1>
    %115 = vector.broadcast %107 : vector<8x1x1xf32> to vector<8x8x1xf32>
    %116 = arith.mulf %108, %115 : vector<8x8x1xf32>
    %117 = vector.shape_cast %114 : vector<1x8x8xi1> to vector<1x8x8xi1>
    %118 = vector.broadcast %117 : vector<1x8x8xi1> to vector<8x8x8xi1>
    %119 = vector.shape_cast %116 : vector<8x8x1xf32> to vector<8x8x1xf32>
    %120 = vector.broadcast %119 : vector<8x8x1xf32> to vector<8x8x8xf32>
    %121 = arith.select %118, %120, %97 : vector<8x8x8xi1>, vector<8x8x8xf32>
    %122 = vector.extract_strided_slice %105 {offsets = [0, 2, 0], sizes = [8, 1, 8], strides = [1, 1, 1]} : vector<8x8x8xf32> to vector<8x1x8xf32>
    %123 = vector.broadcast %108 : vector<8x8x1xf32> to vector<8x8x8xf32>
    %124 = vector.broadcast %122 : vector<8x1x8xf32> to vector<8x8x8xf32>
    %125 = arith.mulf %123, %124 : vector<8x8x8xf32>
    %126 = arith.mulf %107, %107 : vector<8x1x1xf32>
    %127 = vector.broadcast %126 : vector<8x1x1xf32> to vector<8x8x8xf32>
    %128 = arith.mulf %125, %127 : vector<8x8x8xf32>
    %129 = arith.subf %105, %128 : vector<8x8x8xf32>
    %130 = vector.extract_strided_slice %129 {offsets = [0, 3, 3], sizes = [8, 1, 1], strides = [1, 1, 1]} : vector<8x8x8xf32> to vector<8x1x1xf32>
    %131 = math.rsqrt %130 : vector<8x1x1xf32>
    %132 = vector.extract_strided_slice %129 {offsets = [0, 0, 3], sizes = [8, 8, 1], strides = [1, 1, 1]} : vector<8x8x8xf32> to vector<8x8x1xf32>
    %c3_i32 = arith.constant 3 : i32
    %133 = vector.broadcast %c3_i32 : i32 to vector<8x8xi32>
    %134 = arith.cmpi eq, %56, %133 : vector<8x8xi32>
    %c3_i32_39 = arith.constant 3 : i32
    %135 = vector.broadcast %c3_i32_39 : i32 to vector<8x8xi32>
    %136 = arith.cmpi sge, %55, %135 : vector<8x8xi32>
    %137 = arith.andi %134, %136 : vector<8x8xi1>
    %138 = vector.shape_cast %137 : vector<8x8xi1> to vector<1x8x8xi1>
    %139 = vector.broadcast %131 : vector<8x1x1xf32> to vector<8x8x1xf32>
    %140 = arith.mulf %132, %139 : vector<8x8x1xf32>
    %141 = vector.shape_cast %138 : vector<1x8x8xi1> to vector<1x8x8xi1>
    %142 = vector.broadcast %141 : vector<1x8x8xi1> to vector<8x8x8xi1>
    %143 = vector.shape_cast %140 : vector<8x8x1xf32> to vector<8x8x1xf32>
    %144 = vector.broadcast %143 : vector<8x8x1xf32> to vector<8x8x8xf32>
    %145 = arith.select %142, %144, %121 : vector<8x8x8xi1>, vector<8x8x8xf32>
    %146 = vector.extract_strided_slice %129 {offsets = [0, 3, 0], sizes = [8, 1, 8], strides = [1, 1, 1]} : vector<8x8x8xf32> to vector<8x1x8xf32>
    %147 = vector.broadcast %132 : vector<8x8x1xf32> to vector<8x8x8xf32>
    %148 = vector.broadcast %146 : vector<8x1x8xf32> to vector<8x8x8xf32>
    %149 = arith.mulf %147, %148 : vector<8x8x8xf32>
    %150 = arith.mulf %131, %131 : vector<8x1x1xf32>
    %151 = vector.broadcast %150 : vector<8x1x1xf32> to vector<8x8x8xf32>
    %152 = arith.mulf %149, %151 : vector<8x8x8xf32>
    %153 = arith.subf %129, %152 : vector<8x8x8xf32>
    %154 = vector.extract_strided_slice %153 {offsets = [0, 4, 4], sizes = [8, 1, 1], strides = [1, 1, 1]} : vector<8x8x8xf32> to vector<8x1x1xf32>
    %155 = math.rsqrt %154 : vector<8x1x1xf32>
    %156 = vector.extract_strided_slice %153 {offsets = [0, 0, 4], sizes = [8, 8, 1], strides = [1, 1, 1]} : vector<8x8x8xf32> to vector<8x8x1xf32>
    %c4_i32 = arith.constant 4 : i32
    %157 = vector.broadcast %c4_i32 : i32 to vector<8x8xi32>
    %158 = arith.cmpi eq, %56, %157 : vector<8x8xi32>
    %c4_i32_40 = arith.constant 4 : i32
    %159 = vector.broadcast %c4_i32_40 : i32 to vector<8x8xi32>
    %160 = arith.cmpi sge, %55, %159 : vector<8x8xi32>
    %161 = arith.andi %158, %160 : vector<8x8xi1>
    %162 = vector.shape_cast %161 : vector<8x8xi1> to vector<1x8x8xi1>
    %163 = vector.broadcast %155 : vector<8x1x1xf32> to vector<8x8x1xf32>
    %164 = arith.mulf %156, %163 : vector<8x8x1xf32>
    %165 = vector.shape_cast %162 : vector<1x8x8xi1> to vector<1x8x8xi1>
    %166 = vector.broadcast %165 : vector<1x8x8xi1> to vector<8x8x8xi1>
    %167 = vector.shape_cast %164 : vector<8x8x1xf32> to vector<8x8x1xf32>
    %168 = vector.broadcast %167 : vector<8x8x1xf32> to vector<8x8x8xf32>
    %169 = arith.select %166, %168, %145 : vector<8x8x8xi1>, vector<8x8x8xf32>
    %170 = vector.extract_strided_slice %153 {offsets = [0, 4, 0], sizes = [8, 1, 8], strides = [1, 1, 1]} : vector<8x8x8xf32> to vector<8x1x8xf32>
    %171 = vector.broadcast %156 : vector<8x8x1xf32> to vector<8x8x8xf32>
    %172 = vector.broadcast %170 : vector<8x1x8xf32> to vector<8x8x8xf32>
    %173 = arith.mulf %171, %172 : vector<8x8x8xf32>
    %174 = arith.mulf %155, %155 : vector<8x1x1xf32>
    %175 = vector.broadcast %174 : vector<8x1x1xf32> to vector<8x8x8xf32>
    %176 = arith.mulf %173, %175 : vector<8x8x8xf32>
    %177 = arith.subf %153, %176 : vector<8x8x8xf32>
    %178 = vector.extract_strided_slice %177 {offsets = [0, 5, 5], sizes = [8, 1, 1], strides = [1, 1, 1]} : vector<8x8x8xf32> to vector<8x1x1xf32>
    %179 = math.rsqrt %178 : vector<8x1x1xf32>
    %180 = vector.extract_strided_slice %177 {offsets = [0, 0, 5], sizes = [8, 8, 1], strides = [1, 1, 1]} : vector<8x8x8xf32> to vector<8x8x1xf32>
    %c5_i32 = arith.constant 5 : i32
    %181 = vector.broadcast %c5_i32 : i32 to vector<8x8xi32>
    %182 = arith.cmpi eq, %56, %181 : vector<8x8xi32>
    %c5_i32_41 = arith.constant 5 : i32
    %183 = vector.broadcast %c5_i32_41 : i32 to vector<8x8xi32>
    %184 = arith.cmpi sge, %55, %183 : vector<8x8xi32>
    %185 = arith.andi %182, %184 : vector<8x8xi1>
    %186 = vector.shape_cast %185 : vector<8x8xi1> to vector<1x8x8xi1>
    %187 = vector.broadcast %179 : vector<8x1x1xf32> to vector<8x8x1xf32>
    %188 = arith.mulf %180, %187 : vector<8x8x1xf32>
    %189 = vector.shape_cast %186 : vector<1x8x8xi1> to vector<1x8x8xi1>
    %190 = vector.broadcast %189 : vector<1x8x8xi1> to vector<8x8x8xi1>
    %191 = vector.shape_cast %188 : vector<8x8x1xf32> to vector<8x8x1xf32>
    %192 = vector.broadcast %191 : vector<8x8x1xf32> to vector<8x8x8xf32>
    %193 = arith.select %190, %192, %169 : vector<8x8x8xi1>, vector<8x8x8xf32>
    %194 = vector.extract_strided_slice %177 {offsets = [0, 5, 0], sizes = [8, 1, 8], strides = [1, 1, 1]} : vector<8x8x8xf32> to vector<8x1x8xf32>
    %195 = vector.broadcast %180 : vector<8x8x1xf32> to vector<8x8x8xf32>
    %196 = vector.broadcast %194 : vector<8x1x8xf32> to vector<8x8x8xf32>
    %197 = arith.mulf %195, %196 : vector<8x8x8xf32>
    %198 = arith.mulf %179, %179 : vector<8x1x1xf32>
    %199 = vector.broadcast %198 : vector<8x1x1xf32> to vector<8x8x8xf32>
    %200 = arith.mulf %197, %199 : vector<8x8x8xf32>
    %201 = arith.subf %177, %200 : vector<8x8x8xf32>
    %202 = vector.extract_strided_slice %201 {offsets = [0, 6, 6], sizes = [8, 1, 1], strides = [1, 1, 1]} : vector<8x8x8xf32> to vector<8x1x1xf32>
    %203 = math.rsqrt %202 : vector<8x1x1xf32>
    %204 = vector.extract_strided_slice %201 {offsets = [0, 0, 6], sizes = [8, 8, 1], strides = [1, 1, 1]} : vector<8x8x8xf32> to vector<8x8x1xf32>
    %c6_i32 = arith.constant 6 : i32
    %205 = vector.broadcast %c6_i32 : i32 to vector<8x8xi32>
    %206 = arith.cmpi eq, %56, %205 : vector<8x8xi32>
    %c6_i32_42 = arith.constant 6 : i32
    %207 = vector.broadcast %c6_i32_42 : i32 to vector<8x8xi32>
    %208 = arith.cmpi sge, %55, %207 : vector<8x8xi32>
    %209 = arith.andi %206, %208 : vector<8x8xi1>
    %210 = vector.shape_cast %209 : vector<8x8xi1> to vector<1x8x8xi1>
    %211 = vector.broadcast %203 : vector<8x1x1xf32> to vector<8x8x1xf32>
    %212 = arith.mulf %204, %211 : vector<8x8x1xf32>
    %213 = vector.shape_cast %210 : vector<1x8x8xi1> to vector<1x8x8xi1>
    %214 = vector.broadcast %213 : vector<1x8x8xi1> to vector<8x8x8xi1>
    %215 = vector.shape_cast %212 : vector<8x8x1xf32> to vector<8x8x1xf32>
    %216 = vector.broadcast %215 : vector<8x8x1xf32> to vector<8x8x8xf32>
    %217 = arith.select %214, %216, %193 : vector<8x8x8xi1>, vector<8x8x8xf32>
    %218 = vector.extract_strided_slice %201 {offsets = [0, 6, 0], sizes = [8, 1, 8], strides = [1, 1, 1]} : vector<8x8x8xf32> to vector<8x1x8xf32>
    %219 = vector.broadcast %204 : vector<8x8x1xf32> to vector<8x8x8xf32>
    %220 = vector.broadcast %218 : vector<8x1x8xf32> to vector<8x8x8xf32>
    %221 = arith.mulf %219, %220 : vector<8x8x8xf32>
    %222 = arith.mulf %203, %203 : vector<8x1x1xf32>
    %223 = vector.broadcast %222 : vector<8x1x1xf32> to vector<8x8x8xf32>
    %224 = arith.mulf %221, %223 : vector<8x8x8xf32>
    %225 = arith.subf %201, %224 : vector<8x8x8xf32>
    %226 = vector.extract_strided_slice %225 {offsets = [0, 7, 7], sizes = [8, 1, 1], strides = [1, 1, 1]} : vector<8x8x8xf32> to vector<8x1x1xf32>
    %227 = math.rsqrt %226 : vector<8x1x1xf32>
    %228 = vector.extract_strided_slice %225 {offsets = [0, 0, 7], sizes = [8, 8, 1], strides = [1, 1, 1]} : vector<8x8x8xf32> to vector<8x8x1xf32>
    %c7_i32 = arith.constant 7 : i32
    %229 = vector.broadcast %c7_i32 : i32 to vector<8x8xi32>
    %230 = arith.cmpi eq, %56, %229 : vector<8x8xi32>
    %c7_i32_43 = arith.constant 7 : i32
    %231 = vector.broadcast %c7_i32_43 : i32 to vector<8x8xi32>
    %232 = arith.cmpi sge, %55, %231 : vector<8x8xi32>
    %233 = arith.andi %230, %232 : vector<8x8xi1>
    %234 = vector.shape_cast %233 : vector<8x8xi1> to vector<1x8x8xi1>
    %235 = vector.broadcast %227 : vector<8x1x1xf32> to vector<8x8x1xf32>
    %236 = arith.mulf %228, %235 : vector<8x8x1xf32>
    %237 = vector.shape_cast %234 : vector<1x8x8xi1> to vector<1x8x8xi1>
    %238 = vector.broadcast %237 : vector<1x8x8xi1> to vector<8x8x8xi1>
    %239 = vector.shape_cast %236 : vector<8x8x1xf32> to vector<8x8x1xf32>
    %240 = vector.broadcast %239 : vector<8x8x1xf32> to vector<8x8x8xf32>
    %241 = arith.select %238, %240, %217 : vector<8x8x8xi1>, vector<8x8x8xf32>
    %c0_44 = arith.constant 0 : index
    %c0_45 = arith.constant 0 : index
    %c0_46 = arith.constant 0 : index
    %242 = vector.load %arg11[%c0_44, %c0_45, %c0_46] : memref<8x8x8xf32, #tpu.memory_space<vmem>>, vector<8x8x8xf32>
    tpu.vector_store %arg11[%c0_44, %c0_45, %c0_46], %241 {strides = array<i32>} : memref<8x8x8xf32, #tpu.memory_space<vmem>>, vector<8x8x8xf32>,
    return
  }
}

</mosaic_0001>

<llo_original>
// kernel: _marginal_forward.1
$region0: #{_marginal_forward.1}
  #allocation0 [shape = 'u32[]', space=smem, size = 0x4, offset = 0x4, fixed_abs, tag = 'smem constant byte address 0x4 - core index']
  #allocation1 [shape = 'u32[144,128]{1,0:T(1,128)}', space=vmem, size = 0x12000, scoped, tag = 'internal scratch']
  %s0 = inlined_call_operand.vmem [shape: f32[8,8], index: 0, kind: input, shape index: {}]
  %s1 = inlined_call_operand.vmem [shape: f32[8,8], index: 1, kind: input, shape index: {}]
  %s2 = inlined_call_operand.hbm [shape: f32[8,8], index: 2, kind: input, shape index: {}]
  %s3 = inlined_call_operand.vmem [shape: f32[8,8,8], index: 3, kind: input, shape index: {}]
  %s4 = inlined_call_operand.hbm [shape: f32[8,32], index: 4, kind: input, shape index: {}]
  %s5 = inlined_call_operand.hbm [shape: f32[8,32], index: 5, kind: input, shape index: {}]
  %s6 = inlined_call_operand.vmem [shape: f32[1,32], index: 6, kind: input, shape index: {}]
  %s7 = inlined_call_operand.vmem [shape: f32[32,16], index: 7, kind: input, shape index: {}]
  %s8 = inlined_call_operand.vmem [shape: f32[1,16], index: 8, kind: input, shape index: {}]
  %s9 = inlined_call_operand.hbm [shape: f32[8,8], index: 9, kind: input, shape index: {}]
  %s10 = inlined_call_operand.hbm [shape: f32[8,8], index: 10, kind: output, shape index: {0}]
  %s11 = inlined_call_operand.hbm [shape: f32[8,8,8], index: 11, kind: output, shape index: {1}]
  %s12 = inlined_call_operand.hbm [shape: f32[8,8,8], index: 12, kind: output, shape index: {2}]
  %13 = xla_tuple %s10, %s11, %s12
  %s14 = sld [smem:[#allocation0]]
  $region82: #{_marginal_forward.1} parent=0
    _
  %s16 = ssub.s32 1, %s14
  %s17 = scalar_select 0, %s16, %s14
  $region1: #{_marginal_forward.1} parent=0
    #allocation2 [shape = 'u8[4096]{0}', space=vmem, size = 0x1000, scoped, tag = 'input window, operand 2, single buffered']
    #allocation3 [shape = 's32[1]{0}', space=sflag, size = 0x4, scoped, tag = 'scoped memory for _marginal_forward.1']
    #allocation4 [shape = 's32[1]{0}', space=sflag, size = 0x4, scoped, tag = 'scoped memory for _marginal_forward.1']
    #allocation5 [shape = 'u8[4096]{0}', space=vmem, size = 0x1000, scoped, tag = 'input window, operand 4, single buffered']
    #allocation6 [shape = 's32[1]{0}', space=sflag, size = 0x4, scoped, tag = 'scoped memory for _marginal_forward.1']
    #allocation7 [shape = 'u8[4096]{0}', space=vmem, size = 0x1000, scoped, tag = 'input window, operand 5, single buffered']
    #allocation8 [shape = 'u8[4096]{0}', space=vmem, size = 0x1000, scoped, tag = 'input window, operand 9, single buffered']
    #allocation9 [shape = 's32[1]{0}', space=sflag, size = 0x4, scoped, tag = 'scoped memory for _marginal_forward.1']
    #allocation10 [shape = 'u8[4096]{0}', space=vmem, size = 0x1000, scoped, tag = 'output window, operand 0, single buffered']
    #allocation11 [shape = 'u8[32768]{0}', space=vmem, size = 0x8000, scoped, tag = 'output window, operand 1, single buffered']
    #allocation12 [shape = 's32[1]{0}', space=sflag, size = 0x4, scoped, tag = 'scoped memory for _marginal_forward.1']
    #allocation13 [shape = 'u8[32768]{0}', space=vmem, size = 0x8000, scoped, tag = 'output window, operand 2, single buffered']
    %18 = vsyncpa [#allocation3], 0
    %19 = vsyncpa [#allocation6], 0
    %20 = vsyncpa [#allocation9], 0
    %21 = vsyncpa [#allocation4], 0
    %22 = vsyncpa [#allocation12], 0
    // Predicated region
    $region2: #{_marginal_forward.1} parent=1 // pred_check
      _
    $region3: #{_marginal_forward.1} parent=1 // pred_check_branch
      %24 = sbr.rel (0) target = $region5
    $region4: #{_marginal_forward.1} parent=1 // pred_region
      _
    $region5: #{_marginal_forward.1} parent=1 // pred_fallthru
      _
    // Predicated region
    $region6: #{_marginal_forward.1} parent=1 // pred_check
      _
    $region7: #{_marginal_forward.1} parent=1 // pred_check_branch
      %26 = sbr.rel (0) target = $region9
    $region8: #{_marginal_forward.1} parent=1 // pred_region
      _
    $region9: #{_marginal_forward.1} parent=1 // pred_fallthru
      _
    // Predicated region
    $region10: #{_marginal_forward.1} parent=1 // pred_check
      _
    $region11: #{_marginal_forward.1} parent=1 // pred_check_branch
      %28 = sbr.rel (0) target = $region13
    $region12: #{_marginal_forward.1} parent=1 // pred_region
      %s30 = ssub.s32 128, 128
      %31 = vsyncadd [#allocation3], %s30
      %s33 = sshll.u32 [#allocation2], 4
      %s34 = int_to_ptr.vmem [resolvable:$true] %s33
      %36 = dma.hbm_to_vmem [thread:$0]  %s2, 128, %s34, [#allocation3]
    $region13: #{_marginal_forward.1} parent=1 // pred_fallthru
      _
    // Predicated region
    $region14: #{_marginal_forward.1} parent=1 // pred_check
      _
    $region15: #{_marginal_forward.1} parent=1 // pred_check_branch
      %38 = sbr.rel (0) target = $region17
    $region16: #{_marginal_forward.1} parent=1 // pred_region
      _
    $region17: #{_marginal_forward.1} parent=1 // pred_fallthru
      _
    // Predicated region
    $region18: #{_marginal_forward.1} parent=1 // pred_check
      _
    $region19: #{_marginal_forward.1} parent=1 // pred_check_branch
      %40 = sbr.rel (0) target = $region21
    $region20: #{_marginal_forward.1} parent=1 // pred_region
      %s42 = ssub.s32 128, 128
      %43 = vsyncadd [#allocation6], %s42
      %s45 = sshll.u32 [#allocation5], 4
      %s46 = int_to_ptr.vmem [resolvable:$true] %s45
      %48 = dma.hbm_to_vmem [thread:$0]  %s4, 128, %s46, [#allocation6]
    $region21: #{_marginal_forward.1} parent=1 // pred_fallthru
      _
    // Predicated region
    $region22: #{_marginal_forward.1} parent=1 // pred_check
      _
    $region23: #{_marginal_forward.1} parent=1 // pred_check_branch
      %50 = sbr.rel (0) target = $region25
    $region24: #{_marginal_forward.1} parent=1 // pred_region
      %s52 = ssub.s32 128, 128
      %53 = vsyncadd [#allocation6], %s52
      %s55 = sshll.u32 [#allocation7], 4
      %s56 = int_to_ptr.vmem [resolvable:$true] %s55
      %58 = dma.hbm_to_vmem [thread:$0]  %s5, 128, %s56, [#allocation6]
    $region25: #{_marginal_forward.1} parent=1 // pred_fallthru
      _
    // Predicated region
    $region26: #{_marginal_forward.1} parent=1 // pred_check
      _
    $region27: #{_marginal_forward.1} parent=1 // pred_check_branch
      %60 = sbr.rel (0) target = $region29
    $region28: #{_marginal_forward.1} parent=1 // pred_region
      _
    $region29: #{_marginal_forward.1} parent=1 // pred_fallthru
      _
    // Predicated region
    $region30: #{_marginal_forward.1} parent=1 // pred_check
      _
    $region31: #{_marginal_forward.1} parent=1 // pred_check_branch
      %62 = sbr.rel (0) target = $region33
    $region32: #{_marginal_forward.1} parent=1 // pred_region
      _
    $region33: #{_marginal_forward.1} parent=1 // pred_fallthru
      _
    // Predicated region
    $region34: #{_marginal_forward.1} parent=1 // pred_check
      _
    $region35: #{_marginal_forward.1} parent=1 // pred_check_branch
      %64 = sbr.rel (0) target = $region37
    $region36: #{_marginal_forward.1} parent=1 // pred_region
      _
    $region37: #{_marginal_forward.1} parent=1 // pred_fallthru
      _
    // Predicated region
    $region38: #{_marginal_forward.1} parent=1 // pred_check
      _
    $region39: #{_marginal_forward.1} parent=1 // pred_check_branch
      %66 = sbr.rel (0) target = $region41
    $region40: #{_marginal_forward.1} parent=1 // pred_region
      %s68 = ssub.s32 128, 128
      %69 = vsyncadd [#allocation9], %s68
      %s71 = sshll.u32 [#allocation8], 4
      %s72 = int_to_ptr.vmem [resolvable:$true] %s71
      %74 = dma.hbm_to_vmem [thread:$0]  %s9, 128, %s72, [#allocation9]
    $region41: #{_marginal_forward.1} parent=1 // pred_fallthru
      _
    // Predicated region
    $region42: #{_marginal_forward.1} parent=1 // pred_check
      _
    $region43: #{_marginal_forward.1} parent=1 // pred_check_branch
      %76 = sbr.rel (0) target = $region45
    $region44: #{_marginal_forward.1} parent=1 // pred_region
      %77 = dma.done [#allocation3], 128
    $region45: #{_marginal_forward.1} parent=1 // pred_fallthru
      _
    // Predicated region
    $region46: #{_marginal_forward.1} parent=1 // pred_check
      _
    $region47: #{_marginal_forward.1} parent=1 // pred_check_branch
      %79 = sbr.rel (0) target = $region49
    $region48: #{_marginal_forward.1} parent=1 // pred_region
      %80 = dma.done [#allocation6], 128
    $region49: #{_marginal_forward.1} parent=1 // pred_fallthru
      _
    // Predicated region
    $region50: #{_marginal_forward.1} parent=1 // pred_check
      _
    $region51: #{_marginal_forward.1} parent=1 // pred_check_branch
      %82 = sbr.rel (0) target = $region53
    $region52: #{_marginal_forward.1} parent=1 // pred_region
      %83 = dma.done [#allocation6], 128
    $region53: #{_marginal_forward.1} parent=1 // pred_fallthru
      _
    // Predicated region
    $region54: #{_marginal_forward.1} parent=1 // pred_check
      _
    $region55: #{_marginal_forward.1} parent=1 // pred_check_branch
      %85 = sbr.rel (0) target = $region57
    $region56: #{_marginal_forward.1} parent=1 // pred_region
      %86 = dma.done [#allocation9], 128
    $region57: #{_marginal_forward.1} parent=1 // pred_fallthru
      _
    %v87 = vld [vmem:[#allocation8] sm:$0xff]
    %v88 = vld [vmem:[%s0] sm:$0xff]
    %v89 = vld [vmem:[#allocation5] sm:$0xff]
    %v90 = vld [vmem:[%s1] sm:$0xff]
    %v91 = vld [vmem:[#allocation7] sm:$0xff]
    %vm92 = vcmask 64512
    %v94 = vsel %vm92, %v90, 0
    %96 = vmatprep.subr.mxu0 0.0
    %97 = vmatpush1.msra.mxu0 %v91
    %98 = vmatprep.subr.mxu0 0.0
    %99 = vmatpush1.msra.mxu0 0.0
    %100 = vmatprep.subr.mxu0 0.0
    %101 = vmatpush1.msra.mxu0 0.0
    %102 = vmatprep.subr.mxu0 0.0
    %103 = vmatpush1.msra.mxu0 0.0
    %104 = vmatprep.subr.mxu0 0.0
    %105 = vmatpush1.msra.mxu0 0.0
    %106 = vmatprep.subr.mxu0 0.0
    %107 = vmatpush1.msra.mxu0 0.0
    %108 = vmatprep.subr.mxu0 0.0
    %109 = vmatpush1.msra.mxu0 0.0
    %110 = vmatprep.subr.mxu0 0.0
    %111 = vmatpush1.msra.mxu0 0.0
    %112 = vmatprep.subr.mxu0 0.0
    %113 = vmatpush1.msra.mxu0 0.0
    %114 = vmatprep.subr.mxu0 0.0
    %115 = vmatpush1.msra.mxu0 0.0
    %116 = vmatprep.subr.mxu0 0.0
    %117 = vmatpush1.msra.mxu0 0.0
    %118 = vmatprep.subr.mxu0 0.0
    %119 = vmatpush1.msra.mxu0 0.0
    %120 = vmatprep.subr.mxu0 0.0
    %121 = vmatpush1.msra.mxu0 0.0
    %122 = vmatprep.subr.mxu0 0.0
    %123 = vmatpush1.msra.mxu0 0.0
    %124 = vmatprep.subr.mxu0 0.0
    %125 = vmatpush1.msra.mxu0 0.0
    %126 = vmatprep.subr.mxu0 0.0
    %127 = vmatpush1.msra.mxu0 0.0
    %128 = vmatprep.subr.mxu0 0.0
    %129 = vmatpush1.msra.mxu0 0.0
    %130 = vmatprep.subr.mxu0 0.0
    %131 = vmatpush1.msra.mxu0 0.0
    %132 = vmatprep.subr.mxu0 0.0
    %133 = vmatpush1.msra.mxu0 0.0
    %134 = vmatprep.subr.mxu0 0.0
    %135 = vmatpush1.msra.mxu0 0.0
    %136 = vmatprep.subr.mxu0 0.0
    %137 = vmatpush1.msra.mxu0 0.0
    %138 = vmatprep.subr.mxu0 0.0
    %139 = vmatpush1.msra.mxu0 0.0
    %140 = vmatprep.subr.mxu0 0.0
    %141 = vmatpush1.msra.mxu0 0.0
    %142 = vmatprep.subr.mxu0 0.0
    %143 = vmatpush1.msra.mxu0 0.0
    %144 = vmatprep.subr.mxu0 0.0
    %145 = vmatpush1.msra.mxu0 0.0
    %146 = vmatprep.subr.mxu0 0.0
    %147 = vmatpush1.msra.mxu0 0.0
    %148 = vmatprep.subr.mxu0 0.0
    %149 = vmatpush1.msra.mxu0 0.0
    %150 = vmatprep.subr.mxu0 0.0
    %151 = vmatpush1.msra.mxu0 0.0
    %152 = vmatprep.subr.mxu0 0.0
    %153 = vmatpush1.msra.mxu0 0.0
    %154 = vmatprep.subr.mxu0 0.0
    %155 = vmatpush1.msra.mxu0 0.0
    %156 = vmatprep.subr.mxu0 0.0
    %157 = vmatpush1.msra.mxu0 0.0
    %158 = vmatprep.subr.mxu0 0.0
    %159 = vmatpush1.msra.mxu0 0.0
    %160 = vmatprep.mubr.f32.mxu0 0.0
    %161 = vmatmul.mubr.f32.gmra.mrb[0].mxu0 %v94
    %v162 = vpop.f32.mrb[0].mxu0
    %v163 = vadd.f32 0.0, %v162
    %v164 = vpop.f32.mrb[0].mxu0
    %165 = vdwg.mxu0
    %v167 = vsel %vm92, %v88, 0
    %169 = vmatprep.subr.mxu0 0.0
    %170 = vmatpush1.msra.mxu0 %v89
    %171 = vmatprep.subr.mxu0 0.0
    %172 = vmatpush1.msra.mxu0 0.0
    %173 = vmatprep.subr.mxu0 0.0
    %174 = vmatpush1.msra.mxu0 0.0
    %175 = vmatprep.subr.mxu0 0.0
    %176 = vmatpush1.msra.mxu0 0.0
    %177 = vmatprep.subr.mxu0 0.0
    %178 = vmatpush1.msra.mxu0 0.0
    %179 = vmatprep.subr.mxu0 0.0
    %180 = vmatpush1.msra.mxu0 0.0
    %181 = vmatprep.subr.mxu0 0.0
    %182 = vmatpush1.msra.mxu0 0.0
    %183 = vmatprep.subr.mxu0 0.0
    %184 = vmatpush1.msra.mxu0 0.0
    %185 = vmatprep.subr.mxu0 0.0
    %186 = vmatpush1.msra.mxu0 0.0
    %187 = vmatprep.subr.mxu0 0.0
    %188 = vmatpush1.msra.mxu0 0.0
    %189 = vmatprep.subr.mxu0 0.0
    %190 = vmatpush1.msra.mxu0 0.0
    %191 = vmatprep.subr.mxu0 0.0
    %192 = vmatpush1.msra.mxu0 0.0
    %193 = vmatprep.subr.mxu0 0.0
    %194 = vmatpush1.msra.mxu0 0.0
    %195 = vmatprep.subr.mxu0 0.0
    %196 = vmatpush1.msra.mxu0 0.0
    %197 = vmatprep.subr.mxu0 0.0
    %198 = vmatpush1.msra.mxu0 0.0
    %199 = vmatprep.subr.mxu0 0.0
    %200 = vmatpush1.msra.mxu0 0.0
    %201 = vmatprep.subr.mxu0 0.0
    %202 = vmatpush1.msra.mxu0 0.0
    %203 = vmatprep.subr.mxu0 0.0
    %204 = vmatpush1.msra.mxu0 0.0
    %205 = vmatprep.subr.mxu0 0.0
    %206 = vmatpush1.msra.mxu0 0.0
    %207 = vmatprep.subr.mxu0 0.0
    %208 = vmatpush1.msra.mxu0 0.0
    %209 = vmatprep.subr.mxu0 0.0
    %210 = vmatpush1.msra.mxu0 0.0
    %211 = vmatprep.subr.mxu0 0.0
    %212 = vmatpush1.msra.mxu0 0.0
    %213 = vmatprep.subr.mxu0 0.0
    %214 = vmatpush1.msra.mxu0 0.0
    %215 = vmatprep.subr.mxu0 0.0
    %216 = vmatpush1.msra.mxu0 0.0
    %217 = vmatprep.subr.mxu0 0.0
    %218 = vmatpush1.msra.mxu0 0.0
    %219 = vmatprep.subr.mxu0 0.0
    %220 = vmatpush1.msra.mxu0 0.0
    %221 = vmatprep.subr.mxu0 0.0
    %222 = vmatpush1.msra.mxu0 0.0
    %223 = vmatprep.subr.mxu0 0.0
    %224 = vmatpush1.msra.mxu0 0.0
    %225 = vmatprep.subr.mxu0 0.0
    %226 = vmatpush1.msra.mxu0 0.0
    %227 = vmatprep.subr.mxu0 0.0
    %228 = vmatpush1.msra.mxu0 0.0
    %229 = vmatprep.subr.mxu0 0.0
    %230 = vmatpush1.msra.mxu0 0.0
    %231 = vmatprep.subr.mxu0 0.0
    %232 = vmatpush1.msra.mxu0 0.0
    %233 = vmatprep.mubr.f32.mxu0 0.0
    %234 = vmatmul.mubr.f32.gmra.mrb[0].mxu0 %v167
    %v235 = vpop.f32.mrb[0].mxu0
    %v236 = vadd.f32 %v163, %v235
    %v237 = vpop.f32.mrb[0].mxu0
    %238 = vdwg.mxu0
    %v239 = vld [vmem:[%s6] sm:$0x1]
    %v241 = vlaneseq
    %v242 = vshrl.u32 %v241, 7
    %v243 = vsub.s32 0, %v242
    %v244 = vrot.slane %v239, %v243
    %v246 = vadd.f32 %v236, %v244
    %v247 = vtanh.pop %v246
    %v248 = vld [vmem:[%s7] sm:$0xff]
    %v249 = vld [vmem:[%s7 + $0x8] sm:$0xff]
    %v250 = vld [vmem:[%s7 + $0x10] sm:$0xff]
    %v251 = vld [vmem:[%s7 + $0x18] sm:$0xff]
    %v252 = vld [vmem:[%s8] sm:$0x1]
    %v254 = vlaneseq
    %v255 = vshrl.u32 %v254, 7
    %v256 = vsub.s32 0, %v255
    %v257 = vrot.slane %v252, %v256
    %vm259 = vcmask 261120
    %v261 = vsel %vm259, %v247, 0
    %263 = vmatprep.subr.mxu0 0.0
    %264 = vmatpush1.msra.mxu0 %v248
    %265 = vmatprep.subr.mxu0 0.0
    %266 = vmatpush1.msra.mxu0 %v249
    %267 = vmatprep.subr.mxu0 0.0
    %268 = vmatpush1.msra.mxu0 %v250
    %269 = vmatprep.subr.mxu0 0.0
    %270 = vmatpush1.msra.mxu0 %v251
    %271 = vmatprep.subr.mxu0 0.0
    %272 = vmatpush1.msra.mxu0 0.0
    %273 = vmatprep.subr.mxu0 0.0
    %274 = vmatpush1.msra.mxu0 0.0
    %275 = vmatprep.subr.mxu0 0.0
    %276 = vmatpush1.msra.mxu0 0.0
    %277 = vmatprep.subr.mxu0 0.0
    %278 = vmatpush1.msra.mxu0 0.0
    %279 = vmatprep.subr.mxu0 0.0
    %280 = vmatpush1.msra.mxu0 0.0
    %281 = vmatprep.subr.mxu0 0.0
    %282 = vmatpush1.msra.mxu0 0.0
    %283 = vmatprep.subr.mxu0 0.0
    %284 = vmatpush1.msra.mxu0 0.0
    %285 = vmatprep.subr.mxu0 0.0
    %286 = vmatpush1.msra.mxu0 0.0
    %287 = vmatprep.subr.mxu0 0.0
    %288 = vmatpush1.msra.mxu0 0.0
    %289 = vmatprep.subr.mxu0 0.0
    %290 = vmatpush1.msra.mxu0 0.0
    %291 = vmatprep.subr.mxu0 0.0
    %292 = vmatpush1.msra.mxu0 0.0
    %293 = vmatprep.subr.mxu0 0.0
    %294 = vmatpush1.msra.mxu0 0.0
    %295 = vmatprep.subr.mxu0 0.0
    %296 = vmatpush1.msra.mxu0 0.0
    %297 = vmatprep.subr.mxu0 0.0
    %298 = vmatpush1.msra.mxu0 0.0
    %299 = vmatprep.subr.mxu0 0.0
    %300 = vmatpush1.msra.mxu0 0.0
    %301 = vmatprep.subr.mxu0 0.0
    %302 = vmatpush1.msra.mxu0 0.0
    %303 = vmatprep.subr.mxu0 0.0
    %304 = vmatpush1.msra.mxu0 0.0
    %305 = vmatprep.subr.mxu0 0.0
    %306 = vmatpush1.msra.mxu0 0.0
    %307 = vmatprep.subr.mxu0 0.0
    %308 = vmatpush1.msra.mxu0 0.0
    %309 = vmatprep.subr.mxu0 0.0
    %310 = vmatpush1.msra.mxu0 0.0
    %311 = vmatprep.subr.mxu0 0.0
    %312 = vmatpush1.msra.mxu0 0.0
    %313 = vmatprep.subr.mxu0 0.0
    %314 = vmatpush1.msra.mxu0 0.0
    %315 = vmatprep.subr.mxu0 0.0
    %316 = vmatpush1.msra.mxu0 0.0
    %317 = vmatprep.subr.mxu0 0.0
    %318 = vmatpush1.msra.mxu0 0.0
    %319 = vmatprep.subr.mxu0 0.0
    %320 = vmatpush1.msra.mxu0 0.0
    %321 = vmatprep.subr.mxu0 0.0
    %322 = vmatpush1.msra.mxu0 0.0
    %323 = vmatprep.subr.mxu0 0.0
    %324 = vmatpush1.msra.mxu0 0.0
    %325 = vmatprep.subr.mxu0 0.0
    %326 = vmatpush1.msra.mxu0 0.0
    %327 = vmatprep.mubr.f32.mxu0 0.0
    %328 = vmatmul.mubr.f32.gmra.mrb[0].mxu0 %v261
    %v329 = vpop.f32.mrb[0].mxu0
    %v330 = vadd.f32 %v257, %v329
    %v331 = vpop.f32.mrb[0].mxu0
    %332 = vdwg.mxu0
    %vm333 = vcmp.gt.f32.partialorder %v330, 20.0
    %v334 = vmin.f32 %v330, 20.0
    %v335 = vmul.f32 %v334, 1.442695
    %v336 = vpow.pop %v335
    %v337 = vadd.f32 %v336, 1.0
    %v338 = vlog2.pop %v337
    %v339 = vmul.f32 %v338, 0.6931472
    %v340 = vsel %vm333, %v330, %v339
    %v341 = vadd.f32 %v340, 0.0001
    %v342 = vmul.f32 %v341, %v341
    %v343 = vld [vmem:[#allocation2] sm:$0xff]
    %v345 = vsel %vm92, %v343, 0
    %v348 = vsel %vm92, %v87, 0
    %350 = vmatprep.subr.mxu0 0.0
    %351 = vmatpush1.xpose.msra.mxu0 %v348
    %352 = vmatprep.subr.mxu0 0.0
    %353 = vmatpush1.xpose.msra.mxu0 0.0
    %354 = vmatprep.subr.mxu0 0.0
    %355 = vmatpush1.xpose.msra.mxu0 0.0
    %356 = vmatprep.subr.mxu0 0.0
    %357 = vmatpush1.xpose.msra.mxu0 0.0
    %358 = vmatprep.subr.mxu0 0.0
    %359 = vmatpush1.xpose.msra.mxu0 0.0
    %360 = vmatprep.subr.mxu0 0.0
    %361 = vmatpush1.xpose.msra.mxu0 0.0
    %362 = vmatprep.subr.mxu0 0.0
    %363 = vmatpush1.xpose.msra.mxu0 0.0
    %364 = vmatprep.subr.mxu0 0.0
    %365 = vmatpush1.xpose.msra.mxu0 0.0
    %366 = vmatprep.subr.mxu0 0.0
    %367 = vmatpush1.xpose.msra.mxu0 0.0
    %368 = vmatprep.subr.mxu0 0.0
    %369 = vmatpush1.xpose.msra.mxu0 0.0
    %370 = vmatprep.subr.mxu0 0.0
    %371 = vmatpush1.xpose.msra.mxu0 0.0
    %372 = vmatprep.subr.mxu0 0.0
    %373 = vmatpush1.xpose.msra.mxu0 0.0
    %374 = vmatprep.subr.mxu0 0.0
    %375 = vmatpush1.xpose.msra.mxu0 0.0
    %376 = vmatprep.subr.mxu0 0.0
    %377 = vmatpush1.xpose.msra.mxu0 0.0
    %378 = vmatprep.subr.mxu0 0.0
    %379 = vmatpush1.xpose.msra.mxu0 0.0
    %380 = vmatprep.subr.mxu0 0.0
    %381 = vmatpush1.xpose.msra.mxu0 0.0
    %382 = vmatprep.subr.mxu0 0.0
    %383 = vmatpush1.xpose.msra.mxu0 0.0
    %384 = vmatprep.subr.mxu0 0.0
    %385 = vmatpush1.xpose.msra.mxu0 0.0
    %386 = vmatprep.subr.mxu0 0.0
    %387 = vmatpush1.xpose.msra.mxu0 0.0
    %388 = vmatprep.subr.mxu0 0.0
    %389 = vmatpush1.xpose.msra.mxu0 0.0
    %390 = vmatprep.subr.mxu0 0.0
    %391 = vmatpush1.xpose.msra.mxu0 0.0
    %392 = vmatprep.subr.mxu0 0.0
    %393 = vmatpush1.xpose.msra.mxu0 0.0
    %394 = vmatprep.subr.mxu0 0.0
    %395 = vmatpush1.xpose.msra.mxu0 0.0
    %396 = vmatprep.subr.mxu0 0.0
    %397 = vmatpush1.xpose.msra.mxu0 0.0
    %398 = vmatprep.subr.mxu0 0.0
    %399 = vmatpush1.xpose.msra.mxu0 0.0
    %400 = vmatprep.subr.mxu0 0.0
    %401 = vmatpush1.xpose.msra.mxu0 0.0
    %402 = vmatprep.subr.mxu0 0.0
    %403 = vmatpush1.xpose.msra.mxu0 0.0
    %404 = vmatprep.subr.mxu0 0.0
    %405 = vmatpush1.xpose.msra.mxu0 0.0
    %406 = vmatprep.subr.mxu0 0.0
    %407 = vmatpush1.xpose.msra.mxu0 0.0
    %408 = vmatprep.subr.mxu0 0.0
    %409 = vmatpush1.xpose.msra.mxu0 0.0
    %410 = vmatprep.subr.mxu0 0.0
    %411 = vmatpush1.xpose.msra.mxu0 0.0
    %412 = vmatprep.subr.mxu0 0.0
    %413 = vmatpush1.xpose.msra.mxu0 0.0
    %414 = vmatprep.mubr.f32.mxu0 0.0
    %415 = vmatmul.mubr.f32.gmra.mrb[0].mxu0 %v345
    %v416 = vpop.f32.mrb[0].mxu0
    %v417 = vadd.f32 %v330, %v416
    %v418 = vpop.f32.mrb[0].mxu0
    %419 = vdwg.mxu0
    %420 = vst.msk [vmem:[#allocation10] sm:$0xff] %vm92, %v417
    %v421 = vld [vmem:[%s3] sm:$0xff]
    %v422 = vld [vmem:[%s3 + $0x8] sm:$0xff]
    %v423 = vld [vmem:[%s3 + $0x10] sm:$0xff]
    %v424 = vld [vmem:[%s3 + $0x18] sm:$0xff]
    %v425 = vld [vmem:[%s3 + $0x20] sm:$0xff]
    %v426 = vld [vmem:[%s3 + $0x28] sm:$0xff]
    %v427 = vld [vmem:[%s3 + $0x30] sm:$0xff]
    %v428 = vld [vmem:[%s3 + $0x38] sm:$0xff]
    %v430 = vsel %vm92, %v421, 0
    %v433 = vsel %vm92, %v422, 0
    %v436 = vsel %vm92, %v423, 0
    %v439 = vsel %vm92, %v424, 0
    %v442 = vsel %vm92, %v425, 0
    %v445 = vsel %vm92, %v426, 0
    %v448 = vsel %vm92, %v427, 0
    %v451 = vsel %vm92, %v428, 0
    %453 = vmatprep.subr.mxu0 0.0
    %454 = vmatpush1.xpose.msra.mxu0 %v348
    %455 = vmatprep.subr.mxu0 0.0
    %456 = vmatpush1.xpose.msra.mxu0 0.0
    %457 = vmatprep.subr.mxu0 0.0
    %458 = vmatpush1.xpose.msra.mxu0 0.0
    %459 = vmatprep.subr.mxu0 0.0
    %460 = vmatpush1.xpose.msra.mxu0 0.0
    %461 = vmatprep.subr.mxu0 0.0
    %462 = vmatpush1.xpose.msra.mxu0 0.0
    %463 = vmatprep.subr.mxu0 0.0
    %464 = vmatpush1.xpose.msra.mxu0 0.0
    %465 = vmatprep.subr.mxu0 0.0
    %466 = vmatpush1.xpose.msra.mxu0 0.0
    %467 = vmatprep.subr.mxu0 0.0
    %468 = vmatpush1.xpose.msra.mxu0 0.0
    %469 = vmatprep.subr.mxu0 0.0
    %470 = vmatpush1.xpose.msra.mxu0 0.0
    %471 = vmatprep.subr.mxu0 0.0
    %472 = vmatpush1.xpose.msra.mxu0 0.0
    %473 = vmatprep.subr.mxu0 0.0
    %474 = vmatpush1.xpose.msra.mxu0 0.0
    %475 = vmatprep.subr.mxu0 0.0
    %476 = vmatpush1.xpose.msra.mxu0 0.0
    %477 = vmatprep.subr.mxu0 0.0
    %478 = vmatpush1.xpose.msra.mxu0 0.0
    %479 = vmatprep.subr.mxu0 0.0
    %480 = vmatpush1.xpose.msra.mxu0 0.0
    %481 = vmatprep.subr.mxu0 0.0
    %482 = vmatpush1.xpose.msra.mxu0 0.0
    %483 = vmatprep.subr.mxu0 0.0
    %484 = vmatpush1.xpose.msra.mxu0 0.0
    %485 = vmatprep.subr.mxu0 0.0
    %486 = vmatpush1.xpose.msra.mxu0 0.0
    %487 = vmatprep.subr.mxu0 0.0
    %488 = vmatpush1.xpose.msra.mxu0 0.0
    %489 = vmatprep.subr.mxu0 0.0
    %490 = vmatpush1.xpose.msra.mxu0 0.0
    %491 = vmatprep.subr.mxu0 0.0
    %492 = vmatpush1.xpose.msra.mxu0 0.0
    %493 = vmatprep.subr.mxu0 0.0
    %494 = vmatpush1.xpose.msra.mxu0 0.0
    %495 = vmatprep.subr.mxu0 0.0
    %496 = vmatpush1.xpose.msra.mxu0 0.0
    %497 = vmatprep.subr.mxu0 0.0
    %498 = vmatpush1.xpose.msra.mxu0 0.0
    %499 = vmatprep.subr.mxu0 0.0
    %500 = vmatpush1.xpose.msra.mxu0 0.0
    %501 = vmatprep.subr.mxu0 0.0
    %502 = vmatpush1.xpose.msra.mxu0 0.0
    %503 = vmatprep.subr.mxu0 0.0
    %504 = vmatpush1.xpose.msra.mxu0 0.0
    %505 = vmatprep.subr.mxu0 0.0
    %506 = vmatpush1.xpose.msra.mxu0 0.0
    %507 = vmatprep.subr.mxu0 0.0
    %508 = vmatpush1.xpose.msra.mxu0 0.0
    %509 = vmatprep.subr.mxu0 0.0
    %510 = vmatpush1.xpose.msra.mxu0 0.0
    %511 = vmatprep.subr.mxu0 0.0
    %512 = vmatpush1.xpose.msra.mxu0 0.0
    %513 = vmatprep.subr.mxu0 0.0
    %514 = vmatpush1.xpose.msra.mxu0 0.0
    %515 = vmatprep.subr.mxu0 0.0
    %516 = vmatpush1.xpose.msra.mxu0 0.0
    %517 = vmatprep.mubr.f32.mxu0 0.0
    %518 = vmatmul.mubr.f32.gmra.mrb[0].mxu0 %v430
    %v519 = vpop.f32.mrb[0].mxu0
    %v520 = vadd.f32 0.0, %v519
    %v521 = vpop.f32.mrb[0].mxu0
    %522 = vmatprep.mubr.f32.mxu0 0.0
    %523 = vmatmul.mubr.f32.gmra.mrb[0].mxu0 %v433
    %v524 = vpop.f32.mrb[0].mxu0
    %v525 = vadd.f32 0.0, %v524
    %v526 = vpop.f32.mrb[0].mxu0
    %527 = vmatprep.mubr.f32.mxu0 0.0
    %528 = vmatmul.mubr.f32.gmra.mrb[0].mxu0 %v436
    %v529 = vpop.f32.mrb[0].mxu0
    %v530 = vadd.f32 0.0, %v529
    %v531 = vpop.f32.mrb[0].mxu0
    %532 = vmatprep.mubr.f32.mxu0 0.0
    %533 = vmatmul.mubr.f32.gmra.mrb[0].mxu0 %v439
    %v534 = vpop.f32.mrb[0].mxu0
    %v535 = vadd.f32 0.0, %v534
    %v536 = vpop.f32.mrb[0].mxu0
    %537 = vmatprep.mubr.f32.mxu0 0.0
    %538 = vmatmul.mubr.f32.gmra.mrb[0].mxu0 %v442
    %v539 = vpop.f32.mrb[0].mxu0
    %v540 = vadd.f32 0.0, %v539
    %v541 = vpop.f32.mrb[0].mxu0
    %542 = vmatprep.mubr.f32.mxu0 0.0
    %543 = vmatmul.mubr.f32.gmra.mrb[0].mxu0 %v445
    %v544 = vpop.f32.mrb[0].mxu0
    %v545 = vadd.f32 0.0, %v544
    %v546 = vpop.f32.mrb[0].mxu0
    %547 = vmatprep.mubr.f32.mxu0 0.0
    %548 = vmatmul.mubr.f32.gmra.mrb[0].mxu0 %v448
    %v549 = vpop.f32.mrb[0].mxu0
    %v550 = vadd.f32 0.0, %v549
    %v551 = vpop.f32.mrb[0].mxu0
    %552 = vmatprep.mubr.f32.mxu0 0.0
    %553 = vmatmul.mubr.f32.gmra.mrb[0].mxu0 %v451
    %v554 = vpop.f32.mrb[0].mxu0
    %v555 = vadd.f32 0.0, %v554
    %v556 = vpop.f32.mrb[0].mxu0
    %557 = vdwg.mxu0
    %v558 = vlaneseq
    %v559 = vshrl.u32 %v558, 7
    %v560 = vlaneseq
    %v561 = vand.u32 %v560, 127
    %vm562 = vcmp.eq.s32.totalorder %v559, %v561
    %v564 = vcombine.high %v342, %v342
    %v566 = vunpack.c.l.s4 1966171168
    %v567 = vunpack.c.0.s8 %v566
    %v568 = vlaneseq
    %v569 = vshrl.u32 %v568, 7
    %v570 = vsub.s32 %v567, %v569
    %v571 = vrot.slane %v342, %v570
    %v573 = vunpack.c.l.s4 1966171168
    %v574 = vunpack.c.0.s8 %v573
    %v575 = vlaneseq
    %v576 = vshrl.u32 %v575, 7
    %v577 = vsub.s32 %v574, %v576
    %v578 = vrot.slane %v564, %v577
    %v579 = vcombine.high %v571, %v571
    %v580 = vcombine.high %v578, %v578
    %v582 = vunpack.c.l.s4 1966171168
    %v583 = vunpack.c.0.s8 %v582
    %v584 = vlaneseq
    %v585 = vshrl.u32 %v584, 7
    %v586 = vsub.s32 %v583, %v585
    %v587 = vrot.slane %v571, %v586
    %v589 = vunpack.c.l.s4 1966171168
    %v590 = vunpack.c.0.s8 %v589
    %v591 = vlaneseq
    %v592 = vshrl.u32 %v591, 7
    %v593 = vsub.s32 %v590, %v592
    %v594 = vrot.slane %v578, %v593
    %v596 = vunpack.c.l.s4 1966171168
    %v597 = vunpack.c.0.s8 %v596
    %v598 = vlaneseq
    %v599 = vshrl.u32 %v598, 7
    %v600 = vsub.s32 %v597, %v599
    %v601 = vrot.slane %v579, %v600
    %v603 = vunpack.c.l.s4 1966171168
    %v604 = vunpack.c.0.s8 %v603
    %v605 = vlaneseq
    %v606 = vshrl.u32 %v605, 7
    %v607 = vsub.s32 %v604, %v606
    %v608 = vrot.slane %v580, %v607
    %v609 = vcombine.high %v587, %v587
    %v610 = vcombine.high %v594, %v594
    %v611 = vcombine.high %v601, %v601
    %v612 = vcombine.high %v608, %v608
    %v613 = vsel %vm562, 1, 0
    %vm614 = vcmp.eq.s32.totalorder %v613, 1
    %v615 = vlaneseq
    %v616 = vshrl.u32 %v615, 7
    %v617 = vsub.s32 0, %v616
    %v618 = vrot.slane %v587, %v617
    %v619 = vlaneseq
    %v620 = vshrl.u32 %v619, 7
    %v621 = vsub.s32 0, %v620
    %v622 = vrot.slane %v601, %v621
    %v623 = vlaneseq
    %v624 = vshrl.u32 %v623, 7
    %v625 = vsub.s32 0, %v624
    %v626 = vrot.slane %v609, %v625
    %v627 = vlaneseq
    %v628 = vshrl.u32 %v627, 7
    %v629 = vsub.s32 0, %v628
    %v630 = vrot.slane %v611, %v629
    %v631 = vlaneseq
    %v632 = vshrl.u32 %v631, 7
    %v633 = vsub.s32 0, %v632
    %v634 = vrot.slane %v594, %v633
    %v635 = vlaneseq
    %v636 = vshrl.u32 %v635, 7
    %v637 = vsub.s32 0, %v636
    %v638 = vrot.slane %v608, %v637
    %v639 = vlaneseq
    %v640 = vshrl.u32 %v639, 7
    %v641 = vsub.s32 0, %v640
    %v642 = vrot.slane %v610, %v641
    %v643 = vlaneseq
    %v644 = vshrl.u32 %v643, 7
    %v645 = vsub.s32 0, %v644
    %v646 = vrot.slane %v612, %v645
    %647 = vrot.lane.b32.xlu0 %v618, 120
    %v648 = vpop.permute.xlu0 %647
    %649 = vrot.lane.b32.xlu0 %v622, 120
    %v650 = vpop.permute.xlu0 %649
    %651 = vrot.lane.b32.xlu0 %v626, 120
    %v652 = vpop.permute.xlu0 %651
    %653 = vrot.lane.b32.xlu0 %v630, 120
    %v654 = vpop.permute.xlu0 %653
    %655 = vrot.lane.b32.xlu0 %v634, 120
    %v656 = vpop.permute.xlu0 %655
    %657 = vrot.lane.b32.xlu0 %v638, 120
    %v658 = vpop.permute.xlu0 %657
    %659 = vrot.lane.b32.xlu0 %v642, 120
    %v660 = vpop.permute.xlu0 %659
    %661 = vrot.lane.b32.xlu0 %v646, 120
    %v662 = vpop.permute.xlu0 %661
    %v671 = vsel %vm614, %v648, 0.0
    %v672 = vsel %vm614, %v650, 0.0
    %v673 = vsel %vm614, %v652, 0.0
    %v674 = vsel %vm614, %v654, 0.0
    %v675 = vsel %vm614, %v656, 0.0
    %v676 = vsel %vm614, %v658, 0.0
    %v677 = vsel %vm614, %v660, 0.0
    %v678 = vsel %vm614, %v662, 0.0
    %679 = vmatprep.subr.mxu0 0.0
    %680 = vmatpush1.msra.mxu0 %v520
    %681 = vmatprep.subr.mxu0 0.0
    %682 = vmatpush1.msra.mxu0 0.0
    %683 = vmatprep.subr.mxu0 0.0
    %684 = vmatpush1.msra.mxu0 0.0
    %685 = vmatprep.subr.mxu0 0.0
    %686 = vmatpush1.msra.mxu0 0.0
    %687 = vmatprep.subr.mxu0 0.0
    %688 = vmatpush1.msra.mxu0 0.0
    %689 = vmatprep.subr.mxu0 0.0
    %690 = vmatpush1.msra.mxu0 0.0
    %691 = vmatprep.subr.mxu0 0.0
    %692 = vmatpush1.msra.mxu0 0.0
    %693 = vmatprep.subr.mxu0 0.0
    %694 = vmatpush1.msra.mxu0 0.0
    %695 = vmatprep.subr.mxu0 0.0
    %696 = vmatpush1.msra.mxu0 0.0
    %697 = vmatprep.subr.mxu0 0.0
    %698 = vmatpush1.msra.mxu0 0.0
    %699 = vmatprep.subr.mxu0 0.0
    %700 = vmatpush1.msra.mxu0 0.0
    %701 = vmatprep.subr.mxu0 0.0
    %702 = vmatpush1.msra.mxu0 0.0
    %703 = vmatprep.subr.mxu0 0.0
    %704 = vmatpush1.msra.mxu0 0.0
    %705 = vmatprep.subr.mxu0 0.0
    %706 = vmatpush1.msra.mxu0 0.0
    %707 = vmatprep.subr.mxu0 0.0
    %708 = vmatpush1.msra.mxu0 0.0
    %709 = vmatprep.subr.mxu0 0.0
    %710 = vmatpush1.msra.mxu0 0.0
    %711 = vmatprep.subr.mxu0 0.0
    %712 = vmatpush1.msra.mxu0 0.0
    %713 = vmatprep.subr.mxu0 0.0
    %714 = vmatpush1.msra.mxu0 0.0
    %715 = vmatprep.subr.mxu0 0.0
    %716 = vmatpush1.msra.mxu0 0.0
    %717 = vmatprep.subr.mxu0 0.0
    %718 = vmatpush1.msra.mxu0 0.0
    %719 = vmatprep.subr.mxu0 0.0
    %720 = vmatpush1.msra.mxu0 0.0
    %721 = vmatprep.subr.mxu0 0.0
    %722 = vmatpush1.msra.mxu0 0.0
    %723 = vmatprep.subr.mxu0 0.0
    %724 = vmatpush1.msra.mxu0 0.0
    %725 = vmatprep.subr.mxu0 0.0
    %726 = vmatpush1.msra.mxu0 0.0
    %727 = vmatprep.subr.mxu0 0.0
    %728 = vmatpush1.msra.mxu0 0.0
    %729 = vmatprep.subr.mxu0 0.0
    %730 = vmatpush1.msra.mxu0 0.0
    %731 = vmatprep.subr.mxu0 0.0
    %732 = vmatpush1.msra.mxu0 0.0
    %733 = vmatprep.subr.mxu0 0.0
    %734 = vmatpush1.msra.mxu0 0.0
    %735 = vmatprep.subr.mxu0 0.0
    %736 = vmatpush1.msra.mxu0 0.0
    %737 = vmatprep.subr.mxu0 0.0
    %738 = vmatpush1.msra.mxu0 0.0
    %739 = vmatprep.subr.mxu0 0.0
    %740 = vmatpush1.msra.mxu0 0.0
    %741 = vmatprep.subr.mxu0 0.0
    %742 = vmatpush1.msra.mxu0 0.0
    %743 = vmatprep.mubr.f32.mxu0 0.0
    %744 = vmatmul.mubr.f32.gmra.mrb[0].mxu0 %v348
    %v745 = vpop.f32.mrb[0].mxu0
    %v746 = vadd.f32 %v671, %v745
    %v747 = vpop.f32.mrb[0].mxu0
    %748 = vdwg.mxu0
    %749 = vmatprep.subr.mxu0 0.0
    %750 = vmatpush1.msra.mxu0 %v525
    %751 = vmatprep.subr.mxu0 0.0
    %752 = vmatpush1.msra.mxu0 0.0
    %753 = vmatprep.subr.mxu0 0.0
    %754 = vmatpush1.msra.mxu0 0.0
    %755 = vmatprep.subr.mxu0 0.0
    %756 = vmatpush1.msra.mxu0 0.0
    %757 = vmatprep.subr.mxu0 0.0
    %758 = vmatpush1.msra.mxu0 0.0
    %759 = vmatprep.subr.mxu0 0.0
    %760 = vmatpush1.msra.mxu0 0.0
    %761 = vmatprep.subr.mxu0 0.0
    %762 = vmatpush1.msra.mxu0 0.0
    %763 = vmatprep.subr.mxu0 0.0
    %764 = vmatpush1.msra.mxu0 0.0
    %765 = vmatprep.subr.mxu0 0.0
    %766 = vmatpush1.msra.mxu0 0.0
    %767 = vmatprep.subr.mxu0 0.0
    %768 = vmatpush1.msra.mxu0 0.0
    %769 = vmatprep.subr.mxu0 0.0
    %770 = vmatpush1.msra.mxu0 0.0
    %771 = vmatprep.subr.mxu0 0.0
    %772 = vmatpush1.msra.mxu0 0.0
    %773 = vmatprep.subr.mxu0 0.0
    %774 = vmatpush1.msra.mxu0 0.0
    %775 = vmatprep.subr.mxu0 0.0
    %776 = vmatpush1.msra.mxu0 0.0
    %777 = vmatprep.subr.mxu0 0.0
    %778 = vmatpush1.msra.mxu0 0.0
    %779 = vmatprep.subr.mxu0 0.0
    %780 = vmatpush1.msra.mxu0 0.0
    %781 = vmatprep.subr.mxu0 0.0
    %782 = vmatpush1.msra.mxu0 0.0
    %783 = vmatprep.subr.mxu0 0.0
    %784 = vmatpush1.msra.mxu0 0.0
    %785 = vmatprep.subr.mxu0 0.0
    %786 = vmatpush1.msra.mxu0 0.0
    %787 = vmatprep.subr.mxu0 0.0
    %788 = vmatpush1.msra.mxu0 0.0
    %789 = vmatprep.subr.mxu0 0.0
    %790 = vmatpush1.msra.mxu0 0.0
    %791 = vmatprep.subr.mxu0 0.0
    %792 = vmatpush1.msra.mxu0 0.0
    %793 = vmatprep.subr.mxu0 0.0
    %794 = vmatpush1.msra.mxu0 0.0
    %795 = vmatprep.subr.mxu0 0.0
    %796 = vmatpush1.msra.mxu0 0.0
    %797 = vmatprep.subr.mxu0 0.0
    %798 = vmatpush1.msra.mxu0 0.0
    %799 = vmatprep.subr.mxu0 0.0
    %800 = vmatpush1.msra.mxu0 0.0
    %801 = vmatprep.subr.mxu0 0.0
    %802 = vmatpush1.msra.mxu0 0.0
    %803 = vmatprep.subr.mxu0 0.0
    %804 = vmatpush1.msra.mxu0 0.0
    %805 = vmatprep.subr.mxu0 0.0
    %806 = vmatpush1.msra.mxu0 0.0
    %807 = vmatprep.subr.mxu0 0.0
    %808 = vmatpush1.msra.mxu0 0.0
    %809 = vmatprep.subr.mxu0 0.0
    %810 = vmatpush1.msra.mxu0 0.0
    %811 = vmatprep.subr.mxu0 0.0
    %812 = vmatpush1.msra.mxu0 0.0
    %813 = vmatprep.mubr.f32.mxu0 0.0
    %814 = vmatmul.mubr.f32.gmra.mrb[0].mxu0 %v348
    %v815 = vpop.f32.mrb[0].mxu0
    %v816 = vadd.f32 %v672, %v815
    %v817 = vpop.f32.mrb[0].mxu0
    %818 = vdwg.mxu0
    %819 = vmatprep.subr.mxu0 0.0
    %820 = vmatpush1.msra.mxu0 %v530
    %821 = vmatprep.subr.mxu0 0.0
    %822 = vmatpush1.msra.mxu0 0.0
    %823 = vmatprep.subr.mxu0 0.0
    %824 = vmatpush1.msra.mxu0 0.0
    %825 = vmatprep.subr.mxu0 0.0
    %826 = vmatpush1.msra.mxu0 0.0
    %827 = vmatprep.subr.mxu0 0.0
    %828 = vmatpush1.msra.mxu0 0.0
    %829 = vmatprep.subr.mxu0 0.0
    %830 = vmatpush1.msra.mxu0 0.0
    %831 = vmatprep.subr.mxu0 0.0
    %832 = vmatpush1.msra.mxu0 0.0
    %833 = vmatprep.subr.mxu0 0.0
    %834 = vmatpush1.msra.mxu0 0.0
    %835 = vmatprep.subr.mxu0 0.0
    %836 = vmatpush1.msra.mxu0 0.0
    %837 = vmatprep.subr.mxu0 0.0
    %838 = vmatpush1.msra.mxu0 0.0
    %839 = vmatprep.subr.mxu0 0.0
    %840 = vmatpush1.msra.mxu0 0.0
    %841 = vmatprep.subr.mxu0 0.0
    %842 = vmatpush1.msra.mxu0 0.0
    %843 = vmatprep.subr.mxu0 0.0
    %844 = vmatpush1.msra.mxu0 0.0
    %845 = vmatprep.subr.mxu0 0.0
    %846 = vmatpush1.msra.mxu0 0.0
    %847 = vmatprep.subr.mxu0 0.0
    %848 = vmatpush1.msra.mxu0 0.0
    %849 = vmatprep.subr.mxu0 0.0
    %850 = vmatpush1.msra.mxu0 0.0
    %851 = vmatprep.subr.mxu0 0.0
    %852 = vmatpush1.msra.mxu0 0.0
    %853 = vmatprep.subr.mxu0 0.0
    %854 = vmatpush1.msra.mxu0 0.0
    %855 = vmatprep.subr.mxu0 0.0
    %856 = vmatpush1.msra.mxu0 0.0
    %857 = vmatprep.subr.mxu0 0.0
    %858 = vmatpush1.msra.mxu0 0.0
    %859 = vmatprep.subr.mxu0 0.0
    %860 = vmatpush1.msra.mxu0 0.0
    %861 = vmatprep.subr.mxu0 0.0
    %862 = vmatpush1.msra.mxu0 0.0
    %863 = vmatprep.subr.mxu0 0.0
    %864 = vmatpush1.msra.mxu0 0.0
    %865 = vmatprep.subr.mxu0 0.0
    %866 = vmatpush1.msra.mxu0 0.0
    %867 = vmatprep.subr.mxu0 0.0
    %868 = vmatpush1.msra.mxu0 0.0
    %869 = vmatprep.subr.mxu0 0.0
    %870 = vmatpush1.msra.mxu0 0.0
    %871 = vmatprep.subr.mxu0 0.0
    %872 = vmatpush1.msra.mxu0 0.0
    %873 = vmatprep.subr.mxu0 0.0
    %874 = vmatpush1.msra.mxu0 0.0
    %875 = vmatprep.subr.mxu0 0.0
    %876 = vmatpush1.msra.mxu0 0.0
    %877 = vmatprep.subr.mxu0 0.0
    %878 = vmatpush1.msra.mxu0 0.0
    %879 = vmatprep.subr.mxu0 0.0
    %880 = vmatpush1.msra.mxu0 0.0
    %881 = vmatprep.subr.mxu0 0.0
    %882 = vmatpush1.msra.mxu0 0.0
    %883 = vmatprep.mubr.f32.mxu0 0.0
    %884 = vmatmul.mubr.f32.gmra.mrb[0].mxu0 %v348
    %v885 = vpop.f32.mrb[0].mxu0
    %v886 = vadd.f32 %v673, %v885
    %v887 = vpop.f32.mrb[0].mxu0
    %888 = vdwg.mxu0
    %889 = vmatprep.subr.mxu0 0.0
    %890 = vmatpush1.msra.mxu0 %v535
    %891 = vmatprep.subr.mxu0 0.0
    %892 = vmatpush1.msra.mxu0 0.0
    %893 = vmatprep.subr.mxu0 0.0
    %894 = vmatpush1.msra.mxu0 0.0
    %895 = vmatprep.subr.mxu0 0.0
    %896 = vmatpush1.msra.mxu0 0.0
    %897 = vmatprep.subr.mxu0 0.0
    %898 = vmatpush1.msra.mxu0 0.0
    %899 = vmatprep.subr.mxu0 0.0
    %900 = vmatpush1.msra.mxu0 0.0
    %901 = vmatprep.subr.mxu0 0.0
    %902 = vmatpush1.msra.mxu0 0.0
    %903 = vmatprep.subr.mxu0 0.0
    %904 = vmatpush1.msra.mxu0 0.0
    %905 = vmatprep.subr.mxu0 0.0
    %906 = vmatpush1.msra.mxu0 0.0
    %907 = vmatprep.subr.mxu0 0.0
    %908 = vmatpush1.msra.mxu0 0.0
    %909 = vmatprep.subr.mxu0 0.0
    %910 = vmatpush1.msra.mxu0 0.0
    %911 = vmatprep.subr.mxu0 0.0
    %912 = vmatpush1.msra.mxu0 0.0
    %913 = vmatprep.subr.mxu0 0.0
    %914 = vmatpush1.msra.mxu0 0.0
    %915 = vmatprep.subr.mxu0 0.0
    %916 = vmatpush1.msra.mxu0 0.0
    %917 = vmatprep.subr.mxu0 0.0
    %918 = vmatpush1.msra.mxu0 0.0
    %919 = vmatprep.subr.mxu0 0.0
    %920 = vmatpush1.msra.mxu0 0.0
    %921 = vmatprep.subr.mxu0 0.0
    %922 = vmatpush1.msra.mxu0 0.0
    %923 = vmatprep.subr.mxu0 0.0
    %924 = vmatpush1.msra.mxu0 0.0
    %925 = vmatprep.subr.mxu0 0.0
    %926 = vmatpush1.msra.mxu0 0.0
    %927 = vmatprep.subr.mxu0 0.0
    %928 = vmatpush1.msra.mxu0 0.0
    %929 = vmatprep.subr.mxu0 0.0
    %930 = vmatpush1.msra.mxu0 0.0
    %931 = vmatprep.subr.mxu0 0.0
    %932 = vmatpush1.msra.mxu0 0.0
    %933 = vmatprep.subr.mxu0 0.0
    %934 = vmatpush1.msra.mxu0 0.0
    %935 = vmatprep.subr.mxu0 0.0
    %936 = vmatpush1.msra.mxu0 0.0
    %937 = vmatprep.subr.mxu0 0.0
    %938 = vmatpush1.msra.mxu0 0.0
    %939 = vmatprep.subr.mxu0 0.0
    %940 = vmatpush1.msra.mxu0 0.0
    %941 = vmatprep.subr.mxu0 0.0
    %942 = vmatpush1.msra.mxu0 0.0
    %943 = vmatprep.subr.mxu0 0.0
    %944 = vmatpush1.msra.mxu0 0.0
    %945 = vmatprep.subr.mxu0 0.0
    %946 = vmatpush1.msra.mxu0 0.0
    %947 = vmatprep.subr.mxu0 0.0
    %948 = vmatpush1.msra.mxu0 0.0
    %949 = vmatprep.subr.mxu0 0.0
    %950 = vmatpush1.msra.mxu0 0.0
    %951 = vmatprep.subr.mxu0 0.0
    %952 = vmatpush1.msra.mxu0 0.0
    %953 = vmatprep.mubr.f32.mxu0 0.0
    %954 = vmatmul.mubr.f32.gmra.mrb[0].mxu0 %v348
    %v955 = vpop.f32.mrb[0].mxu0
    %v956 = vadd.f32 %v674, %v955
    %v957 = vpop.f32.mrb[0].mxu0
    %958 = vdwg.mxu0
    %959 = vmatprep.subr.mxu0 0.0
    %960 = vmatpush1.msra.mxu0 %v540
    %961 = vmatprep.subr.mxu0 0.0
    %962 = vmatpush1.msra.mxu0 0.0
    %963 = vmatprep.subr.mxu0 0.0
    %964 = vmatpush1.msra.mxu0 0.0
    %965 = vmatprep.subr.mxu0 0.0
    %966 = vmatpush1.msra.mxu0 0.0
    %967 = vmatprep.subr.mxu0 0.0
    %968 = vmatpush1.msra.mxu0 0.0
    %969 = vmatprep.subr.mxu0 0.0
    %970 = vmatpush1.msra.mxu0 0.0
    %971 = vmatprep.subr.mxu0 0.0
    %972 = vmatpush1.msra.mxu0 0.0
    %973 = vmatprep.subr.mxu0 0.0
    %974 = vmatpush1.msra.mxu0 0.0
    %975 = vmatprep.subr.mxu0 0.0
    %976 = vmatpush1.msra.mxu0 0.0
    %977 = vmatprep.subr.mxu0 0.0
    %978 = vmatpush1.msra.mxu0 0.0
    %979 = vmatprep.subr.mxu0 0.0
    %980 = vmatpush1.msra.mxu0 0.0
    %981 = vmatprep.subr.mxu0 0.0
    %982 = vmatpush1.msra.mxu0 0.0
    %983 = vmatprep.subr.mxu0 0.0
    %984 = vmatpush1.msra.mxu0 0.0
    %985 = vmatprep.subr.mxu0 0.0
    %986 = vmatpush1.msra.mxu0 0.0
    %987 = vmatprep.subr.mxu0 0.0
    %988 = vmatpush1.msra.mxu0 0.0
    %989 = vmatprep.subr.mxu0 0.0
    %990 = vmatpush1.msra.mxu0 0.0
    %991 = vmatprep.subr.mxu0 0.0
    %992 = vmatpush1.msra.mxu0 0.0
    %993 = vmatprep.subr.mxu0 0.0
    %994 = vmatpush1.msra.mxu0 0.0
    %995 = vmatprep.subr.mxu0 0.0
    %996 = vmatpush1.msra.mxu0 0.0
    %997 = vmatprep.subr.mxu0 0.0
    %998 = vmatpush1.msra.mxu0 0.0
    %999 = vmatprep.subr.mxu0 0.0
    %1000 = vmatpush1.msra.mxu0 0.0
    %1001 = vmatprep.subr.mxu0 0.0
    %1002 = vmatpush1.msra.mxu0 0.0
    %1003 = vmatprep.subr.mxu0 0.0
    %1004 = vmatpush1.msra.mxu0 0.0
    %1005 = vmatprep.subr.mxu0 0.0
    %1006 = vmatpush1.msra.mxu0 0.0
    %1007 = vmatprep.subr.mxu0 0.0
    %1008 = vmatpush1.msra.mxu0 0.0
    %1009 = vmatprep.subr.mxu0 0.0
    %1010 = vmatpush1.msra.mxu0 0.0
    %1011 = vmatprep.subr.mxu0 0.0
    %1012 = vmatpush1.msra.mxu0 0.0
    %1013 = vmatprep.subr.mxu0 0.0
    %1014 = vmatpush1.msra.mxu0 0.0
    %1015 = vmatprep.subr.mxu0 0.0
    %1016 = vmatpush1.msra.mxu0 0.0
    %1017 = vmatprep.subr.mxu0 0.0
    %1018 = vmatpush1.msra.mxu0 0.0
    %1019 = vmatprep.subr.mxu0 0.0
    %1020 = vmatpush1.msra.mxu0 0.0
    %1021 = vmatprep.subr.mxu0 0.0
    %1022 = vmatpush1.msra.mxu0 0.0
    %1023 = vmatprep.mubr.f32.mxu0 0.0
    %1024 = vmatmul.mubr.f32.gmra.mrb[0].mxu0 %v348
    %v1025 = vpop.f32.mrb[0].mxu0
    %v1026 = vadd.f32 %v675, %v1025
    %v1027 = vpop.f32.mrb[0].mxu0
    %1028 = vdwg.mxu0
    %1029 = vmatprep.subr.mxu0 0.0
    %1030 = vmatpush1.msra.mxu0 %v545
    %1031 = vmatprep.subr.mxu0 0.0
    %1032 = vmatpush1.msra.mxu0 0.0
    %1033 = vmatprep.subr.mxu0 0.0
    %1034 = vmatpush1.msra.mxu0 0.0
    %1035 = vmatprep.subr.mxu0 0.0
    %1036 = vmatpush1.msra.mxu0 0.0
    %1037 = vmatprep.subr.mxu0 0.0
    %1038 = vmatpush1.msra.mxu0 0.0
    %1039 = vmatprep.subr.mxu0 0.0
    %1040 = vmatpush1.msra.mxu0 0.0
    %1041 = vmatprep.subr.mxu0 0.0
    %1042 = vmatpush1.msra.mxu0 0.0
    %1043 = vmatprep.subr.mxu0 0.0
    %1044 = vmatpush1.msra.mxu0 0.0
    %1045 = vmatprep.subr.mxu0 0.0
    %1046 = vmatpush1.msra.mxu0 0.0
    %1047 = vmatprep.subr.mxu0 0.0
    %1048 = vmatpush1.msra.mxu0 0.0
    %1049 = vmatprep.subr.mxu0 0.0
    %1050 = vmatpush1.msra.mxu0 0.0
    %1051 = vmatprep.subr.mxu0 0.0
    %1052 = vmatpush1.msra.mxu0 0.0
    %1053 = vmatprep.subr.mxu0 0.0
    %1054 = vmatpush1.msra.mxu0 0.0
    %1055 = vmatprep.subr.mxu0 0.0
    %1056 = vmatpush1.msra.mxu0 0.0
    %1057 = vmatprep.subr.mxu0 0.0
    %1058 = vmatpush1.msra.mxu0 0.0
    %1059 = vmatprep.subr.mxu0 0.0
    %1060 = vmatpush1.msra.mxu0 0.0
    %1061 = vmatprep.subr.mxu0 0.0
    %1062 = vmatpush1.msra.mxu0 0.0
    %1063 = vmatprep.subr.mxu0 0.0
    %1064 = vmatpush1.msra.mxu0 0.0
    %1065 = vmatprep.subr.mxu0 0.0
    %1066 = vmatpush1.msra.mxu0 0.0
    %1067 = vmatprep.subr.mxu0 0.0
    %1068 = vmatpush1.msra.mxu0 0.0
    %1069 = vmatprep.subr.mxu0 0.0
    %1070 = vmatpush1.msra.mxu0 0.0
    %1071 = vmatprep.subr.mxu0 0.0
    %1072 = vmatpush1.msra.mxu0 0.0
    %1073 = vmatprep.subr.mxu0 0.0
    %1074 = vmatpush1.msra.mxu0 0.0
    %1075 = vmatprep.subr.mxu0 0.0
    %1076 = vmatpush1.msra.mxu0 0.0
    %1077 = vmatprep.subr.mxu0 0.0
    %1078 = vmatpush1.msra.mxu0 0.0
    %1079 = vmatprep.subr.mxu0 0.0
    %1080 = vmatpush1.msra.mxu0 0.0
    %1081 = vmatprep.subr.mxu0 0.0
    %1082 = vmatpush1.msra.mxu0 0.0
    %1083 = vmatprep.subr.mxu0 0.0
    %1084 = vmatpush1.msra.mxu0 0.0
    %1085 = vmatprep.subr.mxu0 0.0
    %1086 = vmatpush1.msra.mxu0 0.0
    %1087 = vmatprep.subr.mxu0 0.0
    %1088 = vmatpush1.msra.mxu0 0.0
    %1089 = vmatprep.subr.mxu0 0.0
    %1090 = vmatpush1.msra.mxu0 0.0
    %1091 = vmatprep.subr.mxu0 0.0
    %1092 = vmatpush1.msra.mxu0 0.0
    %1093 = vmatprep.mubr.f32.mxu0 0.0
    %1094 = vmatmul.mubr.f32.gmra.mrb[0].mxu0 %v348
    %v1095 = vpop.f32.mrb[0].mxu0
    %v1096 = vadd.f32 %v676, %v1095
    %v1097 = vpop.f32.mrb[0].mxu0
    %1098 = vdwg.mxu0
    %1099 = vmatprep.subr.mxu0 0.0
    %1100 = vmatpush1.msra.mxu0 %v550
    %1101 = vmatprep.subr.mxu0 0.0
    %1102 = vmatpush1.msra.mxu0 0.0
    %1103 = vmatprep.subr.mxu0 0.0
    %1104 = vmatpush1.msra.mxu0 0.0
    %1105 = vmatprep.subr.mxu0 0.0
    %1106 = vmatpush1.msra.mxu0 0.0
    %1107 = vmatprep.subr.mxu0 0.0
    %1108 = vmatpush1.msra.mxu0 0.0
    %1109 = vmatprep.subr.mxu0 0.0
    %1110 = vmatpush1.msra.mxu0 0.0
    %1111 = vmatprep.subr.mxu0 0.0
    %1112 = vmatpush1.msra.mxu0 0.0
    %1113 = vmatprep.subr.mxu0 0.0
    %1114 = vmatpush1.msra.mxu0 0.0
    %1115 = vmatprep.subr.mxu0 0.0
    %1116 = vmatpush1.msra.mxu0 0.0
    %1117 = vmatprep.subr.mxu0 0.0
    %1118 = vmatpush1.msra.mxu0 0.0
    %1119 = vmatprep.subr.mxu0 0.0
    %1120 = vmatpush1.msra.mxu0 0.0
    %1121 = vmatprep.subr.mxu0 0.0
    %1122 = vmatpush1.msra.mxu0 0.0
    %1123 = vmatprep.subr.mxu0 0.0
    %1124 = vmatpush1.msra.mxu0 0.0
    %1125 = vmatprep.subr.mxu0 0.0
    %1126 = vmatpush1.msra.mxu0 0.0
    %1127 = vmatprep.subr.mxu0 0.0
    %1128 = vmatpush1.msra.mxu0 0.0
    %1129 = vmatprep.subr.mxu0 0.0
    %1130 = vmatpush1.msra.mxu0 0.0
    %1131 = vmatprep.subr.mxu0 0.0
    %1132 = vmatpush1.msra.mxu0 0.0
    %1133 = vmatprep.subr.mxu0 0.0
    %1134 = vmatpush1.msra.mxu0 0.0
    %1135 = vmatprep.subr.mxu0 0.0
    %1136 = vmatpush1.msra.mxu0 0.0
    %1137 = vmatprep.subr.mxu0 0.0
    %1138 = vmatpush1.msra.mxu0 0.0
    %1139 = vmatprep.subr.mxu0 0.0
    %1140 = vmatpush1.msra.mxu0 0.0
    %1141 = vmatprep.subr.mxu0 0.0
    %1142 = vmatpush1.msra.mxu0 0.0
    %1143 = vmatprep.subr.mxu0 0.0
    %1144 = vmatpush1.msra.mxu0 0.0
    %1145 = vmatprep.subr.mxu0 0.0
    %1146 = vmatpush1.msra.mxu0 0.0
    %1147 = vmatprep.subr.mxu0 0.0
    %1148 = vmatpush1.msra.mxu0 0.0
    %1149 = vmatprep.subr.mxu0 0.0
    %1150 = vmatpush1.msra.mxu0 0.0
    %1151 = vmatprep.subr.mxu0 0.0
    %1152 = vmatpush1.msra.mxu0 0.0
    %1153 = vmatprep.subr.mxu0 0.0
    %1154 = vmatpush1.msra.mxu0 0.0
    %1155 = vmatprep.subr.mxu0 0.0
    %1156 = vmatpush1.msra.mxu0 0.0
    %1157 = vmatprep.subr.mxu0 0.0
    %1158 = vmatpush1.msra.mxu0 0.0
    %1159 = vmatprep.subr.mxu0 0.0
    %1160 = vmatpush1.msra.mxu0 0.0
    %1161 = vmatprep.subr.mxu0 0.0
    %1162 = vmatpush1.msra.mxu0 0.0
    %1163 = vmatprep.mubr.f32.mxu0 0.0
    %1164 = vmatmul.mubr.f32.gmra.mrb[0].mxu0 %v348
    %v1165 = vpop.f32.mrb[0].mxu0
    %v1166 = vadd.f32 %v677, %v1165
    %v1167 = vpop.f32.mrb[0].mxu0
    %1168 = vdwg.mxu0
    %1169 = vmatprep.subr.mxu0 0.0
    %1170 = vmatpush1.msra.mxu0 %v555
    %1171 = vmatprep.subr.mxu0 0.0
    %1172 = vmatpush1.msra.mxu0 0.0
    %1173 = vmatprep.subr.mxu0 0.0
    %1174 = vmatpush1.msra.mxu0 0.0
    %1175 = vmatprep.subr.mxu0 0.0
    %1176 = vmatpush1.msra.mxu0 0.0
    %1177 = vmatprep.subr.mxu0 0.0
    %1178 = vmatpush1.msra.mxu0 0.0
    %1179 = vmatprep.subr.mxu0 0.0
    %1180 = vmatpush1.msra.mxu0 0.0
    %1181 = vmatprep.subr.mxu0 0.0
    %1182 = vmatpush1.msra.mxu0 0.0
    %1183 = vmatprep.subr.mxu0 0.0
    %1184 = vmatpush1.msra.mxu0 0.0
    %1185 = vmatprep.subr.mxu0 0.0
    %1186 = vmatpush1.msra.mxu0 0.0
    %1187 = vmatprep.subr.mxu0 0.0
    %1188 = vmatpush1.msra.mxu0 0.0
    %1189 = vmatprep.subr.mxu0 0.0
    %1190 = vmatpush1.msra.mxu0 0.0
    %1191 = vmatprep.subr.mxu0 0.0
    %1192 = vmatpush1.msra.mxu0 0.0
    %1193 = vmatprep.subr.mxu0 0.0
    %1194 = vmatpush1.msra.mxu0 0.0
    %1195 = vmatprep.subr.mxu0 0.0
    %1196 = vmatpush1.msra.mxu0 0.0
    %1197 = vmatprep.subr.mxu0 0.0
    %1198 = vmatpush1.msra.mxu0 0.0
    %1199 = vmatprep.subr.mxu0 0.0
    %1200 = vmatpush1.msra.mxu0 0.0
    %1201 = vmatprep.subr.mxu0 0.0
    %1202 = vmatpush1.msra.mxu0 0.0
    %1203 = vmatprep.subr.mxu0 0.0
    %1204 = vmatpush1.msra.mxu0 0.0
    %1205 = vmatprep.subr.mxu0 0.0
    %1206 = vmatpush1.msra.mxu0 0.0
    %1207 = vmatprep.subr.mxu0 0.0
    %1208 = vmatpush1.msra.mxu0 0.0
    %1209 = vmatprep.subr.mxu0 0.0
    %1210 = vmatpush1.msra.mxu0 0.0
    %1211 = vmatprep.subr.mxu0 0.0
    %1212 = vmatpush1.msra.mxu0 0.0
    %1213 = vmatprep.subr.mxu0 0.0
    %1214 = vmatpush1.msra.mxu0 0.0
    %1215 = vmatprep.subr.mxu0 0.0
    %1216 = vmatpush1.msra.mxu0 0.0
    %1217 = vmatprep.subr.mxu0 0.0
    %1218 = vmatpush1.msra.mxu0 0.0
    %1219 = vmatprep.subr.mxu0 0.0
    %1220 = vmatpush1.msra.mxu0 0.0
    %1221 = vmatprep.subr.mxu0 0.0
    %1222 = vmatpush1.msra.mxu0 0.0
    %1223 = vmatprep.subr.mxu0 0.0
    %1224 = vmatpush1.msra.mxu0 0.0
    %1225 = vmatprep.subr.mxu0 0.0
    %1226 = vmatpush1.msra.mxu0 0.0
    %1227 = vmatprep.subr.mxu0 0.0
    %1228 = vmatpush1.msra.mxu0 0.0
    %1229 = vmatprep.subr.mxu0 0.0
    %1230 = vmatpush1.msra.mxu0 0.0
    %1231 = vmatprep.subr.mxu0 0.0
    %1232 = vmatpush1.msra.mxu0 0.0
    %1233 = vmatprep.mubr.f32.mxu0 0.0
    %1234 = vmatmul.mubr.f32.gmra.mrb[0].mxu0 %v348
    %v1235 = vpop.f32.mrb[0].mxu0
    %v1236 = vadd.f32 %v678, %v1235
    %v1237 = vpop.f32.mrb[0].mxu0
    %1238 = vdwg.mxu0
    %1239 = vst.msk [vmem:[#allocation13] sm:$0xff] %vm92, %v746
    %1240 = vst.msk [vmem:[#allocation13 + $0x8] sm:$0xff] %vm92, %v816
    %1241 = vst.msk [vmem:[#allocation13 + $0x10] sm:$0xff] %vm92, %v886
    %1242 = vst.msk [vmem:[#allocation13 + $0x18] sm:$0xff] %vm92, %v956
    %1243 = vst.msk [vmem:[#allocation13 + $0x20] sm:$0xff] %vm92, %v1026
    %1244 = vst.msk [vmem:[#allocation13 + $0x28] sm:$0xff] %vm92, %v1096
    %1245 = vst.msk [vmem:[#allocation13 + $0x30] sm:$0xff] %vm92, %v1166
    %1246 = vst.msk [vmem:[#allocation13 + $0x38] sm:$0xff] %vm92, %v1236
    %v1247 = vrsqrt.pop %v746
    %v1248 = vrsqrt.pop %v816
    %v1249 = vrsqrt.pop %v886
    %v1250 = vrsqrt.pop %v956
    %v1251 = vrsqrt.pop %v1026
    %v1252 = vrsqrt.pop %v1096
    %v1253 = vrsqrt.pop %v1166
    %v1254 = vrsqrt.pop %v1236
    %vm1255 = vcmp.eq.s32.totalorder %v561, 0
    %vm1256 = vcmp.ge.s32.totalorder %v559, 0
    %vm1257 = vmand %vm1255, %vm1256
    %v1258 = vlaneseq
    %v1259 = vshrl.u32 %v1258, 7
    %v1260 = vsub.s32 0, %v1259
    %v1261 = vrot.slane %v1247, %v1260
    %v1262 = vlaneseq
    %v1263 = vshrl.u32 %v1262, 7
    %v1264 = vsub.s32 0, %v1263
    %v1265 = vrot.slane %v1248, %v1264
    %v1266 = vlaneseq
    %v1267 = vshrl.u32 %v1266, 7
    %v1268 = vsub.s32 0, %v1267
    %v1269 = vrot.slane %v1249, %v1268
    %v1270 = vlaneseq
    %v1271 = vshrl.u32 %v1270, 7
    %v1272 = vsub.s32 0, %v1271
    %v1273 = vrot.slane %v1250, %v1272
    %v1274 = vlaneseq
    %v1275 = vshrl.u32 %v1274, 7
    %v1276 = vsub.s32 0, %v1275
    %v1277 = vrot.slane %v1251, %v1276
    %v1278 = vlaneseq
    %v1279 = vshrl.u32 %v1278, 7
    %v1280 = vsub.s32 0, %v1279
    %v1281 = vrot.slane %v1252, %v1280
    %v1282 = vlaneseq
    %v1283 = vshrl.u32 %v1282, 7
    %v1284 = vsub.s32 0, %v1283
    %v1285 = vrot.slane %v1253, %v1284
    %v1286 = vlaneseq
    %v1287 = vshrl.u32 %v1286, 7
    %v1288 = vsub.s32 0, %v1287
    %v1289 = vrot.slane %v1254, %v1288
    %v1290 = vmul.f32 %v746, %v1261
    %v1291 = vmul.f32 %v816, %v1265
    %v1292 = vmul.f32 %v886, %v1269
    %v1293 = vmul.f32 %v956, %v1273
    %v1294 = vmul.f32 %v1026, %v1277
    %v1295 = vmul.f32 %v1096, %v1281
    %v1296 = vmul.f32 %v1166, %v1285
    %v1297 = vmul.f32 %v1236, %v1289
    %v1298 = vsel %vm1257, 1, 0
    %vm1299 = vcmp.eq.s32.totalorder %v1298, 1
    %1301 = vset.pattern.permute.xlu0 0
    %1302 = vperm.xlu0 %1301, %v1290
    %v1303 = vpop.permute.xlu0 %1302
    %1306 = vset.pattern.permute.xlu0 0
    %1307 = vperm.xlu0 %1306, %v1291
    %v1308 = vpop.permute.xlu0 %1307
    %1311 = vset.pattern.permute.xlu0 0
    %1312 = vperm.xlu0 %1311, %v1292
    %v1313 = vpop.permute.xlu0 %1312
    %1316 = vset.pattern.permute.xlu0 0
    %1317 = vperm.xlu0 %1316, %v1293
    %v1318 = vpop.permute.xlu0 %1317
    %1321 = vset.pattern.permute.xlu0 0
    %1322 = vperm.xlu0 %1321, %v1294
    %v1323 = vpop.permute.xlu0 %1322
    %1326 = vset.pattern.permute.xlu0 0
    %1327 = vperm.xlu0 %1326, %v1295
    %v1328 = vpop.permute.xlu0 %1327
    %1331 = vset.pattern.permute.xlu0 0
    %1332 = vperm.xlu0 %1331, %v1296
    %v1333 = vpop.permute.xlu0 %1332
    %1336 = vset.pattern.permute.xlu0 0
    %1337 = vperm.xlu0 %1336, %v1297
    %v1338 = vpop.permute.xlu0 %1337
    %v1340 = vsel %vm1299, %v1303, 0.0
    %v1341 = vsel %vm1299, %v1308, 0.0
    %v1342 = vsel %vm1299, %v1313, 0.0
    %v1343 = vsel %vm1299, %v1318, 0.0
    %v1344 = vsel %vm1299, %v1323, 0.0
    %v1345 = vsel %vm1299, %v1328, 0.0
    %v1346 = vsel %vm1299, %v1333, 0.0
    %v1347 = vsel %vm1299, %v1338, 0.0
    %1349 = vset.pattern.permute.xlu0 0
    %1350 = vperm.xlu0 %1349, %v746
    %v1351 = vpop.permute.xlu0 %1350
    %1354 = vset.pattern.permute.xlu0 0
    %1355 = vperm.xlu0 %1354, %v816
    %v1356 = vpop.permute.xlu0 %1355
    %1359 = vset.pattern.permute.xlu0 0
    %1360 = vperm.xlu0 %1359, %v886
    %v1361 = vpop.permute.xlu0 %1360
    %1364 = vset.pattern.permute.xlu0 0
    %1365 = vperm.xlu0 %1364, %v956
    %v1366 = vpop.permute.xlu0 %1365
    %1369 = vset.pattern.permute.xlu0 0
    %1370 = vperm.xlu0 %1369, %v1026
    %v1371 = vpop.permute.xlu0 %1370
    %1374 = vset.pattern.permute.xlu0 0
    %1375 = vperm.xlu0 %1374, %v1096
    %v1376 = vpop.permute.xlu0 %1375
    %1379 = vset.pattern.permute.xlu0 0
    %1380 = vperm.xlu0 %1379, %v1166
    %v1381 = vpop.permute.xlu0 %1380
    %1384 = vset.pattern.permute.xlu0 0
    %1385 = vperm.xlu0 %1384, %v1236
    %v1386 = vpop.permute.xlu0 %1385
    %v1388 = vlaneseq
    %v1389 = vshrl.u32 %v1388, 7
    %v1390 = vsub.s32 0, %v1389
    %v1391 = vrot.slane %v746, %v1390
    %v1392 = vlaneseq
    %v1393 = vshrl.u32 %v1392, 7
    %v1394 = vsub.s32 0, %v1393
    %v1395 = vrot.slane %v816, %v1394
    %v1396 = vlaneseq
    %v1397 = vshrl.u32 %v1396, 7
    %v1398 = vsub.s32 0, %v1397
    %v1399 = vrot.slane %v886, %v1398
    %v1400 = vlaneseq
    %v1401 = vshrl.u32 %v1400, 7
    %v1402 = vsub.s32 0, %v1401
    %v1403 = vrot.slane %v956, %v1402
    %v1404 = vlaneseq
    %v1405 = vshrl.u32 %v1404, 7
    %v1406 = vsub.s32 0, %v1405
    %v1407 = vrot.slane %v1026, %v1406
    %v1408 = vlaneseq
    %v1409 = vshrl.u32 %v1408, 7
    %v1410 = vsub.s32 0, %v1409
    %v1411 = vrot.slane %v1096, %v1410
    %v1412 = vlaneseq
    %v1413 = vshrl.u32 %v1412, 7
    %v1414 = vsub.s32 0, %v1413
    %v1415 = vrot.slane %v1166, %v1414
    %v1416 = vlaneseq
    %v1417 = vshrl.u32 %v1416, 7
    %v1418 = vsub.s32 0, %v1417
    %v1419 = vrot.slane %v1236, %v1418
    %v1420 = vmul.f32 %v1351, %v1391
    %v1421 = vmul.f32 %v1356, %v1395
    %v1422 = vmul.f32 %v1361, %v1399
    %v1423 = vmul.f32 %v1366, %v1403
    %v1424 = vmul.f32 %v1371, %v1407
    %v1425 = vmul.f32 %v1376, %v1411
    %v1426 = vmul.f32 %v1381, %v1415
    %v1427 = vmul.f32 %v1386, %v1419
    %v1428 = vmul.f32 %v1247, %v1247
    %v1429 = vmul.f32 %v1248, %v1248
    %v1430 = vmul.f32 %v1249, %v1249
    %v1431 = vmul.f32 %v1250, %v1250
    %v1432 = vmul.f32 %v1251, %v1251
    %v1433 = vmul.f32 %v1252, %v1252
    %v1434 = vmul.f32 %v1253, %v1253
    %v1435 = vmul.f32 %v1254, %v1254
    %s1437 = vtos %v1428
    %v1438 = vstv %s1437
    %s1441 = vtos %v1429
    %v1442 = vstv %s1441
    %s1445 = vtos %v1430
    %v1446 = vstv %s1445
    %s1449 = vtos %v1431
    %v1450 = vstv %s1449
    %s1453 = vtos %v1432
    %v1454 = vstv %s1453
    %s1457 = vtos %v1433
    %v1458 = vstv %s1457
    %s1461 = vtos %v1434
    %v1462 = vstv %s1461
    %s1465 = vtos %v1435
    %v1466 = vstv %s1465
    %v1468 = vmul.f32 %v1420, %v1438
    %v1469 = vmul.f32 %v1421, %v1442
    %v1470 = vmul.f32 %v1422, %v1446
    %v1471 = vmul.f32 %v1423, %v1450
    %v1472 = vmul.f32 %v1424, %v1454
    %v1473 = vmul.f32 %v1425, %v1458
    %v1474 = vmul.f32 %v1426, %v1462
    %v1475 = vmul.f32 %v1427, %v1466
    %v1476 = vsub.f32 %v746, %v1468
    %v1477 = vsub.f32 %v816, %v1469
    %v1478 = vsub.f32 %v886, %v1470
    %v1479 = vsub.f32 %v956, %v1471
    %v1480 = vsub.f32 %v1026, %v1472
    %v1481 = vsub.f32 %v1096, %v1473
    %v1482 = vsub.f32 %v1166, %v1474
    %v1483 = vsub.f32 %v1236, %v1475
    %v1484 = vrsqrt.pop %v1476
    %v1485 = vrsqrt.pop %v1477
    %v1486 = vrsqrt.pop %v1478
    %v1487 = vrsqrt.pop %v1479
    %v1488 = vrsqrt.pop %v1480
    %v1489 = vrsqrt.pop %v1481
    %v1490 = vrsqrt.pop %v1482
    %v1491 = vrsqrt.pop %v1483
    %vm1492 = vcmp.eq.s32.totalorder %v561, 1
    %vm1493 = vcmp.ge.s32.totalorder %v559, 1
    %vm1494 = vmand %vm1492, %vm1493
    %v1495 = vlaneseq
    %v1496 = vshrl.u32 %v1495, 7
    %v1497 = vsub.s32 1, %v1496
    %v1498 = vrot.slane %v1484, %v1497
    %v1499 = vlaneseq
    %v1500 = vshrl.u32 %v1499, 7
    %v1501 = vsub.s32 1, %v1500
    %v1502 = vrot.slane %v1485, %v1501
    %v1503 = vlaneseq
    %v1504 = vshrl.u32 %v1503, 7
    %v1505 = vsub.s32 1, %v1504
    %v1506 = vrot.slane %v1486, %v1505
    %v1507 = vlaneseq
    %v1508 = vshrl.u32 %v1507, 7
    %v1509 = vsub.s32 1, %v1508
    %v1510 = vrot.slane %v1487, %v1509
    %v1511 = vlaneseq
    %v1512 = vshrl.u32 %v1511, 7
    %v1513 = vsub.s32 1, %v1512
    %v1514 = vrot.slane %v1488, %v1513
    %v1515 = vlaneseq
    %v1516 = vshrl.u32 %v1515, 7
    %v1517 = vsub.s32 1, %v1516
    %v1518 = vrot.slane %v1489, %v1517
    %v1519 = vlaneseq
    %v1520 = vshrl.u32 %v1519, 7
    %v1521 = vsub.s32 1, %v1520
    %v1522 = vrot.slane %v1490, %v1521
    %v1523 = vlaneseq
    %v1524 = vshrl.u32 %v1523, 7
    %v1525 = vsub.s32 1, %v1524
    %v1526 = vrot.slane %v1491, %v1525
    %v1527 = vmul.f32 %v1476, %v1498
    %v1528 = vmul.f32 %v1477, %v1502
    %v1529 = vmul.f32 %v1478, %v1506
    %v1530 = vmul.f32 %v1479, %v1510
    %v1531 = vmul.f32 %v1480, %v1514
    %v1532 = vmul.f32 %v1481, %v1518
    %v1533 = vmul.f32 %v1482, %v1522
    %v1534 = vmul.f32 %v1483, %v1526
    %v1535 = vsel %vm1494, 1, 0
    %vm1536 = vcmp.eq.s32.totalorder %v1535, 1
    %1538 = vset.pattern.permute.xlu0 1
    %1539 = vperm.xlu0 %1538, %v1527
    %v1540 = vpop.permute.xlu0 %1539
    %1543 = vset.pattern.permute.xlu0 1
    %1544 = vperm.xlu0 %1543, %v1528
    %v1545 = vpop.permute.xlu0 %1544
    %1548 = vset.pattern.permute.xlu0 1
    %1549 = vperm.xlu0 %1548, %v1529
    %v1550 = vpop.permute.xlu0 %1549
    %1553 = vset.pattern.permute.xlu0 1
    %1554 = vperm.xlu0 %1553, %v1530
    %v1555 = vpop.permute.xlu0 %1554
    %1558 = vset.pattern.permute.xlu0 1
    %1559 = vperm.xlu0 %1558, %v1531
    %v1560 = vpop.permute.xlu0 %1559
    %1563 = vset.pattern.permute.xlu0 1
    %1564 = vperm.xlu0 %1563, %v1532
    %v1565 = vpop.permute.xlu0 %1564
    %1568 = vset.pattern.permute.xlu0 1
    %1569 = vperm.xlu0 %1568, %v1533
    %v1570 = vpop.permute.xlu0 %1569
    %1573 = vset.pattern.permute.xlu0 1
    %1574 = vperm.xlu0 %1573, %v1534
    %v1575 = vpop.permute.xlu0 %1574
    %v1577 = vsel %vm1536, %v1540, %v1340
    %v1578 = vsel %vm1536, %v1545, %v1341
    %v1579 = vsel %vm1536, %v1550, %v1342
    %v1580 = vsel %vm1536, %v1555, %v1343
    %v1581 = vsel %vm1536, %v1560, %v1344
    %v1582 = vsel %vm1536, %v1565, %v1345
    %v1583 = vsel %vm1536, %v1570, %v1346
    %v1584 = vsel %vm1536, %v1575, %v1347
    %1586 = vset.pattern.permute.xlu0 1
    %1587 = vperm.xlu0 %1586, %v1476
    %v1588 = vpop.permute.xlu0 %1587
    %1591 = vset.pattern.permute.xlu0 1
    %1592 = vperm.xlu0 %1591, %v1477
    %v1593 = vpop.permute.xlu0 %1592
    %1596 = vset.pattern.permute.xlu0 1
    %1597 = vperm.xlu0 %1596, %v1478
    %v1598 = vpop.permute.xlu0 %1597
    %1601 = vset.pattern.permute.xlu0 1
    %1602 = vperm.xlu0 %1601, %v1479
    %v1603 = vpop.permute.xlu0 %1602
    %1606 = vset.pattern.permute.xlu0 1
    %1607 = vperm.xlu0 %1606, %v1480
    %v1608 = vpop.permute.xlu0 %1607
    %1611 = vset.pattern.permute.xlu0 1
    %1612 = vperm.xlu0 %1611, %v1481
    %v1613 = vpop.permute.xlu0 %1612
    %1616 = vset.pattern.permute.xlu0 1
    %1617 = vperm.xlu0 %1616, %v1482
    %v1618 = vpop.permute.xlu0 %1617
    %1621 = vset.pattern.permute.xlu0 1
    %1622 = vperm.xlu0 %1621, %v1483
    %v1623 = vpop.permute.xlu0 %1622
    %v1625 = vlaneseq
    %v1626 = vshrl.u32 %v1625, 7
    %v1627 = vsub.s32 1, %v1626
    %v1628 = vrot.slane %v1476, %v1627
    %v1629 = vlaneseq
    %v1630 = vshrl.u32 %v1629, 7
    %v1631 = vsub.s32 1, %v1630
    %v1632 = vrot.slane %v1477, %v1631
    %v1633 = vlaneseq
    %v1634 = vshrl.u32 %v1633, 7
    %v1635 = vsub.s32 1, %v1634
    %v1636 = vrot.slane %v1478, %v1635
    %v1637 = vlaneseq
    %v1638 = vshrl.u32 %v1637, 7
    %v1639 = vsub.s32 1, %v1638
    %v1640 = vrot.slane %v1479, %v1639
    %v1641 = vlaneseq
    %v1642 = vshrl.u32 %v1641, 7
    %v1643 = vsub.s32 1, %v1642
    %v1644 = vrot.slane %v1480, %v1643
    %v1645 = vlaneseq
    %v1646 = vshrl.u32 %v1645, 7
    %v1647 = vsub.s32 1, %v1646
    %v1648 = vrot.slane %v1481, %v1647
    %v1649 = vlaneseq
    %v1650 = vshrl.u32 %v1649, 7
    %v1651 = vsub.s32 1, %v1650
    %v1652 = vrot.slane %v1482, %v1651
    %v1653 = vlaneseq
    %v1654 = vshrl.u32 %v1653, 7
    %v1655 = vsub.s32 1, %v1654
    %v1656 = vrot.slane %v1483, %v1655
    %v1657 = vmul.f32 %v1588, %v1628
    %v1658 = vmul.f32 %v1593, %v1632
    %v1659 = vmul.f32 %v1598, %v1636
    %v1660 = vmul.f32 %v1603, %v1640
    %v1661 = vmul.f32 %v1608, %v1644
    %v1662 = vmul.f32 %v1613, %v1648
    %v1663 = vmul.f32 %v1618, %v1652
    %v1664 = vmul.f32 %v1623, %v1656
    %v1665 = vmul.f32 %v1484, %v1484
    %v1666 = vmul.f32 %v1485, %v1485
    %v1667 = vmul.f32 %v1486, %v1486
    %v1668 = vmul.f32 %v1487, %v1487
    %v1669 = vmul.f32 %v1488, %v1488
    %v1670 = vmul.f32 %v1489, %v1489
    %v1671 = vmul.f32 %v1490, %v1490
    %v1672 = vmul.f32 %v1491, %v1491
    %v1681 = vrot.slane %v1665, 1
    %v1682 = vrot.slane %v1666, 1
    %v1683 = vrot.slane %v1667, 1
    %v1684 = vrot.slane %v1668, 1
    %v1685 = vrot.slane %v1669, 1
    %v1686 = vrot.slane %v1670, 1
    %v1687 = vrot.slane %v1671, 1
    %v1688 = vrot.slane %v1672, 1
    %1689 = vrot.lane.b32.xlu0 %v1681, 127
    %v1690 = vpop.permute.xlu0 %1689
    %1691 = vrot.lane.b32.xlu0 %v1682, 127
    %v1692 = vpop.permute.xlu0 %1691
    %1693 = vrot.lane.b32.xlu0 %v1683, 127
    %v1694 = vpop.permute.xlu0 %1693
    %1695 = vrot.lane.b32.xlu0 %v1684, 127
    %v1696 = vpop.permute.xlu0 %1695
    %1697 = vrot.lane.b32.xlu0 %v1685, 127
    %v1698 = vpop.permute.xlu0 %1697
    %1699 = vrot.lane.b32.xlu0 %v1686, 127
    %v1700 = vpop.permute.xlu0 %1699
    %1701 = vrot.lane.b32.xlu0 %v1687, 127
    %v1702 = vpop.permute.xlu0 %1701
    %1703 = vrot.lane.b32.xlu0 %v1688, 127
    %v1704 = vpop.permute.xlu0 %1703
    %s1705 = vtos %v1690
    %v1706 = vstv %s1705
    %s1708 = vtos %v1692
    %v1709 = vstv %s1708
    %s1711 = vtos %v1694
    %v1712 = vstv %s1711
    %s1714 = vtos %v1696
    %v1715 = vstv %s1714
    %s1717 = vtos %v1698
    %v1718 = vstv %s1717
    %s1720 = vtos %v1700
    %v1721 = vstv %s1720
    %s1723 = vtos %v1702
    %v1724 = vstv %s1723
    %s1726 = vtos %v1704
    %v1727 = vstv %s1726
    %v1729 = vmul.f32 %v1657, %v1706
    %v1730 = vmul.f32 %v1658, %v1709
    %v1731 = vmul.f32 %v1659, %v1712
    %v1732 = vmul.f32 %v1660, %v1715
    %v1733 = vmul.f32 %v1661, %v1718
    %v1734 = vmul.f32 %v1662, %v1721
    %v1735 = vmul.f32 %v1663, %v1724
    %v1736 = vmul.f32 %v1664, %v1727
    %v1737 = vsub.f32 %v1476, %v1729
    %v1738 = vsub.f32 %v1477, %v1730
    %v1739 = vsub.f32 %v1478, %v1731
    %v1740 = vsub.f32 %v1479, %v1732
    %v1741 = vsub.f32 %v1480, %v1733
    %v1742 = vsub.f32 %v1481, %v1734
    %v1743 = vsub.f32 %v1482, %v1735
    %v1744 = vsub.f32 %v1483, %v1736
    %v1745 = vrsqrt.pop %v1737
    %v1746 = vrsqrt.pop %v1738
    %v1747 = vrsqrt.pop %v1739
    %v1748 = vrsqrt.pop %v1740
    %v1749 = vrsqrt.pop %v1741
    %v1750 = vrsqrt.pop %v1742
    %v1751 = vrsqrt.pop %v1743
    %v1752 = vrsqrt.pop %v1744
    %vm1753 = vcmp.eq.s32.totalorder %v561, 2
    %vm1754 = vcmp.ge.s32.totalorder %v559, 2
    %vm1755 = vmand %vm1753, %vm1754
    %v1756 = vlaneseq
    %v1757 = vshrl.u32 %v1756, 7
    %v1758 = vsub.s32 2, %v1757
    %v1759 = vrot.slane %v1745, %v1758
    %v1760 = vlaneseq
    %v1761 = vshrl.u32 %v1760, 7
    %v1762 = vsub.s32 2, %v1761
    %v1763 = vrot.slane %v1746, %v1762
    %v1764 = vlaneseq
    %v1765 = vshrl.u32 %v1764, 7
    %v1766 = vsub.s32 2, %v1765
    %v1767 = vrot.slane %v1747, %v1766
    %v1768 = vlaneseq
    %v1769 = vshrl.u32 %v1768, 7
    %v1770 = vsub.s32 2, %v1769
    %v1771 = vrot.slane %v1748, %v1770
    %v1772 = vlaneseq
    %v1773 = vshrl.u32 %v1772, 7
    %v1774 = vsub.s32 2, %v1773
    %v1775 = vrot.slane %v1749, %v1774
    %v1776 = vlaneseq
    %v1777 = vshrl.u32 %v1776, 7
    %v1778 = vsub.s32 2, %v1777
    %v1779 = vrot.slane %v1750, %v1778
    %v1780 = vlaneseq
    %v1781 = vshrl.u32 %v1780, 7
    %v1782 = vsub.s32 2, %v1781
    %v1783 = vrot.slane %v1751, %v1782
    %v1784 = vlaneseq
    %v1785 = vshrl.u32 %v1784, 7
    %v1786 = vsub.s32 2, %v1785
    %v1787 = vrot.slane %v1752, %v1786
    %v1788 = vmul.f32 %v1737, %v1759
    %v1789 = vmul.f32 %v1738, %v1763
    %v1790 = vmul.f32 %v1739, %v1767
    %v1791 = vmul.f32 %v1740, %v1771
    %v1792 = vmul.f32 %v1741, %v1775
    %v1793 = vmul.f32 %v1742, %v1779
    %v1794 = vmul.f32 %v1743, %v1783
    %v1795 = vmul.f32 %v1744, %v1787
    %v1796 = vsel %vm1755, 1, 0
    %vm1797 = vcmp.eq.s32.totalorder %v1796, 1
    %1799 = vset.pattern.permute.xlu0 2
    %1800 = vperm.xlu0 %1799, %v1788
    %v1801 = vpop.permute.xlu0 %1800
    %1804 = vset.pattern.permute.xlu0 2
    %1805 = vperm.xlu0 %1804, %v1789
    %v1806 = vpop.permute.xlu0 %1805
    %1809 = vset.pattern.permute.xlu0 2
    %1810 = vperm.xlu0 %1809, %v1790
    %v1811 = vpop.permute.xlu0 %1810
    %1814 = vset.pattern.permute.xlu0 2
    %1815 = vperm.xlu0 %1814, %v1791
    %v1816 = vpop.permute.xlu0 %1815
    %1819 = vset.pattern.permute.xlu0 2
    %1820 = vperm.xlu0 %1819, %v1792
    %v1821 = vpop.permute.xlu0 %1820
    %1824 = vset.pattern.permute.xlu0 2
    %1825 = vperm.xlu0 %1824, %v1793
    %v1826 = vpop.permute.xlu0 %1825
    %1829 = vset.pattern.permute.xlu0 2
    %1830 = vperm.xlu0 %1829, %v1794
    %v1831 = vpop.permute.xlu0 %1830
    %1834 = vset.pattern.permute.xlu0 2
    %1835 = vperm.xlu0 %1834, %v1795
    %v1836 = vpop.permute.xlu0 %1835
    %v1838 = vsel %vm1797, %v1801, %v1577
    %v1839 = vsel %vm1797, %v1806, %v1578
    %v1840 = vsel %vm1797, %v1811, %v1579
    %v1841 = vsel %vm1797, %v1816, %v1580
    %v1842 = vsel %vm1797, %v1821, %v1581
    %v1843 = vsel %vm1797, %v1826, %v1582
    %v1844 = vsel %vm1797, %v1831, %v1583
    %v1845 = vsel %vm1797, %v1836, %v1584
    %1847 = vset.pattern.permute.xlu0 2
    %1848 = vperm.xlu0 %1847, %v1737
    %v1849 = vpop.permute.xlu0 %1848
    %1852 = vset.pattern.permute.xlu0 2
    %1853 = vperm.xlu0 %1852, %v1738
    %v1854 = vpop.permute.xlu0 %1853
    %1857 = vset.pattern.permute.xlu0 2
    %1858 = vperm.xlu0 %1857, %v1739
    %v1859 = vpop.permute.xlu0 %1858
    %1862 = vset.pattern.permute.xlu0 2
    %1863 = vperm.xlu0 %1862, %v1740
    %v1864 = vpop.permute.xlu0 %1863
    %1867 = vset.pattern.permute.xlu0 2
    %1868 = vperm.xlu0 %1867, %v1741
    %v1869 = vpop.permute.xlu0 %1868
    %1872 = vset.pattern.permute.xlu0 2
    %1873 = vperm.xlu0 %1872, %v1742
    %v1874 = vpop.permute.xlu0 %1873
    %1877 = vset.pattern.permute.xlu0 2
    %1878 = vperm.xlu0 %1877, %v1743
    %v1879 = vpop.permute.xlu0 %1878
    %1882 = vset.pattern.permute.xlu0 2
    %1883 = vperm.xlu0 %1882, %v1744
    %v1884 = vpop.permute.xlu0 %1883
    %v1886 = vlaneseq
    %v1887 = vshrl.u32 %v1886, 7
    %v1888 = vsub.s32 2, %v1887
    %v1889 = vrot.slane %v1737, %v1888
    %v1890 = vlaneseq
    %v1891 = vshrl.u32 %v1890, 7
    %v1892 = vsub.s32 2, %v1891
    %v1893 = vrot.slane %v1738, %v1892
    %v1894 = vlaneseq
    %v1895 = vshrl.u32 %v1894, 7
    %v1896 = vsub.s32 2, %v1895
    %v1897 = vrot.slane %v1739, %v1896
    %v1898 = vlaneseq
    %v1899 = vshrl.u32 %v1898, 7
    %v1900 = vsub.s32 2, %v1899
    %v1901 = vrot.slane %v1740, %v1900
    %v1902 = vlaneseq
    %v1903 = vshrl.u32 %v1902, 7
    %v1904 = vsub.s32 2, %v1903
    %v1905 = vrot.slane %v1741, %v1904
    %v1906 = vlaneseq
    %v1907 = vshrl.u32 %v1906, 7
    %v1908 = vsub.s32 2, %v1907
    %v1909 = vrot.slane %v1742, %v1908
    %v1910 = vlaneseq
    %v1911 = vshrl.u32 %v1910, 7
    %v1912 = vsub.s32 2, %v1911
    %v1913 = vrot.slane %v1743, %v1912
    %v1914 = vlaneseq
    %v1915 = vshrl.u32 %v1914, 7
    %v1916 = vsub.s32 2, %v1915
    %v1917 = vrot.slane %v1744, %v1916
    %v1918 = vmul.f32 %v1849, %v1889
    %v1919 = vmul.f32 %v1854, %v1893
    %v1920 = vmul.f32 %v1859, %v1897
    %v1921 = vmul.f32 %v1864, %v1901
    %v1922 = vmul.f32 %v1869, %v1905
    %v1923 = vmul.f32 %v1874, %v1909
    %v1924 = vmul.f32 %v1879, %v1913
    %v1925 = vmul.f32 %v1884, %v1917
    %v1926 = vmul.f32 %v1745, %v1745
    %v1927 = vmul.f32 %v1746, %v1746
    %v1928 = vmul.f32 %v1747, %v1747
    %v1929 = vmul.f32 %v1748, %v1748
    %v1930 = vmul.f32 %v1749, %v1749
    %v1931 = vmul.f32 %v1750, %v1750
    %v1932 = vmul.f32 %v1751, %v1751
    %v1933 = vmul.f32 %v1752, %v1752
    %v1942 = vrot.slane %v1926, 2
    %v1943 = vrot.slane %v1927, 2
    %v1944 = vrot.slane %v1928, 2
    %v1945 = vrot.slane %v1929, 2
    %v1946 = vrot.slane %v1930, 2
    %v1947 = vrot.slane %v1931, 2
    %v1948 = vrot.slane %v1932, 2
    %v1949 = vrot.slane %v1933, 2
    %1950 = vrot.lane.b32.xlu0 %v1942, 126
    %v1951 = vpop.permute.xlu0 %1950
    %1952 = vrot.lane.b32.xlu0 %v1943, 126
    %v1953 = vpop.permute.xlu0 %1952
    %1954 = vrot.lane.b32.xlu0 %v1944, 126
    %v1955 = vpop.permute.xlu0 %1954
    %1956 = vrot.lane.b32.xlu0 %v1945, 126
    %v1957 = vpop.permute.xlu0 %1956
    %1958 = vrot.lane.b32.xlu0 %v1946, 126
    %v1959 = vpop.permute.xlu0 %1958
    %1960 = vrot.lane.b32.xlu0 %v1947, 126
    %v1961 = vpop.permute.xlu0 %1960
    %1962 = vrot.lane.b32.xlu0 %v1948, 126
    %v1963 = vpop.permute.xlu0 %1962
    %1964 = vrot.lane.b32.xlu0 %v1949, 126
    %v1965 = vpop.permute.xlu0 %1964
    %s1966 = vtos %v1951
    %v1967 = vstv %s1966
    %s1969 = vtos %v1953
    %v1970 = vstv %s1969
    %s1972 = vtos %v1955
    %v1973 = vstv %s1972
    %s1975 = vtos %v1957
    %v1976 = vstv %s1975
    %s1978 = vtos %v1959
    %v1979 = vstv %s1978
    %s1981 = vtos %v1961
    %v1982 = vstv %s1981
    %s1984 = vtos %v1963
    %v1985 = vstv %s1984
    %s1987 = vtos %v1965
    %v1988 = vstv %s1987
    %v1990 = vmul.f32 %v1918, %v1967
    %v1991 = vmul.f32 %v1919, %v1970
    %v1992 = vmul.f32 %v1920, %v1973
    %v1993 = vmul.f32 %v1921, %v1976
    %v1994 = vmul.f32 %v1922, %v1979
    %v1995 = vmul.f32 %v1923, %v1982
    %v1996 = vmul.f32 %v1924, %v1985
    %v1997 = vmul.f32 %v1925, %v1988
    %v1998 = vsub.f32 %v1737, %v1990
    %v1999 = vsub.f32 %v1738, %v1991
    %v2000 = vsub.f32 %v1739, %v1992
    %v2001 = vsub.f32 %v1740, %v1993
    %v2002 = vsub.f32 %v1741, %v1994
    %v2003 = vsub.f32 %v1742, %v1995
    %v2004 = vsub.f32 %v1743, %v1996
    %v2005 = vsub.f32 %v1744, %v1997
    %v2006 = vrsqrt.pop %v1998
    %v2007 = vrsqrt.pop %v1999
    %v2008 = vrsqrt.pop %v2000
    %v2009 = vrsqrt.pop %v2001
    %v2010 = vrsqrt.pop %v2002
    %v2011 = vrsqrt.pop %v2003
    %v2012 = vrsqrt.pop %v2004
    %v2013 = vrsqrt.pop %v2005
    %vm2014 = vcmp.eq.s32.totalorder %v561, 3
    %vm2015 = vcmp.ge.s32.totalorder %v559, 3
    %vm2016 = vmand %vm2014, %vm2015
    %v2017 = vlaneseq
    %v2018 = vshrl.u32 %v2017, 7
    %v2019 = vsub.s32 3, %v2018
    %v2020 = vrot.slane %v2006, %v2019
    %v2021 = vlaneseq
    %v2022 = vshrl.u32 %v2021, 7
    %v2023 = vsub.s32 3, %v2022
    %v2024 = vrot.slane %v2007, %v2023
    %v2025 = vlaneseq
    %v2026 = vshrl.u32 %v2025, 7
    %v2027 = vsub.s32 3, %v2026
    %v2028 = vrot.slane %v2008, %v2027
    %v2029 = vlaneseq
    %v2030 = vshrl.u32 %v2029, 7
    %v2031 = vsub.s32 3, %v2030
    %v2032 = vrot.slane %v2009, %v2031
    %v2033 = vlaneseq
    %v2034 = vshrl.u32 %v2033, 7
    %v2035 = vsub.s32 3, %v2034
    %v2036 = vrot.slane %v2010, %v2035
    %v2037 = vlaneseq
    %v2038 = vshrl.u32 %v2037, 7
    %v2039 = vsub.s32 3, %v2038
    %v2040 = vrot.slane %v2011, %v2039
    %v2041 = vlaneseq
    %v2042 = vshrl.u32 %v2041, 7
    %v2043 = vsub.s32 3, %v2042
    %v2044 = vrot.slane %v2012, %v2043
    %v2045 = vlaneseq
    %v2046 = vshrl.u32 %v2045, 7
    %v2047 = vsub.s32 3, %v2046
    %v2048 = vrot.slane %v2013, %v2047
    %v2049 = vmul.f32 %v1998, %v2020
    %v2050 = vmul.f32 %v1999, %v2024
    %v2051 = vmul.f32 %v2000, %v2028
    %v2052 = vmul.f32 %v2001, %v2032
    %v2053 = vmul.f32 %v2002, %v2036
    %v2054 = vmul.f32 %v2003, %v2040
    %v2055 = vmul.f32 %v2004, %v2044
    %v2056 = vmul.f32 %v2005, %v2048
    %v2057 = vsel %vm2016, 1, 0
    %vm2058 = vcmp.eq.s32.totalorder %v2057, 1
    %2060 = vset.pattern.permute.xlu0 3
    %2061 = vperm.xlu0 %2060, %v2049
    %v2062 = vpop.permute.xlu0 %2061
    %2065 = vset.pattern.permute.xlu0 3
    %2066 = vperm.xlu0 %2065, %v2050
    %v2067 = vpop.permute.xlu0 %2066
    %2070 = vset.pattern.permute.xlu0 3
    %2071 = vperm.xlu0 %2070, %v2051
    %v2072 = vpop.permute.xlu0 %2071
    %2075 = vset.pattern.permute.xlu0 3
    %2076 = vperm.xlu0 %2075, %v2052
    %v2077 = vpop.permute.xlu0 %2076
    %2080 = vset.pattern.permute.xlu0 3
    %2081 = vperm.xlu0 %2080, %v2053
    %v2082 = vpop.permute.xlu0 %2081
    %2085 = vset.pattern.permute.xlu0 3
    %2086 = vperm.xlu0 %2085, %v2054
    %v2087 = vpop.permute.xlu0 %2086
    %2090 = vset.pattern.permute.xlu0 3
    %2091 = vperm.xlu0 %2090, %v2055
    %v2092 = vpop.permute.xlu0 %2091
    %2095 = vset.pattern.permute.xlu0 3
    %2096 = vperm.xlu0 %2095, %v2056
    %v2097 = vpop.permute.xlu0 %2096
    %v2099 = vsel %vm2058, %v2062, %v1838
    %v2100 = vsel %vm2058, %v2067, %v1839
    %v2101 = vsel %vm2058, %v2072, %v1840
    %v2102 = vsel %vm2058, %v2077, %v1841
    %v2103 = vsel %vm2058, %v2082, %v1842
    %v2104 = vsel %vm2058, %v2087, %v1843
    %v2105 = vsel %vm2058, %v2092, %v1844
    %v2106 = vsel %vm2058, %v2097, %v1845
    %2108 = vset.pattern.permute.xlu0 3
    %2109 = vperm.xlu0 %2108, %v1998
    %v2110 = vpop.permute.xlu0 %2109
    %2113 = vset.pattern.permute.xlu0 3
    %2114 = vperm.xlu0 %2113, %v1999
    %v2115 = vpop.permute.xlu0 %2114
    %2118 = vset.pattern.permute.xlu0 3
    %2119 = vperm.xlu0 %2118, %v2000
    %v2120 = vpop.permute.xlu0 %2119
    %2123 = vset.pattern.permute.xlu0 3
    %2124 = vperm.xlu0 %2123, %v2001
    %v2125 = vpop.permute.xlu0 %2124
    %2128 = vset.pattern.permute.xlu0 3
    %2129 = vperm.xlu0 %2128, %v2002
    %v2130 = vpop.permute.xlu0 %2129
    %2133 = vset.pattern.permute.xlu0 3
    %2134 = vperm.xlu0 %2133, %v2003
    %v2135 = vpop.permute.xlu0 %2134
    %2138 = vset.pattern.permute.xlu0 3
    %2139 = vperm.xlu0 %2138, %v2004
    %v2140 = vpop.permute.xlu0 %2139
    %2143 = vset.pattern.permute.xlu0 3
    %2144 = vperm.xlu0 %2143, %v2005
    %v2145 = vpop.permute.xlu0 %2144
    %v2147 = vlaneseq
    %v2148 = vshrl.u32 %v2147, 7
    %v2149 = vsub.s32 3, %v2148
    %v2150 = vrot.slane %v1998, %v2149
    %v2151 = vlaneseq
    %v2152 = vshrl.u32 %v2151, 7
    %v2153 = vsub.s32 3, %v2152
    %v2154 = vrot.slane %v1999, %v2153
    %v2155 = vlaneseq
    %v2156 = vshrl.u32 %v2155, 7
    %v2157 = vsub.s32 3, %v2156
    %v2158 = vrot.slane %v2000, %v2157
    %v2159 = vlaneseq
    %v2160 = vshrl.u32 %v2159, 7
    %v2161 = vsub.s32 3, %v2160
    %v2162 = vrot.slane %v2001, %v2161
    %v2163 = vlaneseq
    %v2164 = vshrl.u32 %v2163, 7
    %v2165 = vsub.s32 3, %v2164
    %v2166 = vrot.slane %v2002, %v2165
    %v2167 = vlaneseq
    %v2168 = vshrl.u32 %v2167, 7
    %v2169 = vsub.s32 3, %v2168
    %v2170 = vrot.slane %v2003, %v2169
    %v2171 = vlaneseq
    %v2172 = vshrl.u32 %v2171, 7
    %v2173 = vsub.s32 3, %v2172
    %v2174 = vrot.slane %v2004, %v2173
    %v2175 = vlaneseq
    %v2176 = vshrl.u32 %v2175, 7
    %v2177 = vsub.s32 3, %v2176
    %v2178 = vrot.slane %v2005, %v2177
    %v2179 = vmul.f32 %v2110, %v2150
    %v2180 = vmul.f32 %v2115, %v2154
    %v2181 = vmul.f32 %v2120, %v2158
    %v2182 = vmul.f32 %v2125, %v2162
    %v2183 = vmul.f32 %v2130, %v2166
    %v2184 = vmul.f32 %v2135, %v2170
    %v2185 = vmul.f32 %v2140, %v2174
    %v2186 = vmul.f32 %v2145, %v2178
    %v2187 = vmul.f32 %v2006, %v2006
    %v2188 = vmul.f32 %v2007, %v2007
    %v2189 = vmul.f32 %v2008, %v2008
    %v2190 = vmul.f32 %v2009, %v2009
    %v2191 = vmul.f32 %v2010, %v2010
    %v2192 = vmul.f32 %v2011, %v2011
    %v2193 = vmul.f32 %v2012, %v2012
    %v2194 = vmul.f32 %v2013, %v2013
    %v2203 = vrot.slane %v2187, 3
    %v2204 = vrot.slane %v2188, 3
    %v2205 = vrot.slane %v2189, 3
    %v2206 = vrot.slane %v2190, 3
    %v2207 = vrot.slane %v2191, 3
    %v2208 = vrot.slane %v2192, 3
    %v2209 = vrot.slane %v2193, 3
    %v2210 = vrot.slane %v2194, 3
    %2211 = vrot.lane.b32.xlu0 %v2203, 125
    %v2212 = vpop.permute.xlu0 %2211
    %2213 = vrot.lane.b32.xlu0 %v2204, 125
    %v2214 = vpop.permute.xlu0 %2213
    %2215 = vrot.lane.b32.xlu0 %v2205, 125
    %v2216 = vpop.permute.xlu0 %2215
    %2217 = vrot.lane.b32.xlu0 %v2206, 125
    %v2218 = vpop.permute.xlu0 %2217
    %2219 = vrot.lane.b32.xlu0 %v2207, 125
    %v2220 = vpop.permute.xlu0 %2219
    %2221 = vrot.lane.b32.xlu0 %v2208, 125
    %v2222 = vpop.permute.xlu0 %2221
    %2223 = vrot.lane.b32.xlu0 %v2209, 125
    %v2224 = vpop.permute.xlu0 %2223
    %2225 = vrot.lane.b32.xlu0 %v2210, 125
    %v2226 = vpop.permute.xlu0 %2225
    %s2227 = vtos %v2212
    %v2228 = vstv %s2227
    %s2230 = vtos %v2214
    %v2231 = vstv %s2230
    %s2233 = vtos %v2216
    %v2234 = vstv %s2233
    %s2236 = vtos %v2218
    %v2237 = vstv %s2236
    %s2239 = vtos %v2220
    %v2240 = vstv %s2239
    %s2242 = vtos %v2222
    %v2243 = vstv %s2242
    %s2245 = vtos %v2224
    %v2246 = vstv %s2245
    %s2248 = vtos %v2226
    %v2249 = vstv %s2248
    %v2251 = vmul.f32 %v2179, %v2228
    %v2252 = vmul.f32 %v2180, %v2231
    %v2253 = vmul.f32 %v2181, %v2234
    %v2254 = vmul.f32 %v2182, %v2237
    %v2255 = vmul.f32 %v2183, %v2240
    %v2256 = vmul.f32 %v2184, %v2243
    %v2257 = vmul.f32 %v2185, %v2246
    %v2258 = vmul.f32 %v2186, %v2249
    %v2259 = vsub.f32 %v1998, %v2251
    %v2260 = vsub.f32 %v1999, %v2252
    %v2261 = vsub.f32 %v2000, %v2253
    %v2262 = vsub.f32 %v2001, %v2254
    %v2263 = vsub.f32 %v2002, %v2255
    %v2264 = vsub.f32 %v2003, %v2256
    %v2265 = vsub.f32 %v2004, %v2257
    %v2266 = vsub.f32 %v2005, %v2258
    %v2267 = vrsqrt.pop %v2259
    %v2268 = vrsqrt.pop %v2260
    %v2269 = vrsqrt.pop %v2261
    %v2270 = vrsqrt.pop %v2262
    %v2271 = vrsqrt.pop %v2263
    %v2272 = vrsqrt.pop %v2264
    %v2273 = vrsqrt.pop %v2265
    %v2274 = vrsqrt.pop %v2266
    %vm2275 = vcmp.eq.s32.totalorder %v561, 4
    %vm2276 = vcmp.ge.s32.totalorder %v559, 4
    %vm2277 = vmand %vm2275, %vm2276
    %v2278 = vlaneseq
    %v2279 = vshrl.u32 %v2278, 7
    %v2280 = vsub.s32 4, %v2279
    %v2281 = vrot.slane %v2267, %v2280
    %v2282 = vlaneseq
    %v2283 = vshrl.u32 %v2282, 7
    %v2284 = vsub.s32 4, %v2283
    %v2285 = vrot.slane %v2268, %v2284
    %v2286 = vlaneseq
    %v2287 = vshrl.u32 %v2286, 7
    %v2288 = vsub.s32 4, %v2287
    %v2289 = vrot.slane %v2269, %v2288
    %v2290 = vlaneseq
    %v2291 = vshrl.u32 %v2290, 7
    %v2292 = vsub.s32 4, %v2291
    %v2293 = vrot.slane %v2270, %v2292
    %v2294 = vlaneseq
    %v2295 = vshrl.u32 %v2294, 7
    %v2296 = vsub.s32 4, %v2295
    %v2297 = vrot.slane %v2271, %v2296
    %v2298 = vlaneseq
    %v2299 = vshrl.u32 %v2298, 7
    %v2300 = vsub.s32 4, %v2299
    %v2301 = vrot.slane %v2272, %v2300
    %v2302 = vlaneseq
    %v2303 = vshrl.u32 %v2302, 7
    %v2304 = vsub.s32 4, %v2303
    %v2305 = vrot.slane %v2273, %v2304
    %v2306 = vlaneseq
    %v2307 = vshrl.u32 %v2306, 7
    %v2308 = vsub.s32 4, %v2307
    %v2309 = vrot.slane %v2274, %v2308
    %v2310 = vmul.f32 %v2259, %v2281
    %v2311 = vmul.f32 %v2260, %v2285
    %v2312 = vmul.f32 %v2261, %v2289
    %v2313 = vmul.f32 %v2262, %v2293
    %v2314 = vmul.f32 %v2263, %v2297
    %v2315 = vmul.f32 %v2264, %v2301
    %v2316 = vmul.f32 %v2265, %v2305
    %v2317 = vmul.f32 %v2266, %v2309
    %v2318 = vsel %vm2277, 1, 0
    %vm2319 = vcmp.eq.s32.totalorder %v2318, 1
    %2321 = vset.pattern.permute.xlu0 4
    %2322 = vperm.xlu0 %2321, %v2310
    %v2323 = vpop.permute.xlu0 %2322
    %2326 = vset.pattern.permute.xlu0 4
    %2327 = vperm.xlu0 %2326, %v2311
    %v2328 = vpop.permute.xlu0 %2327
    %2331 = vset.pattern.permute.xlu0 4
    %2332 = vperm.xlu0 %2331, %v2312
    %v2333 = vpop.permute.xlu0 %2332
    %2336 = vset.pattern.permute.xlu0 4
    %2337 = vperm.xlu0 %2336, %v2313
    %v2338 = vpop.permute.xlu0 %2337
    %2341 = vset.pattern.permute.xlu0 4
    %2342 = vperm.xlu0 %2341, %v2314
    %v2343 = vpop.permute.xlu0 %2342
    %2346 = vset.pattern.permute.xlu0 4
    %2347 = vperm.xlu0 %2346, %v2315
    %v2348 = vpop.permute.xlu0 %2347
    %2351 = vset.pattern.permute.xlu0 4
    %2352 = vperm.xlu0 %2351, %v2316
    %v2353 = vpop.permute.xlu0 %2352
    %2356 = vset.pattern.permute.xlu0 4
    %2357 = vperm.xlu0 %2356, %v2317
    %v2358 = vpop.permute.xlu0 %2357
    %v2360 = vsel %vm2319, %v2323, %v2099
    %v2361 = vsel %vm2319, %v2328, %v2100
    %v2362 = vsel %vm2319, %v2333, %v2101
    %v2363 = vsel %vm2319, %v2338, %v2102
    %v2364 = vsel %vm2319, %v2343, %v2103
    %v2365 = vsel %vm2319, %v2348, %v2104
    %v2366 = vsel %vm2319, %v2353, %v2105
    %v2367 = vsel %vm2319, %v2358, %v2106
    %2369 = vset.pattern.permute.xlu0 4
    %2370 = vperm.xlu0 %2369, %v2259
    %v2371 = vpop.permute.xlu0 %2370
    %2374 = vset.pattern.permute.xlu0 4
    %2375 = vperm.xlu0 %2374, %v2260
    %v2376 = vpop.permute.xlu0 %2375
    %2379 = vset.pattern.permute.xlu0 4
    %2380 = vperm.xlu0 %2379, %v2261
    %v2381 = vpop.permute.xlu0 %2380
    %2384 = vset.pattern.permute.xlu0 4
    %2385 = vperm.xlu0 %2384, %v2262
    %v2386 = vpop.permute.xlu0 %2385
    %2389 = vset.pattern.permute.xlu0 4
    %2390 = vperm.xlu0 %2389, %v2263
    %v2391 = vpop.permute.xlu0 %2390
    %2394 = vset.pattern.permute.xlu0 4
    %2395 = vperm.xlu0 %2394, %v2264
    %v2396 = vpop.permute.xlu0 %2395
    %2399 = vset.pattern.permute.xlu0 4
    %2400 = vperm.xlu0 %2399, %v2265
    %v2401 = vpop.permute.xlu0 %2400
    %2404 = vset.pattern.permute.xlu0 4
    %2405 = vperm.xlu0 %2404, %v2266
    %v2406 = vpop.permute.xlu0 %2405
    %v2408 = vlaneseq
    %v2409 = vshrl.u32 %v2408, 7
    %v2410 = vsub.s32 4, %v2409
    %v2411 = vrot.slane %v2259, %v2410
    %v2412 = vlaneseq
    %v2413 = vshrl.u32 %v2412, 7
    %v2414 = vsub.s32 4, %v2413
    %v2415 = vrot.slane %v2260, %v2414
    %v2416 = vlaneseq
    %v2417 = vshrl.u32 %v2416, 7
    %v2418 = vsub.s32 4, %v2417
    %v2419 = vrot.slane %v2261, %v2418
    %v2420 = vlaneseq
    %v2421 = vshrl.u32 %v2420, 7
    %v2422 = vsub.s32 4, %v2421
    %v2423 = vrot.slane %v2262, %v2422
    %v2424 = vlaneseq
    %v2425 = vshrl.u32 %v2424, 7
    %v2426 = vsub.s32 4, %v2425
    %v2427 = vrot.slane %v2263, %v2426
    %v2428 = vlaneseq
    %v2429 = vshrl.u32 %v2428, 7
    %v2430 = vsub.s32 4, %v2429
    %v2431 = vrot.slane %v2264, %v2430
    %v2432 = vlaneseq
    %v2433 = vshrl.u32 %v2432, 7
    %v2434 = vsub.s32 4, %v2433
    %v2435 = vrot.slane %v2265, %v2434
    %v2436 = vlaneseq
    %v2437 = vshrl.u32 %v2436, 7
    %v2438 = vsub.s32 4, %v2437
    %v2439 = vrot.slane %v2266, %v2438
    %v2440 = vmul.f32 %v2371, %v2411
    %v2441 = vmul.f32 %v2376, %v2415
    %v2442 = vmul.f32 %v2381, %v2419
    %v2443 = vmul.f32 %v2386, %v2423
    %v2444 = vmul.f32 %v2391, %v2427
    %v2445 = vmul.f32 %v2396, %v2431
    %v2446 = vmul.f32 %v2401, %v2435
    %v2447 = vmul.f32 %v2406, %v2439
    %v2448 = vmul.f32 %v2267, %v2267
    %v2449 = vmul.f32 %v2268, %v2268
    %v2450 = vmul.f32 %v2269, %v2269
    %v2451 = vmul.f32 %v2270, %v2270
    %v2452 = vmul.f32 %v2271, %v2271
    %v2453 = vmul.f32 %v2272, %v2272
    %v2454 = vmul.f32 %v2273, %v2273
    %v2455 = vmul.f32 %v2274, %v2274
    %v2464 = vrot.slane %v2448, 4
    %v2465 = vrot.slane %v2449, 4
    %v2466 = vrot.slane %v2450, 4
    %v2467 = vrot.slane %v2451, 4
    %v2468 = vrot.slane %v2452, 4
    %v2469 = vrot.slane %v2453, 4
    %v2470 = vrot.slane %v2454, 4
    %v2471 = vrot.slane %v2455, 4
    %2472 = vrot.lane.b32.xlu0 %v2464, 124
    %v2473 = vpop.permute.xlu0 %2472
    %2474 = vrot.lane.b32.xlu0 %v2465, 124
    %v2475 = vpop.permute.xlu0 %2474
    %2476 = vrot.lane.b32.xlu0 %v2466, 124
    %v2477 = vpop.permute.xlu0 %2476
    %2478 = vrot.lane.b32.xlu0 %v2467, 124
    %v2479 = vpop.permute.xlu0 %2478
    %2480 = vrot.lane.b32.xlu0 %v2468, 124
    %v2481 = vpop.permute.xlu0 %2480
    %2482 = vrot.lane.b32.xlu0 %v2469, 124
    %v2483 = vpop.permute.xlu0 %2482
    %2484 = vrot.lane.b32.xlu0 %v2470, 124
    %v2485 = vpop.permute.xlu0 %2484
    %2486 = vrot.lane.b32.xlu0 %v2471, 124
    %v2487 = vpop.permute.xlu0 %2486
    %s2488 = vtos %v2473
    %v2489 = vstv %s2488
    %s2491 = vtos %v2475
    %v2492 = vstv %s2491
    %s2494 = vtos %v2477
    %v2495 = vstv %s2494
    %s2497 = vtos %v2479
    %v2498 = vstv %s2497
    %s2500 = vtos %v2481
    %v2501 = vstv %s2500
    %s2503 = vtos %v2483
    %v2504 = vstv %s2503
    %s2506 = vtos %v2485
    %v2507 = vstv %s2506
    %s2509 = vtos %v2487
    %v2510 = vstv %s2509
    %v2512 = vmul.f32 %v2440, %v2489
    %v2513 = vmul.f32 %v2441, %v2492
    %v2514 = vmul.f32 %v2442, %v2495
    %v2515 = vmul.f32 %v2443, %v2498
    %v2516 = vmul.f32 %v2444, %v2501
    %v2517 = vmul.f32 %v2445, %v2504
    %v2518 = vmul.f32 %v2446, %v2507
    %v2519 = vmul.f32 %v2447, %v2510
    %v2520 = vsub.f32 %v2259, %v2512
    %v2521 = vsub.f32 %v2260, %v2513
    %v2522 = vsub.f32 %v2261, %v2514
    %v2523 = vsub.f32 %v2262, %v2515
    %v2524 = vsub.f32 %v2263, %v2516
    %v2525 = vsub.f32 %v2264, %v2517
    %v2526 = vsub.f32 %v2265, %v2518
    %v2527 = vsub.f32 %v2266, %v2519
    %v2528 = vrsqrt.pop %v2520
    %v2529 = vrsqrt.pop %v2521
    %v2530 = vrsqrt.pop %v2522
    %v2531 = vrsqrt.pop %v2523
    %v2532 = vrsqrt.pop %v2524
    %v2533 = vrsqrt.pop %v2525
    %v2534 = vrsqrt.pop %v2526
    %v2535 = vrsqrt.pop %v2527
    %vm2536 = vcmp.eq.s32.totalorder %v561, 5
    %vm2537 = vcmp.ge.s32.totalorder %v559, 5
    %vm2538 = vmand %vm2536, %vm2537
    %v2539 = vlaneseq
    %v2540 = vshrl.u32 %v2539, 7
    %v2541 = vsub.s32 5, %v2540
    %v2542 = vrot.slane %v2528, %v2541
    %v2543 = vlaneseq
    %v2544 = vshrl.u32 %v2543, 7
    %v2545 = vsub.s32 5, %v2544
    %v2546 = vrot.slane %v2529, %v2545
    %v2547 = vlaneseq
    %v2548 = vshrl.u32 %v2547, 7
    %v2549 = vsub.s32 5, %v2548
    %v2550 = vrot.slane %v2530, %v2549
    %v2551 = vlaneseq
    %v2552 = vshrl.u32 %v2551, 7
    %v2553 = vsub.s32 5, %v2552
    %v2554 = vrot.slane %v2531, %v2553
    %v2555 = vlaneseq
    %v2556 = vshrl.u32 %v2555, 7
    %v2557 = vsub.s32 5, %v2556
    %v2558 = vrot.slane %v2532, %v2557
    %v2559 = vlaneseq
    %v2560 = vshrl.u32 %v2559, 7
    %v2561 = vsub.s32 5, %v2560
    %v2562 = vrot.slane %v2533, %v2561
    %v2563 = vlaneseq
    %v2564 = vshrl.u32 %v2563, 7
    %v2565 = vsub.s32 5, %v2564
    %v2566 = vrot.slane %v2534, %v2565
    %v2567 = vlaneseq
    %v2568 = vshrl.u32 %v2567, 7
    %v2569 = vsub.s32 5, %v2568
    %v2570 = vrot.slane %v2535, %v2569
    %v2571 = vmul.f32 %v2520, %v2542
    %v2572 = vmul.f32 %v2521, %v2546
    %v2573 = vmul.f32 %v2522, %v2550
    %v2574 = vmul.f32 %v2523, %v2554
    %v2575 = vmul.f32 %v2524, %v2558
    %v2576 = vmul.f32 %v2525, %v2562
    %v2577 = vmul.f32 %v2526, %v2566
    %v2578 = vmul.f32 %v2527, %v2570
    %v2579 = vsel %vm2538, 1, 0
    %vm2580 = vcmp.eq.s32.totalorder %v2579, 1
    %2582 = vset.pattern.permute.xlu0 5
    %2583 = vperm.xlu0 %2582, %v2571
    %v2584 = vpop.permute.xlu0 %2583
    %2587 = vset.pattern.permute.xlu0 5
    %2588 = vperm.xlu0 %2587, %v2572
    %v2589 = vpop.permute.xlu0 %2588
    %2592 = vset.pattern.permute.xlu0 5
    %2593 = vperm.xlu0 %2592, %v2573
    %v2594 = vpop.permute.xlu0 %2593
    %2597 = vset.pattern.permute.xlu0 5
    %2598 = vperm.xlu0 %2597, %v2574
    %v2599 = vpop.permute.xlu0 %2598
    %2602 = vset.pattern.permute.xlu0 5
    %2603 = vperm.xlu0 %2602, %v2575
    %v2604 = vpop.permute.xlu0 %2603
    %2607 = vset.pattern.permute.xlu0 5
    %2608 = vperm.xlu0 %2607, %v2576
    %v2609 = vpop.permute.xlu0 %2608
    %2612 = vset.pattern.permute.xlu0 5
    %2613 = vperm.xlu0 %2612, %v2577
    %v2614 = vpop.permute.xlu0 %2613
    %2617 = vset.pattern.permute.xlu0 5
    %2618 = vperm.xlu0 %2617, %v2578
    %v2619 = vpop.permute.xlu0 %2618
    %v2621 = vsel %vm2580, %v2584, %v2360
    %v2622 = vsel %vm2580, %v2589, %v2361
    %v2623 = vsel %vm2580, %v2594, %v2362
    %v2624 = vsel %vm2580, %v2599, %v2363
    %v2625 = vsel %vm2580, %v2604, %v2364
    %v2626 = vsel %vm2580, %v2609, %v2365
    %v2627 = vsel %vm2580, %v2614, %v2366
    %v2628 = vsel %vm2580, %v2619, %v2367
    %2630 = vset.pattern.permute.xlu0 5
    %2631 = vperm.xlu0 %2630, %v2520
    %v2632 = vpop.permute.xlu0 %2631
    %2635 = vset.pattern.permute.xlu0 5
    %2636 = vperm.xlu0 %2635, %v2521
    %v2637 = vpop.permute.xlu0 %2636
    %2640 = vset.pattern.permute.xlu0 5
    %2641 = vperm.xlu0 %2640, %v2522
    %v2642 = vpop.permute.xlu0 %2641
    %2645 = vset.pattern.permute.xlu0 5
    %2646 = vperm.xlu0 %2645, %v2523
    %v2647 = vpop.permute.xlu0 %2646
    %2650 = vset.pattern.permute.xlu0 5
    %2651 = vperm.xlu0 %2650, %v2524
    %v2652 = vpop.permute.xlu0 %2651
    %2655 = vset.pattern.permute.xlu0 5
    %2656 = vperm.xlu0 %2655, %v2525
    %v2657 = vpop.permute.xlu0 %2656
    %2660 = vset.pattern.permute.xlu0 5
    %2661 = vperm.xlu0 %2660, %v2526
    %v2662 = vpop.permute.xlu0 %2661
    %2665 = vset.pattern.permute.xlu0 5
    %2666 = vperm.xlu0 %2665, %v2527
    %v2667 = vpop.permute.xlu0 %2666
    %v2669 = vlaneseq
    %v2670 = vshrl.u32 %v2669, 7
    %v2671 = vsub.s32 5, %v2670
    %v2672 = vrot.slane %v2520, %v2671
    %v2673 = vlaneseq
    %v2674 = vshrl.u32 %v2673, 7
    %v2675 = vsub.s32 5, %v2674
    %v2676 = vrot.slane %v2521, %v2675
    %v2677 = vlaneseq
    %v2678 = vshrl.u32 %v2677, 7
    %v2679 = vsub.s32 5, %v2678
    %v2680 = vrot.slane %v2522, %v2679
    %v2681 = vlaneseq
    %v2682 = vshrl.u32 %v2681, 7
    %v2683 = vsub.s32 5, %v2682
    %v2684 = vrot.slane %v2523, %v2683
    %v2685 = vlaneseq
    %v2686 = vshrl.u32 %v2685, 7
    %v2687 = vsub.s32 5, %v2686
    %v2688 = vrot.slane %v2524, %v2687
    %v2689 = vlaneseq
    %v2690 = vshrl.u32 %v2689, 7
    %v2691 = vsub.s32 5, %v2690
    %v2692 = vrot.slane %v2525, %v2691
    %v2693 = vlaneseq
    %v2694 = vshrl.u32 %v2693, 7
    %v2695 = vsub.s32 5, %v2694
    %v2696 = vrot.slane %v2526, %v2695
    %v2697 = vlaneseq
    %v2698 = vshrl.u32 %v2697, 7
    %v2699 = vsub.s32 5, %v2698
    %v2700 = vrot.slane %v2527, %v2699
    %v2701 = vmul.f32 %v2632, %v2672
    %v2702 = vmul.f32 %v2637, %v2676
    %v2703 = vmul.f32 %v2642, %v2680
    %v2704 = vmul.f32 %v2647, %v2684
    %v2705 = vmul.f32 %v2652, %v2688
    %v2706 = vmul.f32 %v2657, %v2692
    %v2707 = vmul.f32 %v2662, %v2696
    %v2708 = vmul.f32 %v2667, %v2700
    %v2709 = vmul.f32 %v2528, %v2528
    %v2710 = vmul.f32 %v2529, %v2529
    %v2711 = vmul.f32 %v2530, %v2530
    %v2712 = vmul.f32 %v2531, %v2531
    %v2713 = vmul.f32 %v2532, %v2532
    %v2714 = vmul.f32 %v2533, %v2533
    %v2715 = vmul.f32 %v2534, %v2534
    %v2716 = vmul.f32 %v2535, %v2535
    %v2725 = vrot.slane %v2709, 5
    %v2726 = vrot.slane %v2710, 5
    %v2727 = vrot.slane %v2711, 5
    %v2728 = vrot.slane %v2712, 5
    %v2729 = vrot.slane %v2713, 5
    %v2730 = vrot.slane %v2714, 5
    %v2731 = vrot.slane %v2715, 5
    %v2732 = vrot.slane %v2716, 5
    %2733 = vrot.lane.b32.xlu0 %v2725, 123
    %v2734 = vpop.permute.xlu0 %2733
    %2735 = vrot.lane.b32.xlu0 %v2726, 123
    %v2736 = vpop.permute.xlu0 %2735
    %2737 = vrot.lane.b32.xlu0 %v2727, 123
    %v2738 = vpop.permute.xlu0 %2737
    %2739 = vrot.lane.b32.xlu0 %v2728, 123
    %v2740 = vpop.permute.xlu0 %2739
    %2741 = vrot.lane.b32.xlu0 %v2729, 123
    %v2742 = vpop.permute.xlu0 %2741
    %2743 = vrot.lane.b32.xlu0 %v2730, 123
    %v2744 = vpop.permute.xlu0 %2743
    %2745 = vrot.lane.b32.xlu0 %v2731, 123
    %v2746 = vpop.permute.xlu0 %2745
    %2747 = vrot.lane.b32.xlu0 %v2732, 123
    %v2748 = vpop.permute.xlu0 %2747
    %s2749 = vtos %v2734
    %v2750 = vstv %s2749
    %s2752 = vtos %v2736
    %v2753 = vstv %s2752
    %s2755 = vtos %v2738
    %v2756 = vstv %s2755
    %s2758 = vtos %v2740
    %v2759 = vstv %s2758
    %s2761 = vtos %v2742
    %v2762 = vstv %s2761
    %s2764 = vtos %v2744
    %v2765 = vstv %s2764
    %s2767 = vtos %v2746
    %v2768 = vstv %s2767
    %s2770 = vtos %v2748
    %v2771 = vstv %s2770
    %v2773 = vmul.f32 %v2701, %v2750
    %v2774 = vmul.f32 %v2702, %v2753
    %v2775 = vmul.f32 %v2703, %v2756
    %v2776 = vmul.f32 %v2704, %v2759
    %v2777 = vmul.f32 %v2705, %v2762
    %v2778 = vmul.f32 %v2706, %v2765
    %v2779 = vmul.f32 %v2707, %v2768
    %v2780 = vmul.f32 %v2708, %v2771
    %v2781 = vsub.f32 %v2520, %v2773
    %v2782 = vsub.f32 %v2521, %v2774
    %v2783 = vsub.f32 %v2522, %v2775
    %v2784 = vsub.f32 %v2523, %v2776
    %v2785 = vsub.f32 %v2524, %v2777
    %v2786 = vsub.f32 %v2525, %v2778
    %v2787 = vsub.f32 %v2526, %v2779
    %v2788 = vsub.f32 %v2527, %v2780
    %v2789 = vrsqrt.pop %v2781
    %v2790 = vrsqrt.pop %v2782
    %v2791 = vrsqrt.pop %v2783
    %v2792 = vrsqrt.pop %v2784
    %v2793 = vrsqrt.pop %v2785
    %v2794 = vrsqrt.pop %v2786
    %v2795 = vrsqrt.pop %v2787
    %v2796 = vrsqrt.pop %v2788
    %vm2797 = vcmp.eq.s32.totalorder %v561, 6
    %vm2798 = vcmp.ge.s32.totalorder %v559, 6
    %vm2799 = vmand %vm2797, %vm2798
    %v2800 = vlaneseq
    %v2801 = vshrl.u32 %v2800, 7
    %v2802 = vsub.s32 6, %v2801
    %v2803 = vrot.slane %v2789, %v2802
    %v2804 = vlaneseq
    %v2805 = vshrl.u32 %v2804, 7
    %v2806 = vsub.s32 6, %v2805
    %v2807 = vrot.slane %v2790, %v2806
    %v2808 = vlaneseq
    %v2809 = vshrl.u32 %v2808, 7
    %v2810 = vsub.s32 6, %v2809
    %v2811 = vrot.slane %v2791, %v2810
    %v2812 = vlaneseq
    %v2813 = vshrl.u32 %v2812, 7
    %v2814 = vsub.s32 6, %v2813
    %v2815 = vrot.slane %v2792, %v2814
    %v2816 = vlaneseq
    %v2817 = vshrl.u32 %v2816, 7
    %v2818 = vsub.s32 6, %v2817
    %v2819 = vrot.slane %v2793, %v2818
    %v2820 = vlaneseq
    %v2821 = vshrl.u32 %v2820, 7
    %v2822 = vsub.s32 6, %v2821
    %v2823 = vrot.slane %v2794, %v2822
    %v2824 = vlaneseq
    %v2825 = vshrl.u32 %v2824, 7
    %v2826 = vsub.s32 6, %v2825
    %v2827 = vrot.slane %v2795, %v2826
    %v2828 = vlaneseq
    %v2829 = vshrl.u32 %v2828, 7
    %v2830 = vsub.s32 6, %v2829
    %v2831 = vrot.slane %v2796, %v2830
    %v2832 = vmul.f32 %v2781, %v2803
    %v2833 = vmul.f32 %v2782, %v2807
    %v2834 = vmul.f32 %v2783, %v2811
    %v2835 = vmul.f32 %v2784, %v2815
    %v2836 = vmul.f32 %v2785, %v2819
    %v2837 = vmul.f32 %v2786, %v2823
    %v2838 = vmul.f32 %v2787, %v2827
    %v2839 = vmul.f32 %v2788, %v2831
    %v2840 = vsel %vm2799, 1, 0
    %vm2841 = vcmp.eq.s32.totalorder %v2840, 1
    %2843 = vset.pattern.permute.xlu0 6
    %2844 = vperm.xlu0 %2843, %v2832
    %v2845 = vpop.permute.xlu0 %2844
    %2848 = vset.pattern.permute.xlu0 6
    %2849 = vperm.xlu0 %2848, %v2833
    %v2850 = vpop.permute.xlu0 %2849
    %2853 = vset.pattern.permute.xlu0 6
    %2854 = vperm.xlu0 %2853, %v2834
    %v2855 = vpop.permute.xlu0 %2854
    %2858 = vset.pattern.permute.xlu0 6
    %2859 = vperm.xlu0 %2858, %v2835
    %v2860 = vpop.permute.xlu0 %2859
    %2863 = vset.pattern.permute.xlu0 6
    %2864 = vperm.xlu0 %2863, %v2836
    %v2865 = vpop.permute.xlu0 %2864
    %2868 = vset.pattern.permute.xlu0 6
    %2869 = vperm.xlu0 %2868, %v2837
    %v2870 = vpop.permute.xlu0 %2869
    %2873 = vset.pattern.permute.xlu0 6
    %2874 = vperm.xlu0 %2873, %v2838
    %v2875 = vpop.permute.xlu0 %2874
    %2878 = vset.pattern.permute.xlu0 6
    %2879 = vperm.xlu0 %2878, %v2839
    %v2880 = vpop.permute.xlu0 %2879
    %v2882 = vsel %vm2841, %v2845, %v2621
    %v2883 = vsel %vm2841, %v2850, %v2622
    %v2884 = vsel %vm2841, %v2855, %v2623
    %v2885 = vsel %vm2841, %v2860, %v2624
    %v2886 = vsel %vm2841, %v2865, %v2625
    %v2887 = vsel %vm2841, %v2870, %v2626
    %v2888 = vsel %vm2841, %v2875, %v2627
    %v2889 = vsel %vm2841, %v2880, %v2628
    %2891 = vset.pattern.permute.xlu0 6
    %2892 = vperm.xlu0 %2891, %v2781
    %v2893 = vpop.permute.xlu0 %2892
    %2896 = vset.pattern.permute.xlu0 6
    %2897 = vperm.xlu0 %2896, %v2782
    %v2898 = vpop.permute.xlu0 %2897
    %2901 = vset.pattern.permute.xlu0 6
    %2902 = vperm.xlu0 %2901, %v2783
    %v2903 = vpop.permute.xlu0 %2902
    %2906 = vset.pattern.permute.xlu0 6
    %2907 = vperm.xlu0 %2906, %v2784
    %v2908 = vpop.permute.xlu0 %2907
    %2911 = vset.pattern.permute.xlu0 6
    %2912 = vperm.xlu0 %2911, %v2785
    %v2913 = vpop.permute.xlu0 %2912
    %2916 = vset.pattern.permute.xlu0 6
    %2917 = vperm.xlu0 %2916, %v2786
    %v2918 = vpop.permute.xlu0 %2917
    %2921 = vset.pattern.permute.xlu0 6
    %2922 = vperm.xlu0 %2921, %v2787
    %v2923 = vpop.permute.xlu0 %2922
    %2926 = vset.pattern.permute.xlu0 6
    %2927 = vperm.xlu0 %2926, %v2788
    %v2928 = vpop.permute.xlu0 %2927
    %v2930 = vlaneseq
    %v2931 = vshrl.u32 %v2930, 7
    %v2932 = vsub.s32 6, %v2931
    %v2933 = vrot.slane %v2781, %v2932
    %v2934 = vlaneseq
    %v2935 = vshrl.u32 %v2934, 7
    %v2936 = vsub.s32 6, %v2935
    %v2937 = vrot.slane %v2782, %v2936
    %v2938 = vlaneseq
    %v2939 = vshrl.u32 %v2938, 7
    %v2940 = vsub.s32 6, %v2939
    %v2941 = vrot.slane %v2783, %v2940
    %v2942 = vlaneseq
    %v2943 = vshrl.u32 %v2942, 7
    %v2944 = vsub.s32 6, %v2943
    %v2945 = vrot.slane %v2784, %v2944
    %v2946 = vlaneseq
    %v2947 = vshrl.u32 %v2946, 7
    %v2948 = vsub.s32 6, %v2947
    %v2949 = vrot.slane %v2785, %v2948
    %v2950 = vlaneseq
    %v2951 = vshrl.u32 %v2950, 7
    %v2952 = vsub.s32 6, %v2951
    %v2953 = vrot.slane %v2786, %v2952
    %v2954 = vlaneseq
    %v2955 = vshrl.u32 %v2954, 7
    %v2956 = vsub.s32 6, %v2955
    %v2957 = vrot.slane %v2787, %v2956
    %v2958 = vlaneseq
    %v2959 = vshrl.u32 %v2958, 7
    %v2960 = vsub.s32 6, %v2959
    %v2961 = vrot.slane %v2788, %v2960
    %v2962 = vmul.f32 %v2893, %v2933
    %v2963 = vmul.f32 %v2898, %v2937
    %v2964 = vmul.f32 %v2903, %v2941
    %v2965 = vmul.f32 %v2908, %v2945
    %v2966 = vmul.f32 %v2913, %v2949
    %v2967 = vmul.f32 %v2918, %v2953
    %v2968 = vmul.f32 %v2923, %v2957
    %v2969 = vmul.f32 %v2928, %v2961
    %v2970 = vmul.f32 %v2789, %v2789
    %v2971 = vmul.f32 %v2790, %v2790
    %v2972 = vmul.f32 %v2791, %v2791
    %v2973 = vmul.f32 %v2792, %v2792
    %v2974 = vmul.f32 %v2793, %v2793
    %v2975 = vmul.f32 %v2794, %v2794
    %v2976 = vmul.f32 %v2795, %v2795
    %v2977 = vmul.f32 %v2796, %v2796
    %v2986 = vrot.slane %v2970, 6
    %v2987 = vrot.slane %v2971, 6
    %v2988 = vrot.slane %v2972, 6
    %v2989 = vrot.slane %v2973, 6
    %v2990 = vrot.slane %v2974, 6
    %v2991 = vrot.slane %v2975, 6
    %v2992 = vrot.slane %v2976, 6
    %v2993 = vrot.slane %v2977, 6
    %2994 = vrot.lane.b32.xlu0 %v2986, 122
    %v2995 = vpop.permute.xlu0 %2994
    %2996 = vrot.lane.b32.xlu0 %v2987, 122
    %v2997 = vpop.permute.xlu0 %2996
    %2998 = vrot.lane.b32.xlu0 %v2988, 122
    %v2999 = vpop.permute.xlu0 %2998
    %3000 = vrot.lane.b32.xlu0 %v2989, 122
    %v3001 = vpop.permute.xlu0 %3000
    %3002 = vrot.lane.b32.xlu0 %v2990, 122
    %v3003 = vpop.permute.xlu0 %3002
    %3004 = vrot.lane.b32.xlu0 %v2991, 122
    %v3005 = vpop.permute.xlu0 %3004
    %3006 = vrot.lane.b32.xlu0 %v2992, 122
    %v3007 = vpop.permute.xlu0 %3006
    %3008 = vrot.lane.b32.xlu0 %v2993, 122
    %v3009 = vpop.permute.xlu0 %3008
    %s3010 = vtos %v2995
    %v3011 = vstv %s3010
    %s3013 = vtos %v2997
    %v3014 = vstv %s3013
    %s3016 = vtos %v2999
    %v3017 = vstv %s3016
    %s3019 = vtos %v3001
    %v3020 = vstv %s3019
    %s3022 = vtos %v3003
    %v3023 = vstv %s3022
    %s3025 = vtos %v3005
    %v3026 = vstv %s3025
    %s3028 = vtos %v3007
    %v3029 = vstv %s3028
    %s3031 = vtos %v3009
    %v3032 = vstv %s3031
    %v3034 = vmul.f32 %v2962, %v3011
    %v3035 = vmul.f32 %v2963, %v3014
    %v3036 = vmul.f32 %v2964, %v3017
    %v3037 = vmul.f32 %v2965, %v3020
    %v3038 = vmul.f32 %v2966, %v3023
    %v3039 = vmul.f32 %v2967, %v3026
    %v3040 = vmul.f32 %v2968, %v3029
    %v3041 = vmul.f32 %v2969, %v3032
    %v3042 = vsub.f32 %v2781, %v3034
    %v3043 = vsub.f32 %v2782, %v3035
    %v3044 = vsub.f32 %v2783, %v3036
    %v3045 = vsub.f32 %v2784, %v3037
    %v3046 = vsub.f32 %v2785, %v3038
    %v3047 = vsub.f32 %v2786, %v3039
    %v3048 = vsub.f32 %v2787, %v3040
    %v3049 = vsub.f32 %v2788, %v3041
    %v3050 = vrsqrt.pop %v3042
    %v3051 = vrsqrt.pop %v3043
    %v3052 = vrsqrt.pop %v3044
    %v3053 = vrsqrt.pop %v3045
    %v3054 = vrsqrt.pop %v3046
    %v3055 = vrsqrt.pop %v3047
    %v3056 = vrsqrt.pop %v3048
    %v3057 = vrsqrt.pop %v3049
    %vm3058 = vcmp.eq.s32.totalorder %v561, 7
    %vm3059 = vcmp.ge.s32.totalorder %v559, 7
    %vm3060 = vmand %vm3058, %vm3059
    %v3061 = vlaneseq
    %v3062 = vshrl.u32 %v3061, 7
    %v3063 = vsub.s32 7, %v3062
    %v3064 = vrot.slane %v3050, %v3063
    %v3065 = vlaneseq
    %v3066 = vshrl.u32 %v3065, 7
    %v3067 = vsub.s32 7, %v3066
    %v3068 = vrot.slane %v3051, %v3067
    %v3069 = vlaneseq
    %v3070 = vshrl.u32 %v3069, 7
    %v3071 = vsub.s32 7, %v3070
    %v3072 = vrot.slane %v3052, %v3071
    %v3073 = vlaneseq
    %v3074 = vshrl.u32 %v3073, 7
    %v3075 = vsub.s32 7, %v3074
    %v3076 = vrot.slane %v3053, %v3075
    %v3077 = vlaneseq
    %v3078 = vshrl.u32 %v3077, 7
    %v3079 = vsub.s32 7, %v3078
    %v3080 = vrot.slane %v3054, %v3079
    %v3081 = vlaneseq
    %v3082 = vshrl.u32 %v3081, 7
    %v3083 = vsub.s32 7, %v3082
    %v3084 = vrot.slane %v3055, %v3083
    %v3085 = vlaneseq
    %v3086 = vshrl.u32 %v3085, 7
    %v3087 = vsub.s32 7, %v3086
    %v3088 = vrot.slane %v3056, %v3087
    %v3089 = vlaneseq
    %v3090 = vshrl.u32 %v3089, 7
    %v3091 = vsub.s32 7, %v3090
    %v3092 = vrot.slane %v3057, %v3091
    %v3093 = vmul.f32 %v3042, %v3064
    %v3094 = vmul.f32 %v3043, %v3068
    %v3095 = vmul.f32 %v3044, %v3072
    %v3096 = vmul.f32 %v3045, %v3076
    %v3097 = vmul.f32 %v3046, %v3080
    %v3098 = vmul.f32 %v3047, %v3084
    %v3099 = vmul.f32 %v3048, %v3088
    %v3100 = vmul.f32 %v3049, %v3092
    %v3101 = vsel %vm3060, 1, 0
    %vm3102 = vcmp.eq.s32.totalorder %v3101, 1
    %3104 = vset.pattern.permute.xlu0 7
    %3105 = vperm.xlu0 %3104, %v3093
    %v3106 = vpop.permute.xlu0 %3105
    %3109 = vset.pattern.permute.xlu0 7
    %3110 = vperm.xlu0 %3109, %v3094
    %v3111 = vpop.permute.xlu0 %3110
    %3114 = vset.pattern.permute.xlu0 7
    %3115 = vperm.xlu0 %3114, %v3095
    %v3116 = vpop.permute.xlu0 %3115
    %3119 = vset.pattern.permute.xlu0 7
    %3120 = vperm.xlu0 %3119, %v3096
    %v3121 = vpop.permute.xlu0 %3120
    %3124 = vset.pattern.permute.xlu0 7
    %3125 = vperm.xlu0 %3124, %v3097
    %v3126 = vpop.permute.xlu0 %3125
    %3129 = vset.pattern.permute.xlu0 7
    %3130 = vperm.xlu0 %3129, %v3098
    %v3131 = vpop.permute.xlu0 %3130
    %3134 = vset.pattern.permute.xlu0 7
    %3135 = vperm.xlu0 %3134, %v3099
    %v3136 = vpop.permute.xlu0 %3135
    %3139 = vset.pattern.permute.xlu0 7
    %3140 = vperm.xlu0 %3139, %v3100
    %v3141 = vpop.permute.xlu0 %3140
    %v3143 = vsel %vm3102, %v3106, %v2882
    %v3144 = vsel %vm3102, %v3111, %v2883
    %v3145 = vsel %vm3102, %v3116, %v2884
    %v3146 = vsel %vm3102, %v3121, %v2885
    %v3147 = vsel %vm3102, %v3126, %v2886
    %v3148 = vsel %vm3102, %v3131, %v2887
    %v3149 = vsel %vm3102, %v3136, %v2888
    %v3150 = vsel %vm3102, %v3141, %v2889
    %3151 = vst.msk [vmem:[#allocation11] sm:$0xff] %vm92, %v3143
    %3152 = vst.msk [vmem:[#allocation11 + $0x8] sm:$0xff] %vm92, %v3144
    %3153 = vst.msk [vmem:[#allocation11 + $0x10] sm:$0xff] %vm92, %v3145
    %3154 = vst.msk [vmem:[#allocation11 + $0x18] sm:$0xff] %vm92, %v3146
    %3155 = vst.msk [vmem:[#allocation11 + $0x20] sm:$0xff] %vm92, %v3147
    %3156 = vst.msk [vmem:[#allocation11 + $0x28] sm:$0xff] %vm92, %v3148
    %3157 = vst.msk [vmem:[#allocation11 + $0x30] sm:$0xff] %vm92, %v3149
    %3158 = vst.msk [vmem:[#allocation11 + $0x38] sm:$0xff] %vm92, %v3150
    // Predicated region
    $region58: #{_marginal_forward.1} parent=1 // pred_check
      _
    $region59: #{_marginal_forward.1} parent=1 // pred_check_branch
      %3160 = sbr.rel (0) target = $region61
    $region60: #{_marginal_forward.1} parent=1 // pred_region
      %s3162 = ssub.s32 128, 128
      %3163 = vsyncadd [#allocation4], %s3162
      %s3165 = sshll.u32 [#allocation10], 4
      %s3166 = int_to_ptr.vmem [resolvable:$true] %s3165
      %3168 = dma.vmem_to_hbm [thread:$0]  %s3166, 128, %s10, [#allocation4]
    $region61: #{_marginal_forward.1} parent=1 // pred_fallthru
      _
    // Predicated region
    $region62: #{_marginal_forward.1} parent=1 // pred_check
      _
    $region63: #{_marginal_forward.1} parent=1 // pred_check_branch
      %3170 = sbr.rel (0) target = $region65
    $region64: #{_marginal_forward.1} parent=1 // pred_region
      %s3172 = ssub.s32 1024, 1024
      %3173 = vsyncadd [#allocation12], %s3172
      %s3174 = sshll.u32 [#allocation11], 4
      %s3175 = int_to_ptr.vmem [resolvable:$true] %s3174
      %3180 = dma.vmem_to_hbm [thread:$0]  %s3175, 1024, %s11, [#allocation12], 128, 128, 8
    $region65: #{_marginal_forward.1} parent=1 // pred_fallthru
      _
    // Predicated region
    $region66: #{_marginal_forward.1} parent=1 // pred_check
      _
    $region67: #{_marginal_forward.1} parent=1 // pred_check_branch
      %3182 = sbr.rel (0) target = $region69
    $region68: #{_marginal_forward.1} parent=1 // pred_region
      %s3184 = ssub.s32 1024, 1024
      %3185 = vsyncadd [#allocation12], %s3184
      %s3186 = sshll.u32 [#allocation13], 4
      %s3187 = int_to_ptr.vmem [resolvable:$true] %s3186
      %3192 = dma.vmem_to_hbm [thread:$0]  %s3187, 1024, %s12, [#allocation12], 128, 128, 8
    $region69: #{_marginal_forward.1} parent=1 // pred_fallthru
      _
    // Predicated region
    $region70: #{_marginal_forward.1} parent=1 // pred_check
      _
    $region71: #{_marginal_forward.1} parent=1 // pred_check_branch
      %3194 = sbr.rel (0) target = $region73
    $region72: #{_marginal_forward.1} parent=1 // pred_region
      %3195 = dma.done [#allocation4], 128
    $region73: #{_marginal_forward.1} parent=1 // pred_fallthru
      _
    // Predicated region
    $region74: #{_marginal_forward.1} parent=1 // pred_check
      _
    $region75: #{_marginal_forward.1} parent=1 // pred_check_branch
      %3197 = sbr.rel (0) target = $region77
    $region76: #{_marginal_forward.1} parent=1 // pred_region
      %3198 = dma.done [#allocation12], 1024
    $region77: #{_marginal_forward.1} parent=1 // pred_fallthru
      _
    // Predicated region
    $region78: #{_marginal_forward.1} parent=1 // pred_check
      _
    $region79: #{_marginal_forward.1} parent=1 // pred_check_branch
      %3200 = sbr.rel (0) target = $region81
    $region80: #{_marginal_forward.1} parent=1 // pred_region
      %3201 = dma.done [#allocation12], 1024
    $region81: #{_marginal_forward.1} parent=1 // pred_fallthru
      _
    %3202 = vsyncpa [#allocation3], 1
    %3203 = vsyncpa [#allocation6], 1
    %3204 = vsyncpa [#allocation9], 1
    %3205 = vsyncpa [#allocation4], 1
    %3206 = vsyncpa [#allocation12], 1

</llo_original>
